<compile_context>
chip_gen: v7x
topology: tpu7x:2x2x1
jax: 0.10.0
libtpu: 0.0.40
codegen_flags: <defaults>
</compile_context>

<pallas_src>
import functools

import jax
import jax.numpy as jnp
from jax.experimental import pallas as pl
from jax.experimental.pallas import tpu as pltpu


def _round_up(n, m):
    return ((n + m - 1) // m) * m


# ----------------------------------------------------------------------------
# Fused kernel: whole MLP chain on one batch tile.
#   refs layout: x_ref, w1, b1, w2, b2, ..., wn, bn, o_ref
# ----------------------------------------------------------------------------
def _fused_mlp_kernel(x_ref, *refs, acts):
    o_ref = refs[-1]
    wb_refs = refs[:-1]
    n_layers = len(wb_refs) // 2
    assert n_layers == len(acts)

    h = x_ref[...]                              # (TM, K0) bf16 activations
    for li in range(n_layers):                  # unrolled straight-line chain
        w = wb_refs[2 * li][...]                # (K, N) bf16, VMEM-resident
        b = wb_refs[2 * li + 1][...]            # (1, N) f32, broadcasts over TM
        y = jnp.dot(h, w, preferred_element_type=jnp.float32) + b   # f32 acc
        act = acts[li]
        if act == "tanh":
            h = jnp.tanh(y).astype(jnp.bfloat16)      # bf16 carry to next layer
        elif act == "sigmoid":
            # final layer: sigmoid(y) == 0.5*(tanh(0.5*y)+1)  (EUP + VPU FMA)
            h = 0.5 * (jnp.tanh(0.5 * y) + 1.0)
        elif act == "none":
            h = y.astype(jnp.bfloat16)
        else:
            raise ValueError(f"unknown act {act}")
    o_ref[...] = h.astype(o_ref.dtype)


def _acts_for(params):
    n_enc = len(params["enc"])
    n_dec = len(params["dec"])
    return tuple(["tanh"] * (n_enc - 1) + ["none"]
                 + ["tanh"] * (n_dec - 1) + ["sigmoid"])


def _choose_tile_m(batch):
    # >=2 tiles whenever possible so the "parallel" batch axis is sharded
    # across both v7x TensorCores; 512-row tiles for large batches (halves
    # per-grid-step overhead vs 256, still MXU-friendly).
    if batch <= 8:
        return 8
    if batch <= 1024:
        return max(8, _round_up(pl.cdiv(batch, 2), 8))
    return 512


def _estimate_vmem_bytes(tm, k0_p, padded_wb, n_out_p, out_itemsize, wb_bufs):
    total = 2 * tm * k0_p * 2                    # bf16 input tile, double-buffered
    total += 2 * tm * n_out_p * out_itemsize     # output tile, double-buffered
    widest = k0_p
    for (w, b) in padded_wb:
        k, n = w.shape
        total += wb_bufs * (k * n * w.dtype.itemsize + b.size * b.dtype.itemsize)
        widest = max(widest, n)
    # live intermediates inside the body (f32 y + bf16 h, a few copies)
    total += 4 * tm * widest * 4
    return total


# ----------------------------------------------------------------------------
# Forward pass (semantics of AutoencoderMLP.forward with scaling=False)
# ----------------------------------------------------------------------------
def autoencoder_mlp_forward(x, params, out_dtype=jnp.float32):
    # TODO(synk): scaling=True (divide by sqrt(in_features) before each layer)
    #             is not wired in; the reproduced configuration uses scaling=False.
    batch = x.shape[0]
    # flatten: NCHW -> (batch, C*H*W), row-major like torch .view; bf16 stream
    x2 = x.reshape(batch, -1).astype(jnp.bfloat16)
    k0 = x2.shape[1]

    layers_wb = list(params["enc"]) + list(params["dec"])
    acts = _acts_for(params)
    assert layers_wb[0][0].shape[0] == k0, "layers[0] must equal flattened size"
    n_out = layers_wb[-1][0].shape[1]

    # --- pad feature dims to lane multiples (128): lane-dense matmuls/stores,
    #     zero padding does not change the real outputs ------------------------
    k0_p = _round_up(k0, 128)
    if k0_p != k0:
        x2 = jnp.pad(x2, ((0, 0), (0, k0_p - k0)))
    padded_wb = []
    for (w, b) in layers_wb:
        k, n = w.shape
        k_p, n_p = _round_up(k, 128), _round_up(n, 128)
        w = w.astype(jnp.bfloat16)
        if (k_p, n_p) != (k, n):
            w = jnp.pad(w, ((0, k_p - k), (0, n_p - n)))
        b2 = b.reshape(1, n).astype(jnp.float32)
        if n_p != n:
            b2 = jnp.pad(b2, ((0, 0), (0, n_p - n)))
        padded_wb.append((w, b2))
    n_out_p = padded_wb[-1][0].shape[1]

    # --- batch tiling ----------------------------------------------------------
    tm = _choose_tile_m(batch)
    m_pad = pl.cdiv(batch, tm) * tm
    if m_pad != batch:
        x2 = jnp.pad(x2, ((0, m_pad - batch), (0, 0)))

    kernel = functools.partial(_fused_mlp_kernel, acts=acts)
    inputs = [x2]
    for (w, b2) in padded_wb:
        inputs.extend((w, b2))

    def run(single_buffer_resident):
        resident_kwargs = (
            dict(pipeline_mode=pl.Buffered(1)) if single_buffer_resident else {})
        in_specs = [pl.BlockSpec((tm, k0_p), lambda i: (i, 0))]
        for (w, b2) in padded_wb:
            k, n = w.shape
            # constant block index -> stays VMEM-resident across batch tiles
            in_specs.append(pl.BlockSpec((k, n), lambda i: (0, 0),
                                         **resident_kwargs))
            in_specs.append(pl.BlockSpec((1, n), lambda i: (0, 0),
                                         **resident_kwargs))

        wb_bufs = 1 if single_buffer_resident else 2
        vmem_needed = _estimate_vmem_bytes(
            tm, k0_p, padded_wb, n_out_p, jnp.dtype(out_dtype).itemsize, wb_bufs)
        # TODO(synk): if vmem_needed approaches the v7x 64 MiB ceiling, the
        #             largest layer's weights should be pipelined over a grid
        #             axis instead of being made fully resident.
        vmem_limit = min(64 * 1024 * 1024,
                         max(32 * 1024 * 1024, int(vmem_needed * 1.25)))

        return pl.pallas_call(
            kernel,
            out_shape=jax.ShapeDtypeStruct((m_pad, n_out_p), out_dtype),
            grid=(m_pad // tm,),
            in_specs=in_specs,
            out_specs=pl.BlockSpec((tm, n_out_p), lambda i: (i, 0)),
            compiler_params=pltpu.CompilerParams(
                dimension_semantics=("parallel",),
                vmem_limit_bytes=vmem_limit,
            ),
        )(*inputs)

    try:
        out = run(single_buffer_resident=True)
    except Exception:
        # pipeline_mode=pl.Buffered(1) not supported by this JAX/Mosaic build:
        # fall back to default (double-buffered) resident specs.
        out = run(single_buffer_resident=False)

    return out[:batch, :n_out]


# ----------------------------------------------------------------------------
# Parameter init (deterministic, mirrors reset_parameters with the defaults:
#   weight ~ N(0,1)*sigma_w / sqrt(in_features),  bias ~ N(0,1)*sigma_b).
# Weights stored as (in, out) and cast to bf16 (native MXU path, halves HBM).
# ----------------------------------------------------------------------------
def init_params(key, layers, sigma_w=1.0, sigma_b=1.0, scaling=False):
    enc_dims = list(zip(layers[:-1], layers[1:]))              # (in, out)
    dec_dims = [(i, o) for (o, i) in reversed(enc_dims)]       # reversed, swapped
    params = {"enc": [], "dec": []}
    for name, dims in (("enc", enc_dims), ("dec", dec_dims)):
        for (l_in, l_out) in dims:
            key, kw, kb = jax.random.split(key, 3)
            w = jax.random.normal(kw, (l_in, l_out), dtype=jnp.float32) * sigma_w
            if not scaling:
                w = w / jnp.sqrt(jnp.float32(l_in))
            b = jax.random.normal(kb, (l_out,), dtype=jnp.float32) * sigma_b
            params[name].append((w.astype(jnp.bfloat16), b))
    return params


# Pure-JAX reference (same bf16-weight math, exact sigmoid), no Pallas.
def _reference_forward(x, params):
    h = x.reshape(x.shape[0], -1).astype(jnp.float32)
    wb = list(params["enc"]) + list(params["dec"])
    acts = _acts_for(params)
    for (w, b), act in zip(wb, acts):
        y = jnp.dot(h.astype(w.dtype), w,
                    preferred_element_type=jnp.float32) + b.astype(jnp.float32)
        if act == "tanh":
            h = jnp.tanh(y)
        elif act == "sigmoid":
            h = 1.0 / (1.0 + jnp.exp(-y))
        else:
            h = y
    return h


if __name__ == "__main__":
    key = jax.random.PRNGKey(0)
    kx, kp = jax.random.split(key)

    # small input consistent with an image autoencoder: (batch=2, C=4, H=16, W=16)
    x = jax.random.normal(kx, (2, 4, 16, 16), dtype=jnp.float32)

    # layers[0] must equal flattened feature size = 4*16*16 = 1024
    layers = [1024, 256, 128]
    params = init_params(kp, layers)

    out = autoencoder_mlp_forward(x, params)
    out = jax.block_until_ready(out)

    ref = _reference_forward(x, params)
    assert out.shape == (2, 1024), out.shape
    assert jnp.allclose(out, ref, atol=1e-3, rtol=1e-3), "mismatch vs reference"

    print("KERNEL_OK")
</pallas_src>

<mosaic_0001>
module attributes {stable_mosaic.version = 11 : i64} {
  func.func @_fused_mlp_kernel(%arg0: i32, %arg1: memref<8x1024xbf16, #tpu.memory_space<vmem>>, %arg2: memref<1024x256xbf16, #tpu.memory_space<vmem>>, %arg3: memref<1x256xf32, #tpu.memory_space<vmem>>, %arg4: memref<256x128xbf16, #tpu.memory_space<vmem>>, %arg5: memref<1x128xf32, #tpu.memory_space<vmem>>, %arg6: memref<128x256xbf16, #tpu.memory_space<vmem>>, %arg7: memref<1x256xf32, #tpu.memory_space<vmem>>, %arg8: memref<256x1024xbf16, #tpu.memory_space<vmem>>, %arg9: memref<1x1024xf32, #tpu.memory_space<vmem>>, %arg10: memref<8x1024xf32, #tpu.memory_space<vmem>>) attributes {dimension_semantics = [#tpu.dimension_semantics<parallel>], iteration_bounds = array<i64: 1>, scalar_prefetch = 0 : i64, scratch_operands = 0 : i64, tpu.core_type = #tpu.core_type<tc>, window_params = [{transform_indices = @transform_0, window_bounds = array<i64: 8, 1024>}, {pipeline_mode = #tpu.pipeline_mode<synchronous>, transform_indices = @transform_1, window_bounds = array<i64: 1024, 256>}, {pipeline_mode = #tpu.pipeline_mode<synchronous>, transform_indices = @transform_2, window_bounds = array<i64: 1, 256>}, {pipeline_mode = #tpu.pipeline_mode<synchronous>, transform_indices = @transform_3, window_bounds = array<i64: 256, 128>}, {pipeline_mode = #tpu.pipeline_mode<synchronous>, transform_indices = @transform_4, window_bounds = array<i64: 1, 128>}, {pipeline_mode = #tpu.pipeline_mode<synchronous>, transform_indices = @transform_5, window_bounds = array<i64: 128, 256>}, {pipeline_mode = #tpu.pipeline_mode<synchronous>, transform_indices = @transform_6, window_bounds = array<i64: 1, 256>}, {pipeline_mode = #tpu.pipeline_mode<synchronous>, transform_indices = @transform_7, window_bounds = array<i64: 256, 1024>}, {pipeline_mode = #tpu.pipeline_mode<synchronous>, transform_indices = @transform_8, window_bounds = array<i64: 1, 1024>}, {transform_indices = @transform_9, window_bounds = array<i64: 8, 1024>}]} {
    %c0 = arith.constant 0 : index
    %c0_0 = arith.constant 0 : index
    %0 = vector.load %arg1[%c0, %c0_0] : memref<8x1024xbf16, #tpu.memory_space<vmem>>, vector<8x1024xbf16>
    %c0_1 = arith.constant 0 : index
    %c0_2 = arith.constant 0 : index
    %1 = vector.load %arg2[%c0_1, %c0_2] : memref<1024x256xbf16, #tpu.memory_space<vmem>>, vector<1024x256xbf16>
    %c0_3 = arith.constant 0 : index
    %c0_4 = arith.constant 0 : index
    %2 = vector.load %arg3[%c0_3, %c0_4] : memref<1x256xf32, #tpu.memory_space<vmem>>, vector<1x256xf32>
    %cst = arith.constant dense<0.000000e+00> : vector<8x256xf32>
    %3 = tpu.matmul %0, %1, %cst {dimension_numbers = #tpu.dot_dimension_numbers<[1], [0], [0], [1], [0, 0, 1, 1], [], []>} : vector<8x1024xbf16>, vector<1024x256xbf16>, vector<8x256xf32> -> vector<8x256xf32>
    %4 = vector.broadcast %2 : vector<1x256xf32> to vector<8x256xf32>
    %5 = arith.addf %3, %4 : vector<8x256xf32>
    %6 = math.tanh %5 : vector<8x256xf32>
    %7 = arith.truncf %6 : vector<8x256xf32> to vector<8x256xbf16>
    %c0_5 = arith.constant 0 : index
    %c0_6 = arith.constant 0 : index
    %8 = vector.load %arg4[%c0_5, %c0_6] : memref<256x128xbf16, #tpu.memory_space<vmem>>, vector<256x128xbf16>
    %c0_7 = arith.constant 0 : index
    %c0_8 = arith.constant 0 : index
    %9 = vector.load %arg5[%c0_7, %c0_8] : memref<1x128xf32, #tpu.memory_space<vmem>>, vector<1x128xf32>
    %cst_9 = arith.constant dense<0.000000e+00> : vector<8x128xf32>
    %10 = tpu.matmul %7, %8, %cst_9 {dimension_numbers = #tpu.dot_dimension_numbers<[1], [0], [0], [1], [0, 0, 1, 1], [], []>} : vector<8x256xbf16>, vector<256x128xbf16>, vector<8x128xf32> -> vector<8x128xf32>
    %11 = vector.broadcast %9 : vector<1x128xf32> to vector<8x128xf32>
    %12 = arith.addf %10, %11 : vector<8x128xf32>
    %13 = arith.truncf %12 : vector<8x128xf32> to vector<8x128xbf16>
    %c0_10 = arith.constant 0 : index
    %c0_11 = arith.constant 0 : index
    %14 = vector.load %arg6[%c0_10, %c0_11] : memref<128x256xbf16, #tpu.memory_space<vmem>>, vector<128x256xbf16>
    %c0_12 = arith.constant 0 : index
    %c0_13 = arith.constant 0 : index
    %15 = vector.load %arg7[%c0_12, %c0_13] : memref<1x256xf32, #tpu.memory_space<vmem>>, vector<1x256xf32>
    %cst_14 = arith.constant dense<0.000000e+00> : vector<8x256xf32>
    %16 = tpu.matmul %13, %14, %cst_14 {dimension_numbers = #tpu.dot_dimension_numbers<[1], [0], [0], [1], [0, 0, 1, 1], [], []>} : vector<8x128xbf16>, vector<128x256xbf16>, vector<8x256xf32> -> vector<8x256xf32>
    %17 = vector.broadcast %15 : vector<1x256xf32> to vector<8x256xf32>
    %18 = arith.addf %16, %17 : vector<8x256xf32>
    %19 = math.tanh %18 : vector<8x256xf32>
    %20 = arith.truncf %19 : vector<8x256xf32> to vector<8x256xbf16>
    %c0_15 = arith.constant 0 : index
    %c0_16 = arith.constant 0 : index
    %21 = vector.load %arg8[%c0_15, %c0_16] : memref<256x1024xbf16, #tpu.memory_space<vmem>>, vector<256x1024xbf16>
    %c0_17 = arith.constant 0 : index
    %c0_18 = arith.constant 0 : index
    %22 = vector.load %arg9[%c0_17, %c0_18] : memref<1x1024xf32, #tpu.memory_space<vmem>>, vector<1x1024xf32>
    %cst_19 = arith.constant dense<0.000000e+00> : vector<8x1024xf32>
    %23 = tpu.matmul %20, %21, %cst_19 {dimension_numbers = #tpu.dot_dimension_numbers<[1], [0], [0], [1], [0, 0, 1, 1], [], []>} : vector<8x256xbf16>, vector<256x1024xbf16>, vector<8x1024xf32> -> vector<8x1024xf32>
    %24 = vector.broadcast %22 : vector<1x1024xf32> to vector<8x1024xf32>
    %25 = arith.addf %23, %24 : vector<8x1024xf32>
    %cst_20 = arith.constant 5.000000e-01 : f32
    %26 = vector.broadcast %cst_20 : f32 to vector<8x1024xf32>
    %27 = arith.mulf %26, %25 : vector<8x1024xf32>
    %28 = math.tanh %27 : vector<8x1024xf32>
    %cst_21 = arith.constant 1.000000e+00 : f32
    %29 = vector.broadcast %cst_21 : f32 to vector<8x1024xf32>
    %30 = arith.addf %28, %29 : vector<8x1024xf32>
    %cst_22 = arith.constant 5.000000e-01 : f32
    %31 = vector.broadcast %cst_22 : f32 to vector<8x1024xf32>
    %32 = arith.mulf %31, %30 : vector<8x1024xf32>
    %c0_23 = arith.constant 0 : index
    %c0_24 = arith.constant 0 : index
    %33 = vector.load %arg10[%c0_23, %c0_24] : memref<8x1024xf32, #tpu.memory_space<vmem>>, vector<8x1024xf32>
    tpu.vector_store %arg10[%c0_23, %c0_24], %32 {strides = array<i32>} : memref<8x1024xf32, #tpu.memory_space<vmem>>, vector<8x1024xf32>,
    return
  }
  func.func @transform_0(%arg0: i32) -> (i32, i32) {
    %c0_i32 = arith.constant 0 : i32
    %c0_i32_0 = arith.constant 0 : i32
    return %arg0, %c0_i32 : i32, i32
  }
  func.func @transform_1(%arg0: i32) -> (i32, i32) {
    %c0_i32 = arith.constant 0 : i32
    %c0_i32_0 = arith.constant 0 : i32
    %c0_i32_1 = arith.constant 0 : i32
    return %c0_i32, %c0_i32_0 : i32, i32
  }
  func.func @transform_2(%arg0: i32) -> (i32, i32) {
    %c0_i32 = arith.constant 0 : i32
    %c0_i32_0 = arith.constant 0 : i32
    %c0_i32_1 = arith.constant 0 : i32
    return %c0_i32, %c0_i32_0 : i32, i32
  }
  func.func @transform_3(%arg0: i32) -> (i32, i32) {
    %c0_i32 = arith.constant 0 : i32
    %c0_i32_0 = arith.constant 0 : i32
    %c0_i32_1 = arith.constant 0 : i32
    return %c0_i32, %c0_i32_0 : i32, i32
  }
  func.func @transform_4(%arg0: i32) -> (i32, i32) {
    %c0_i32 = arith.constant 0 : i32
    %c0_i32_0 = arith.constant 0 : i32
    %c0_i32_1 = arith.constant 0 : i32
    return %c0_i32, %c0_i32_0 : i32, i32
  }
  func.func @transform_5(%arg0: i32) -> (i32, i32) {
    %c0_i32 = arith.constant 0 : i32
    %c0_i32_0 = arith.constant 0 : i32
    %c0_i32_1 = arith.constant 0 : i32
    return %c0_i32, %c0_i32_0 : i32, i32
  }
  func.func @transform_6(%arg0: i32) -> (i32, i32) {
    %c0_i32 = arith.constant 0 : i32
    %c0_i32_0 = arith.constant 0 : i32
    %c0_i32_1 = arith.constant 0 : i32
    return %c0_i32, %c0_i32_0 : i32, i32
  }
  func.func @transform_7(%arg0: i32) -> (i32, i32) {
    %c0_i32 = arith.constant 0 : i32
    %c0_i32_0 = arith.constant 0 : i32
    %c0_i32_1 = arith.constant 0 : i32
    return %c0_i32, %c0_i32_0 : i32, i32
  }
  func.func @transform_8(%arg0: i32) -> (i32, i32) {
    %c0_i32 = arith.constant 0 : i32
    %c0_i32_0 = arith.constant 0 : i32
    %c0_i32_1 = arith.constant 0 : i32
    return %c0_i32, %c0_i32_0 : i32, i32
  }
  func.func @transform_9(%arg0: i32) -> (i32, i32) {
    %c0_i32 = arith.constant 0 : i32
    %c0_i32_0 = arith.constant 0 : i32
    return %arg0, %c0_i32 : i32, i32
  }
}

module attributes {stable_mosaic.version = 11 : i64} {
  func.func @_fused_mlp_kernel(%arg0: i32, %arg1: memref<8x1024xbf16, #tpu.memory_space<vmem>>, %arg2: memref<1024x256xbf16, #tpu.memory_space<vmem>>, %arg3: memref<1x256xf32, #tpu.memory_space<vmem>>, %arg4: memref<256x128xbf16, #tpu.memory_space<vmem>>, %arg5: memref<1x128xf32, #tpu.memory_space<vmem>>, %arg6: memref<128x256xbf16, #tpu.memory_space<vmem>>, %arg7: memref<1x256xf32, #tpu.memory_space<vmem>>, %arg8: memref<256x1024xbf16, #tpu.memory_space<vmem>>, %arg9: memref<1x1024xf32, #tpu.memory_space<vmem>>, %arg10: memref<8x1024xf32, #tpu.memory_space<vmem>>) attributes {dimension_semantics = [#tpu.dimension_semantics<parallel>], iteration_bounds = array<i64: 1>, scalar_prefetch = 0 : i64, scratch_operands = 0 : i64, tpu.core_type = #tpu.core_type<tc>, window_params = [{transform_indices = @transform_0, window_bounds = array<i64: 8, 1024>}, {pipeline_mode = #tpu.pipeline_mode<synchronous>, transform_indices = @transform_1, window_bounds = array<i64: 1024, 256>}, {pipeline_mode = #tpu.pipeline_mode<synchronous>, transform_indices = @transform_2, window_bounds = array<i64: 1, 256>}, {pipeline_mode = #tpu.pipeline_mode<synchronous>, transform_indices = @transform_3, window_bounds = array<i64: 256, 128>}, {pipeline_mode = #tpu.pipeline_mode<synchronous>, transform_indices = @transform_4, window_bounds = array<i64: 1, 128>}, {pipeline_mode = #tpu.pipeline_mode<synchronous>, transform_indices = @transform_5, window_bounds = array<i64: 128, 256>}, {pipeline_mode = #tpu.pipeline_mode<synchronous>, transform_indices = @transform_6, window_bounds = array<i64: 1, 256>}, {pipeline_mode = #tpu.pipeline_mode<synchronous>, transform_indices = @transform_7, window_bounds = array<i64: 256, 1024>}, {pipeline_mode = #tpu.pipeline_mode<synchronous>, transform_indices = @transform_8, window_bounds = array<i64: 1, 1024>}, {transform_indices = @transform_9, window_bounds = array<i64: 8, 1024>}]} {
    %c0 = arith.constant 0 : index
    %c0_0 = arith.constant 0 : index
    %0 = vector.load %arg1[%c0, %c0_0] : memref<8x1024xbf16, #tpu.memory_space<vmem>>, vector<8x1024xbf16>
    %c0_1 = arith.constant 0 : index
    %c0_2 = arith.constant 0 : index
    %1 = vector.load %arg2[%c0_1, %c0_2] : memref<1024x256xbf16, #tpu.memory_space<vmem>>, vector<1024x256xbf16>
    %c0_3 = arith.constant 0 : index
    %c0_4 = arith.constant 0 : index
    %2 = vector.load %arg3[%c0_3, %c0_4] : memref<1x256xf32, #tpu.memory_space<vmem>>, vector<1x256xf32>
    %cst = arith.constant dense<0.000000e+00> : vector<8x256xf32>
    %3 = tpu.matmul %0, %1, %cst {dimension_numbers = #tpu.dot_dimension_numbers<[1], [0], [0], [1], [0, 0, 1, 1], [], []>} : vector<8x1024xbf16>, vector<1024x256xbf16>, vector<8x256xf32> -> vector<8x256xf32>
    %4 = vector.broadcast %2 : vector<1x256xf32> to vector<8x256xf32>
    %5 = arith.addf %3, %4 : vector<8x256xf32>
    %6 = math.tanh %5 : vector<8x256xf32>
    %7 = arith.truncf %6 : vector<8x256xf32> to vector<8x256xbf16>
    %c0_5 = arith.constant 0 : index
    %c0_6 = arith.constant 0 : index
    %8 = vector.load %arg4[%c0_5, %c0_6] : memref<256x128xbf16, #tpu.memory_space<vmem>>, vector<256x128xbf16>
    %c0_7 = arith.constant 0 : index
    %c0_8 = arith.constant 0 : index
    %9 = vector.load %arg5[%c0_7, %c0_8] : memref<1x128xf32, #tpu.memory_space<vmem>>, vector<1x128xf32>
    %cst_9 = arith.constant dense<0.000000e+00> : vector<8x128xf32>
    %10 = tpu.matmul %7, %8, %cst_9 {dimension_numbers = #tpu.dot_dimension_numbers<[1], [0], [0], [1], [0, 0, 1, 1], [], []>} : vector<8x256xbf16>, vector<256x128xbf16>, vector<8x128xf32> -> vector<8x128xf32>
    %11 = vector.broadcast %9 : vector<1x128xf32> to vector<8x128xf32>
    %12 = arith.addf %10, %11 : vector<8x128xf32>
    %13 = arith.truncf %12 : vector<8x128xf32> to vector<8x128xbf16>
    %c0_10 = arith.constant 0 : index
    %c0_11 = arith.constant 0 : index
    %14 = vector.load %arg6[%c0_10, %c0_11] : memref<128x256xbf16, #tpu.memory_space<vmem>>, vector<128x256xbf16>
    %c0_12 = arith.constant 0 : index
    %c0_13 = arith.constant 0 : index
    %15 = vector.load %arg7[%c0_12, %c0_13] : memref<1x256xf32, #tpu.memory_space<vmem>>, vector<1x256xf32>
    %cst_14 = arith.constant dense<0.000000e+00> : vector<8x256xf32>
    %16 = tpu.matmul %13, %14, %cst_14 {dimension_numbers = #tpu.dot_dimension_numbers<[1], [0], [0], [1], [0, 0, 1, 1], [], []>} : vector<8x128xbf16>, vector<128x256xbf16>, vector<8x256xf32> -> vector<8x256xf32>
    %17 = vector.broadcast %15 : vector<1x256xf32> to vector<8x256xf32>
    %18 = arith.addf %16, %17 : vector<8x256xf32>
    %19 = math.tanh %18 : vector<8x256xf32>
    %20 = arith.truncf %19 : vector<8x256xf32> to vector<8x256xbf16>
    %c0_15 = arith.constant 0 : index
    %c0_16 = arith.constant 0 : index
    %21 = vector.load %arg8[%c0_15, %c0_16] : memref<256x1024xbf16, #tpu.memory_space<vmem>>, vector<256x1024xbf16>
    %c0_17 = arith.constant 0 : index
    %c0_18 = arith.constant 0 : index
    %22 = vector.load %arg9[%c0_17, %c0_18] : memref<1x1024xf32, #tpu.memory_space<vmem>>, vector<1x1024xf32>
    %cst_19 = arith.constant dense<0.000000e+00> : vector<8x1024xf32>
    %23 = tpu.matmul %20, %21, %cst_19 {dimension_numbers = #tpu.dot_dimension_numbers<[1], [0], [0], [1], [0, 0, 1, 1], [], []>} : vector<8x256xbf16>, vector<256x1024xbf16>, vector<8x1024xf32> -> vector<8x1024xf32>
    %24 = vector.broadcast %22 : vector<1x1024xf32> to vector<8x1024xf32>
    %25 = arith.addf %23, %24 : vector<8x1024xf32>
    %cst_20 = arith.constant 5.000000e-01 : f32
    %26 = vector.broadcast %cst_20 : f32 to vector<8x1024xf32>
    %27 = arith.mulf %26, %25 : vector<8x1024xf32>
    %28 = math.tanh %27 : vector<8x1024xf32>
    %cst_21 = arith.constant 1.000000e+00 : f32
    %29 = vector.broadcast %cst_21 : f32 to vector<8x1024xf32>
    %30 = arith.addf %28, %29 : vector<8x1024xf32>
    %cst_22 = arith.constant 5.000000e-01 : f32
    %31 = vector.broadcast %cst_22 : f32 to vector<8x1024xf32>
    %32 = arith.mulf %31, %30 : vector<8x1024xf32>
    %c0_23 = arith.constant 0 : index
    %c0_24 = arith.constant 0 : index
    %33 = vector.load %arg10[%c0_23, %c0_24] : memref<8x1024xf32, #tpu.memory_space<vmem>>, vector<8x1024xf32>
    tpu.vector_store %arg10[%c0_23, %c0_24], %32 {strides = array<i32>} : memref<8x1024xf32, #tpu.memory_space<vmem>>, vector<8x1024xf32>,
    return
  }
  func.func @transform_0(%arg0: i32) -> (i32, i32) {
    %c0_i32 = arith.constant 0 : i32
    %c0_i32_0 = arith.constant 0 : i32
    return %arg0, %c0_i32 : i32, i32
  }
  func.func @transform_1(%arg0: i32) -> (i32, i32) {
    %c0_i32 = arith.constant 0 : i32
    %c0_i32_0 = arith.constant 0 : i32
    %c0_i32_1 = arith.constant 0 : i32
    return %c0_i32, %c0_i32_0 : i32, i32
  }
  func.func @transform_2(%arg0: i32) -> (i32, i32) {
    %c0_i32 = arith.constant 0 : i32
    %c0_i32_0 = arith.constant 0 : i32
    %c0_i32_1 = arith.constant 0 : i32
    return %c0_i32, %c0_i32_0 : i32, i32
  }
  func.func @transform_3(%arg0: i32) -> (i32, i32) {
    %c0_i32 = arith.constant 0 : i32
    %c0_i32_0 = arith.constant 0 : i32
    %c0_i32_1 = arith.constant 0 : i32
    return %c0_i32, %c0_i32_0 : i32, i32
  }
  func.func @transform_4(%arg0: i32) -> (i32, i32) {
    %c0_i32 = arith.constant 0 : i32
    %c0_i32_0 = arith.constant 0 : i32
    %c0_i32_1 = arith.constant 0 : i32
    return %c0_i32, %c0_i32_0 : i32, i32
  }
  func.func @transform_5(%arg0: i32) -> (i32, i32) {
    %c0_i32 = arith.constant 0 : i32
    %c0_i32_0 = arith.constant 0 : i32
    %c0_i32_1 = arith.constant 0 : i32
    return %c0_i32, %c0_i32_0 : i32, i32
  }
  func.func @transform_6(%arg0: i32) -> (i32, i32) {
    %c0_i32 = arith.constant 0 : i32
    %c0_i32_0 = arith.constant 0 : i32
    %c0_i32_1 = arith.constant 0 : i32
    return %c0_i32, %c0_i32_0 : i32, i32
  }
  func.func @transform_7(%arg0: i32) -> (i32, i32) {
    %c0_i32 = arith.constant 0 : i32
    %c0_i32_0 = arith.constant 0 : i32
    %c0_i32_1 = arith.constant 0 : i32
    return %c0_i32, %c0_i32_0 : i32, i32
  }
  func.func @transform_8(%arg0: i32) -> (i32, i32) {
    %c0_i32 = arith.constant 0 : i32
    %c0_i32_0 = arith.constant 0 : i32
    %c0_i32_1 = arith.constant 0 : i32
    return %c0_i32, %c0_i32_0 : i32, i32
  }
  func.func @transform_9(%arg0: i32) -> (i32, i32) {
    %c0_i32 = arith.constant 0 : i32
    %c0_i32_0 = arith.constant 0 : i32
    return %arg0, %c0_i32 : i32, i32
  }
}

</mosaic_0001>

<llo_original>
// kernel: tpu_custom_call.1
$region0: #{tpu_custom_call.1}
  #allocation0 [shape = 'u32[]', space=smem, size = 0x4, offset = 0x4, fixed_abs, tag = 'smem constant byte address 0x4 - core index']
  #allocation1 [shape = 'u32[144,128]{1,0:T(1,128)}', space=vmem, size = 0x12000, scoped, tag = 'internal scratch']
  %s0 = inlined_call_operand.hbm [shape: bf16[8,1024], index: 0, kind: input, shape index: {}]
  %s1 = inlined_call_operand.hbm [shape: bf16[1024,256], index: 1, kind: input, shape index: {}]
  %s2 = inlined_call_operand.vmem [shape: f32[1,256], index: 2, kind: input, shape index: {}]
  %s3 = inlined_call_operand.hbm [shape: bf16[256,128], index: 3, kind: input, shape index: {}]
  %s4 = inlined_call_operand.vmem [shape: f32[1,128], index: 4, kind: input, shape index: {}]
  %s5 = inlined_call_operand.hbm [shape: bf16[128,256], index: 5, kind: input, shape index: {}]
  %s6 = inlined_call_operand.vmem [shape: f32[1,256], index: 6, kind: input, shape index: {}]
  %s7 = inlined_call_operand.hbm [shape: bf16[256,1024], index: 7, kind: input, shape index: {}]
  %s8 = inlined_call_operand.vmem [shape: f32[1,1024], index: 8, kind: input, shape index: {}]
  %s9 = inlined_call_operand.hbm [shape: f32[8,1024], index: 9, kind: output, shape index: {}]
  %s10 = sld [smem:[#allocation0]]
  $region66: #{tpu_custom_call.1} parent=0
    _
  %s12 = ssub.s32 1, %s10
  %s13 = scalar_select 0, %s12, %s10
  $region1: #{tpu_custom_call.1} parent=0
    #allocation2 [shape = 'u8[16384]{0}', space=vmem, size = 0x4000, scoped, tag = 'input window, operand 0, single buffered']
    #allocation3 [shape = 's32[1]{0}', space=sflag, size = 0x4, scoped, tag = 'scoped memory for tpu_custom_call.1']
    #allocation4 [shape = 's32[1]{0}', space=sflag, size = 0x4, scoped, tag = 'scoped memory for tpu_custom_call.1']
    #allocation5 [shape = 'u8[524288]{0}', space=vmem, size = 0x80000, scoped, tag = 'input window, operand 1, single buffered']
    #allocation6 [shape = 's32[1]{0}', space=sflag, size = 0x4, scoped, tag = 'scoped memory for tpu_custom_call.1']
    #allocation7 [shape = 'u8[65536]{0}', space=vmem, size = 0x10000, scoped, tag = 'input window, operand 3, single buffered']
    #allocation8 [shape = 'u8[65536]{0}', space=vmem, size = 0x10000, scoped, tag = 'input window, operand 5, single buffered']
    #allocation9 [shape = 's32[1]{0}', space=sflag, size = 0x4, scoped, tag = 'scoped memory for tpu_custom_call.1']
    #allocation10 [shape = 'u8[524288]{0}', space=vmem, size = 0x80000, scoped, tag = 'input window, operand 7, single buffered']
    #allocation11 [shape = 'u8[32768]{0}', space=vmem, size = 0x8000, scoped, tag = 'output window, operand 0, single buffered']
    %14 = vsyncpa [#allocation3], 0
    %15 = vsyncpa [#allocation6], 0
    %16 = vsyncpa [#allocation9], 0
    %17 = vsyncpa [#allocation4], 0
    // Predicated region
    $region2: #{tpu_custom_call.1} parent=1 // pred_check
      _
    $region3: #{tpu_custom_call.1} parent=1 // pred_check_branch
      %19 = sbr.rel (0) target = $region5
    $region4: #{tpu_custom_call.1} parent=1 // pred_region
      %s21 = ssub.s32 512, 512
      %22 = vsyncadd [#allocation3], %s21
      %s24 = sshll.u32 [#allocation2], 4
      %s25 = int_to_ptr.vmem [resolvable:$true] %s24
      %27 = dma.hbm_to_vmem [thread:$0]  %s0, 512, %s25, [#allocation3]
    $region5: #{tpu_custom_call.1} parent=1 // pred_fallthru
      _
    // Predicated region
    $region6: #{tpu_custom_call.1} parent=1 // pred_check
      _
    $region7: #{tpu_custom_call.1} parent=1 // pred_check_branch
      %29 = sbr.rel (0) target = $region9
    $region8: #{tpu_custom_call.1} parent=1 // pred_region
      %s31 = ssub.s32 16384, 16384
      %32 = vsyncadd [#allocation6], %s31
      %s33 = sshll.u32 [#allocation5], 4
      %s34 = int_to_ptr.vmem [resolvable:$true] %s33
      %39 = dma.hbm_to_vmem [thread:$0]  %s1, 16384, %s34, [#allocation6], 128, 128, 8
    $region9: #{tpu_custom_call.1} parent=1 // pred_fallthru
      _
    // Predicated region
    $region10: #{tpu_custom_call.1} parent=1 // pred_check
      _
    $region11: #{tpu_custom_call.1} parent=1 // pred_check_branch
      %41 = sbr.rel (0) target = $region13
    $region12: #{tpu_custom_call.1} parent=1 // pred_region
      _
    $region13: #{tpu_custom_call.1} parent=1 // pred_fallthru
      _
    // Predicated region
    $region14: #{tpu_custom_call.1} parent=1 // pred_check
      _
    $region15: #{tpu_custom_call.1} parent=1 // pred_check_branch
      %43 = sbr.rel (0) target = $region17
    $region16: #{tpu_custom_call.1} parent=1 // pred_region
      %s45 = ssub.s32 2048, 2048
      %46 = vsyncadd [#allocation6], %s45
      %s47 = sshll.u32 [#allocation7], 4
      %s48 = int_to_ptr.vmem [resolvable:$true] %s47
      %53 = dma.hbm_to_vmem [thread:$0]  %s3, 2048, %s48, [#allocation6], 64, 64, 4
    $region17: #{tpu_custom_call.1} parent=1 // pred_fallthru
      _
    // Predicated region
    $region18: #{tpu_custom_call.1} parent=1 // pred_check
      _
    $region19: #{tpu_custom_call.1} parent=1 // pred_check_branch
      %55 = sbr.rel (0) target = $region21
    $region20: #{tpu_custom_call.1} parent=1 // pred_region
      _
    $region21: #{tpu_custom_call.1} parent=1 // pred_fallthru
      _
    // Predicated region
    $region22: #{tpu_custom_call.1} parent=1 // pred_check
      _
    $region23: #{tpu_custom_call.1} parent=1 // pred_check_branch
      %57 = sbr.rel (0) target = $region25
    $region24: #{tpu_custom_call.1} parent=1 // pred_region
      %s59 = ssub.s32 2048, 2048
      %60 = vsyncadd [#allocation9], %s59
      %s61 = sshll.u32 [#allocation8], 4
      %s62 = int_to_ptr.vmem [resolvable:$true] %s61
      %67 = dma.hbm_to_vmem [thread:$0]  %s5, 2048, %s62, [#allocation9], 128, 128, 8
    $region25: #{tpu_custom_call.1} parent=1 // pred_fallthru
      _
    // Predicated region
    $region26: #{tpu_custom_call.1} parent=1 // pred_check
      _
    $region27: #{tpu_custom_call.1} parent=1 // pred_check_branch
      %69 = sbr.rel (0) target = $region29
    $region28: #{tpu_custom_call.1} parent=1 // pred_region
      _
    $region29: #{tpu_custom_call.1} parent=1 // pred_fallthru
      _
    // Predicated region
    $region30: #{tpu_custom_call.1} parent=1 // pred_check
      _
    $region31: #{tpu_custom_call.1} parent=1 // pred_check_branch
      %71 = sbr.rel (0) target = $region33
    $region32: #{tpu_custom_call.1} parent=1 // pred_region
      %s73 = ssub.s32 16384, 16384
      %74 = vsyncadd [#allocation9], %s73
      %s75 = sshll.u32 [#allocation10], 4
      %s76 = int_to_ptr.vmem [resolvable:$true] %s75
      %81 = dma.hbm_to_vmem [thread:$0]  %s7, 16384, %s76, [#allocation9], 512, 512, 32
    $region33: #{tpu_custom_call.1} parent=1 // pred_fallthru
      _
    // Predicated region
    $region34: #{tpu_custom_call.1} parent=1 // pred_check
      _
    $region35: #{tpu_custom_call.1} parent=1 // pred_check_branch
      %83 = sbr.rel (0) target = $region37
    $region36: #{tpu_custom_call.1} parent=1 // pred_region
      _
    $region37: #{tpu_custom_call.1} parent=1 // pred_fallthru
      _
    // Predicated region
    $region38: #{tpu_custom_call.1} parent=1 // pred_check
      _
    $region39: #{tpu_custom_call.1} parent=1 // pred_check_branch
      %85 = sbr.rel (0) target = $region41
    $region40: #{tpu_custom_call.1} parent=1 // pred_region
      %86 = dma.done [#allocation3], 512
    $region41: #{tpu_custom_call.1} parent=1 // pred_fallthru
      _
    // Predicated region
    $region42: #{tpu_custom_call.1} parent=1 // pred_check
      _
    $region43: #{tpu_custom_call.1} parent=1 // pred_check_branch
      %88 = sbr.rel (0) target = $region45
    $region44: #{tpu_custom_call.1} parent=1 // pred_region
      %89 = dma.done [#allocation6], 16384
    $region45: #{tpu_custom_call.1} parent=1 // pred_fallthru
      _
    // Predicated region
    $region46: #{tpu_custom_call.1} parent=1 // pred_check
      _
    $region47: #{tpu_custom_call.1} parent=1 // pred_check_branch
      %91 = sbr.rel (0) target = $region49
    $region48: #{tpu_custom_call.1} parent=1 // pred_region
      %92 = dma.done [#allocation6], 2048
    $region49: #{tpu_custom_call.1} parent=1 // pred_fallthru
      _
    // Predicated region
    $region50: #{tpu_custom_call.1} parent=1 // pred_check
      _
    $region51: #{tpu_custom_call.1} parent=1 // pred_check_branch
      %94 = sbr.rel (0) target = $region53
    $region52: #{tpu_custom_call.1} parent=1 // pred_region
      %95 = dma.done [#allocation9], 2048
    $region53: #{tpu_custom_call.1} parent=1 // pred_fallthru
      _
    // Predicated region
    $region54: #{tpu_custom_call.1} parent=1 // pred_check
      _
    $region55: #{tpu_custom_call.1} parent=1 // pred_check_branch
      %97 = sbr.rel (0) target = $region57
    $region56: #{tpu_custom_call.1} parent=1 // pred_region
      %98 = dma.done [#allocation9], 16384
    $region57: #{tpu_custom_call.1} parent=1 // pred_fallthru
      _
    %v100 = vld [vmem:[#allocation2] sm:$0xff]
    %v101 = vld [vmem:[#allocation2 + $0x8] sm:$0xff]
    %v102 = vld [vmem:[#allocation2 + $0x10] sm:$0xff]
    %v103 = vld [vmem:[#allocation2 + $0x18] sm:$0xff]
    %v104 = vld [vmem:[#allocation5] sm:$0xff]
    %v105 = vld [vmem:[#allocation5 + $0x8] sm:$0xff]
    %v106 = vld [vmem:[#allocation5 + $0x10] sm:$0xff]
    %v107 = vld [vmem:[#allocation5 + $0x18] sm:$0xff]
    %v108 = vld [vmem:[#allocation5 + $0x20] sm:$0xff]
    %v109 = vld [vmem:[#allocation5 + $0x28] sm:$0xff]
    %v110 = vld [vmem:[#allocation5 + $0x30] sm:$0xff]
    %v111 = vld [vmem:[#allocation5 + $0x38] sm:$0xff]
    %v112 = vld [vmem:[#allocation5 + $0x40] sm:$0xff]
    %v113 = vld [vmem:[#allocation5 + $0x48] sm:$0xff]
    %v114 = vld [vmem:[#allocation5 + $0x50] sm:$0xff]
    %v115 = vld [vmem:[#allocation5 + $0x58] sm:$0xff]
    %v116 = vld [vmem:[#allocation5 + $0x60] sm:$0xff]
    %v117 = vld [vmem:[#allocation5 + $0x68] sm:$0xff]
    %v118 = vld [vmem:[#allocation5 + $0x70] sm:$0xff]
    %v119 = vld [vmem:[#allocation5 + $0x78] sm:$0xff]
    %v120 = vld [vmem:[#allocation5 + $0x80] sm:$0xff]
    %v121 = vld [vmem:[#allocation5 + $0x88] sm:$0xff]
    %v122 = vld [vmem:[#allocation5 + $0x90] sm:$0xff]
    %v123 = vld [vmem:[#allocation5 + $0x98] sm:$0xff]
    %v124 = vld [vmem:[#allocation5 + $0xa0] sm:$0xff]
    %v125 = vld [vmem:[#allocation5 + $0xa8] sm:$0xff]
    %v126 = vld [vmem:[#allocation5 + $0xb0] sm:$0xff]
    %v127 = vld [vmem:[#allocation5 + $0xb8] sm:$0xff]
    %v128 = vld [vmem:[#allocation5 + $0xc0] sm:$0xff]
    %v129 = vld [vmem:[#allocation5 + $0xc8] sm:$0xff]
    %v130 = vld [vmem:[#allocation5 + $0xd0] sm:$0xff]
    %v131 = vld [vmem:[#allocation5 + $0xd8] sm:$0xff]
    %v132 = vld [vmem:[#allocation5 + $0xe0] sm:$0xff]
    %v133 = vld [vmem:[#allocation5 + $0xe8] sm:$0xff]
    %v134 = vld [vmem:[#allocation5 + $0xf0] sm:$0xff]
    %v135 = vld [vmem:[#allocation5 + $0xf8] sm:$0xff]
    %v136 = vld [vmem:[#allocation5 + $0x100] sm:$0xff]
    %v137 = vld [vmem:[#allocation5 + $0x108] sm:$0xff]
    %v138 = vld [vmem:[#allocation5 + $0x110] sm:$0xff]
    %v139 = vld [vmem:[#allocation5 + $0x118] sm:$0xff]
    %v140 = vld [vmem:[#allocation5 + $0x120] sm:$0xff]
    %v141 = vld [vmem:[#allocation5 + $0x128] sm:$0xff]
    %v142 = vld [vmem:[#allocation5 + $0x130] sm:$0xff]
    %v143 = vld [vmem:[#allocation5 + $0x138] sm:$0xff]
    %v144 = vld [vmem:[#allocation5 + $0x140] sm:$0xff]
    %v145 = vld [vmem:[#allocation5 + $0x148] sm:$0xff]
    %v146 = vld [vmem:[#allocation5 + $0x150] sm:$0xff]
    %v147 = vld [vmem:[#allocation5 + $0x158] sm:$0xff]
    %v148 = vld [vmem:[#allocation5 + $0x160] sm:$0xff]
    %v149 = vld [vmem:[#allocation5 + $0x168] sm:$0xff]
    %v150 = vld [vmem:[#allocation5 + $0x170] sm:$0xff]
    %v151 = vld [vmem:[#allocation5 + $0x178] sm:$0xff]
    %v152 = vld [vmem:[#allocation5 + $0x180] sm:$0xff]
    %v153 = vld [vmem:[#allocation5 + $0x188] sm:$0xff]
    %v154 = vld [vmem:[#allocation5 + $0x190] sm:$0xff]
    %v155 = vld [vmem:[#allocation5 + $0x198] sm:$0xff]
    %v156 = vld [vmem:[#allocation5 + $0x1a0] sm:$0xff]
    %v157 = vld [vmem:[#allocation5 + $0x1a8] sm:$0xff]
    %v158 = vld [vmem:[#allocation5 + $0x1b0] sm:$0xff]
    %v159 = vld [vmem:[#allocation5 + $0x1b8] sm:$0xff]
    %v160 = vld [vmem:[#allocation5 + $0x1c0] sm:$0xff]
    %v161 = vld [vmem:[#allocation5 + $0x1c8] sm:$0xff]
    %v162 = vld [vmem:[#allocation5 + $0x1d0] sm:$0xff]
    %v163 = vld [vmem:[#allocation5 + $0x1d8] sm:$0xff]
    %v164 = vld [vmem:[#allocation5 + $0x1e0] sm:$0xff]
    %v165 = vld [vmem:[#allocation5 + $0x1e8] sm:$0xff]
    %v166 = vld [vmem:[#allocation5 + $0x1f0] sm:$0xff]
    %v167 = vld [vmem:[#allocation5 + $0x1f8] sm:$0xff]
    %v168 = vld [vmem:[#allocation5 + $0x200] sm:$0xff]
    %v169 = vld [vmem:[#allocation5 + $0x208] sm:$0xff]
    %v170 = vld [vmem:[#allocation5 + $0x210] sm:$0xff]
    %v171 = vld [vmem:[#allocation5 + $0x218] sm:$0xff]
    %v172 = vld [vmem:[#allocation5 + $0x220] sm:$0xff]
    %v173 = vld [vmem:[#allocation5 + $0x228] sm:$0xff]
    %v174 = vld [vmem:[#allocation5 + $0x230] sm:$0xff]
    %v175 = vld [vmem:[#allocation5 + $0x238] sm:$0xff]
    %v176 = vld [vmem:[#allocation5 + $0x240] sm:$0xff]
    %v177 = vld [vmem:[#allocation5 + $0x248] sm:$0xff]
    %v178 = vld [vmem:[#allocation5 + $0x250] sm:$0xff]
    %v179 = vld [vmem:[#allocation5 + $0x258] sm:$0xff]
    %v180 = vld [vmem:[#allocation5 + $0x260] sm:$0xff]
    %v181 = vld [vmem:[#allocation5 + $0x268] sm:$0xff]
    %v182 = vld [vmem:[#allocation5 + $0x270] sm:$0xff]
    %v183 = vld [vmem:[#allocation5 + $0x278] sm:$0xff]
    %v184 = vld [vmem:[#allocation5 + $0x280] sm:$0xff]
    %v185 = vld [vmem:[#allocation5 + $0x288] sm:$0xff]
    %v186 = vld [vmem:[#allocation5 + $0x290] sm:$0xff]
    %v187 = vld [vmem:[#allocation5 + $0x298] sm:$0xff]
    %v188 = vld [vmem:[#allocation5 + $0x2a0] sm:$0xff]
    %v189 = vld [vmem:[#allocation5 + $0x2a8] sm:$0xff]
    %v190 = vld [vmem:[#allocation5 + $0x2b0] sm:$0xff]
    %v191 = vld [vmem:[#allocation5 + $0x2b8] sm:$0xff]
    %v192 = vld [vmem:[#allocation5 + $0x2c0] sm:$0xff]
    %v193 = vld [vmem:[#allocation5 + $0x2c8] sm:$0xff]
    %v194 = vld [vmem:[#allocation5 + $0x2d0] sm:$0xff]
    %v195 = vld [vmem:[#allocation5 + $0x2d8] sm:$0xff]
    %v196 = vld [vmem:[#allocation5 + $0x2e0] sm:$0xff]
    %v197 = vld [vmem:[#allocation5 + $0x2e8] sm:$0xff]
    %v198 = vld [vmem:[#allocation5 + $0x2f0] sm:$0xff]
    %v199 = vld [vmem:[#allocation5 + $0x2f8] sm:$0xff]
    %v200 = vld [vmem:[#allocation5 + $0x300] sm:$0xff]
    %v201 = vld [vmem:[#allocation5 + $0x308] sm:$0xff]
    %v202 = vld [vmem:[#allocation5 + $0x310] sm:$0xff]
    %v203 = vld [vmem:[#allocation5 + $0x318] sm:$0xff]
    %v204 = vld [vmem:[#allocation5 + $0x320] sm:$0xff]
    %v205 = vld [vmem:[#allocation5 + $0x328] sm:$0xff]
    %v206 = vld [vmem:[#allocation5 + $0x330] sm:$0xff]
    %v207 = vld [vmem:[#allocation5 + $0x338] sm:$0xff]
    %v208 = vld [vmem:[#allocation5 + $0x340] sm:$0xff]
    %v209 = vld [vmem:[#allocation5 + $0x348] sm:$0xff]
    %v210 = vld [vmem:[#allocation5 + $0x350] sm:$0xff]
    %v211 = vld [vmem:[#allocation5 + $0x358] sm:$0xff]
    %v212 = vld [vmem:[#allocation5 + $0x360] sm:$0xff]
    %v213 = vld [vmem:[#allocation5 + $0x368] sm:$0xff]
    %v214 = vld [vmem:[#allocation5 + $0x370] sm:$0xff]
    %v215 = vld [vmem:[#allocation5 + $0x378] sm:$0xff]
    %v216 = vld [vmem:[#allocation5 + $0x380] sm:$0xff]
    %v217 = vld [vmem:[#allocation5 + $0x388] sm:$0xff]
    %v218 = vld [vmem:[#allocation5 + $0x390] sm:$0xff]
    %v219 = vld [vmem:[#allocation5 + $0x398] sm:$0xff]
    %v220 = vld [vmem:[#allocation5 + $0x3a0] sm:$0xff]
    %v221 = vld [vmem:[#allocation5 + $0x3a8] sm:$0xff]
    %v222 = vld [vmem:[#allocation5 + $0x3b0] sm:$0xff]
    %v223 = vld [vmem:[#allocation5 + $0x3b8] sm:$0xff]
    %v224 = vld [vmem:[#allocation5 + $0x3c0] sm:$0xff]
    %v225 = vld [vmem:[#allocation5 + $0x3c8] sm:$0xff]
    %v226 = vld [vmem:[#allocation5 + $0x3d0] sm:$0xff]
    %v227 = vld [vmem:[#allocation5 + $0x3d8] sm:$0xff]
    %v228 = vld [vmem:[#allocation5 + $0x3e0] sm:$0xff]
    %v229 = vld [vmem:[#allocation5 + $0x3e8] sm:$0xff]
    %v230 = vld [vmem:[#allocation5 + $0x3f0] sm:$0xff]
    %v231 = vld [vmem:[#allocation5 + $0x3f8] sm:$0xff]
    %v232 = vld [vmem:[%s2] sm:$0x3]
    %v234 = vlaneseq
    %v235 = vshrl.u32 %v234, 7
    %v236 = vsub.s32 0, %v235
    %v237 = vrot.slane %v232, %v236
    %v238 = vlaneseq
    %v239 = vshrl.u32 %v238, 7
    %v240 = vsub.s32 1, %v239
    %v241 = vrot.slane %v232, %v240
    %v248 = vunpack.c.l.b16 %v100
    %v249 = vunpack.c.h.b16 %v100
    %v250 = vunpack.c.l.b16 %v101
    %v251 = vunpack.c.h.b16 %v101
    %v252 = vunpack.c.l.b16 %v102
    %v253 = vunpack.c.h.b16 %v102
    %v254 = vunpack.c.l.b16 %v103
    %v255 = vunpack.c.h.b16 %v103
    %v256 = vpack.c.b16 %v248, %v248
    %v257 = vpack.c.b16 %v249, %v249
    %v258 = vpack.c.b16 %v250, %v250
    %v259 = vpack.c.b16 %v251, %v251
    %v260 = vpack.c.b16 %v252, %v252
    %v261 = vpack.c.b16 %v253, %v253
    %v262 = vpack.c.b16 %v254, %v254
    %v263 = vpack.c.b16 %v255, %v255
    %v400 = vunpack.c.l.b16 %v104
    %v401 = vunpack.c.h.b16 %v104
    %v402 = vunpack.c.l.b16 %v105
    %v403 = vunpack.c.h.b16 %v105
    %v404 = vunpack.c.l.b16 %v106
    %v405 = vunpack.c.h.b16 %v106
    %v406 = vunpack.c.l.b16 %v107
    %v407 = vunpack.c.h.b16 %v107
    %v408 = vunpack.c.l.b16 %v108
    %v409 = vunpack.c.h.b16 %v108
    %v410 = vunpack.c.l.b16 %v109
    %v411 = vunpack.c.h.b16 %v109
    %v412 = vunpack.c.l.b16 %v110
    %v413 = vunpack.c.h.b16 %v110
    %v414 = vunpack.c.l.b16 %v111
    %v415 = vunpack.c.h.b16 %v111
    %v416 = vunpack.c.l.b16 %v112
    %v417 = vunpack.c.h.b16 %v112
    %v418 = vunpack.c.l.b16 %v113
    %v419 = vunpack.c.h.b16 %v113
    %v420 = vunpack.c.l.b16 %v114
    %v421 = vunpack.c.h.b16 %v114
    %v422 = vunpack.c.l.b16 %v115
    %v423 = vunpack.c.h.b16 %v115
    %v424 = vunpack.c.l.b16 %v116
    %v425 = vunpack.c.h.b16 %v116
    %v426 = vunpack.c.l.b16 %v117
    %v427 = vunpack.c.h.b16 %v117
    %v428 = vunpack.c.l.b16 %v118
    %v429 = vunpack.c.h.b16 %v118
    %v430 = vunpack.c.l.b16 %v119
    %v431 = vunpack.c.h.b16 %v119
    %v432 = vunpack.c.l.b16 %v120
    %v433 = vunpack.c.h.b16 %v120
    %v434 = vunpack.c.l.b16 %v121
    %v435 = vunpack.c.h.b16 %v121
    %v436 = vunpack.c.l.b16 %v122
    %v437 = vunpack.c.h.b16 %v122
    %v438 = vunpack.c.l.b16 %v123
    %v439 = vunpack.c.h.b16 %v123
    %v440 = vunpack.c.l.b16 %v124
    %v441 = vunpack.c.h.b16 %v124
    %v442 = vunpack.c.l.b16 %v125
    %v443 = vunpack.c.h.b16 %v125
    %v444 = vunpack.c.l.b16 %v126
    %v445 = vunpack.c.h.b16 %v126
    %v446 = vunpack.c.l.b16 %v127
    %v447 = vunpack.c.h.b16 %v127
    %v448 = vunpack.c.l.b16 %v128
    %v449 = vunpack.c.h.b16 %v128
    %v450 = vunpack.c.l.b16 %v129
    %v451 = vunpack.c.h.b16 %v129
    %v452 = vunpack.c.l.b16 %v130
    %v453 = vunpack.c.h.b16 %v130
    %v454 = vunpack.c.l.b16 %v131
    %v455 = vunpack.c.h.b16 %v131
    %v456 = vunpack.c.l.b16 %v132
    %v457 = vunpack.c.h.b16 %v132
    %v458 = vunpack.c.l.b16 %v133
    %v459 = vunpack.c.h.b16 %v133
    %v460 = vunpack.c.l.b16 %v134
    %v461 = vunpack.c.h.b16 %v134
    %v462 = vunpack.c.l.b16 %v135
    %v463 = vunpack.c.h.b16 %v135
    %v464 = vunpack.c.l.b16 %v136
    %v465 = vunpack.c.h.b16 %v136
    %v466 = vunpack.c.l.b16 %v137
    %v467 = vunpack.c.h.b16 %v137
    %v468 = vunpack.c.l.b16 %v138
    %v469 = vunpack.c.h.b16 %v138
    %v470 = vunpack.c.l.b16 %v139
    %v471 = vunpack.c.h.b16 %v139
    %v472 = vunpack.c.l.b16 %v140
    %v473 = vunpack.c.h.b16 %v140
    %v474 = vunpack.c.l.b16 %v141
    %v475 = vunpack.c.h.b16 %v141
    %v476 = vunpack.c.l.b16 %v142
    %v477 = vunpack.c.h.b16 %v142
    %v478 = vunpack.c.l.b16 %v143
    %v479 = vunpack.c.h.b16 %v143
    %v480 = vunpack.c.l.b16 %v144
    %v481 = vunpack.c.h.b16 %v144
    %v482 = vunpack.c.l.b16 %v145
    %v483 = vunpack.c.h.b16 %v145
    %v484 = vunpack.c.l.b16 %v146
    %v485 = vunpack.c.h.b16 %v146
    %v486 = vunpack.c.l.b16 %v147
    %v487 = vunpack.c.h.b16 %v147
    %v488 = vunpack.c.l.b16 %v148
    %v489 = vunpack.c.h.b16 %v148
    %v490 = vunpack.c.l.b16 %v149
    %v491 = vunpack.c.h.b16 %v149
    %v492 = vunpack.c.l.b16 %v150
    %v493 = vunpack.c.h.b16 %v150
    %v494 = vunpack.c.l.b16 %v151
    %v495 = vunpack.c.h.b16 %v151
    %v496 = vunpack.c.l.b16 %v152
    %v497 = vunpack.c.h.b16 %v152
    %v498 = vunpack.c.l.b16 %v153
    %v499 = vunpack.c.h.b16 %v153
    %v500 = vunpack.c.l.b16 %v154
    %v501 = vunpack.c.h.b16 %v154
    %v502 = vunpack.c.l.b16 %v155
    %v503 = vunpack.c.h.b16 %v155
    %v504 = vunpack.c.l.b16 %v156
    %v505 = vunpack.c.h.b16 %v156
    %v506 = vunpack.c.l.b16 %v157
    %v507 = vunpack.c.h.b16 %v157
    %v508 = vunpack.c.l.b16 %v158
    %v509 = vunpack.c.h.b16 %v158
    %v510 = vunpack.c.l.b16 %v159
    %v511 = vunpack.c.h.b16 %v159
    %v512 = vunpack.c.l.b16 %v160
    %v513 = vunpack.c.h.b16 %v160
    %v514 = vunpack.c.l.b16 %v161
    %v515 = vunpack.c.h.b16 %v161
    %v516 = vunpack.c.l.b16 %v162
    %v517 = vunpack.c.h.b16 %v162
    %v518 = vunpack.c.l.b16 %v163
    %v519 = vunpack.c.h.b16 %v163
    %v520 = vunpack.c.l.b16 %v164
    %v521 = vunpack.c.h.b16 %v164
    %v522 = vunpack.c.l.b16 %v165
    %v523 = vunpack.c.h.b16 %v165
    %v524 = vunpack.c.l.b16 %v166
    %v525 = vunpack.c.h.b16 %v166
    %v526 = vunpack.c.l.b16 %v167
    %v527 = vunpack.c.h.b16 %v167
    %v528 = vunpack.c.l.b16 %v168
    %v529 = vunpack.c.h.b16 %v168
    %v530 = vunpack.c.l.b16 %v169
    %v531 = vunpack.c.h.b16 %v169
    %v532 = vunpack.c.l.b16 %v170
    %v533 = vunpack.c.h.b16 %v170
    %v534 = vunpack.c.l.b16 %v171
    %v535 = vunpack.c.h.b16 %v171
    %v536 = vunpack.c.l.b16 %v172
    %v537 = vunpack.c.h.b16 %v172
    %v538 = vunpack.c.l.b16 %v173
    %v539 = vunpack.c.h.b16 %v173
    %v540 = vunpack.c.l.b16 %v174
    %v541 = vunpack.c.h.b16 %v174
    %v542 = vunpack.c.l.b16 %v175
    %v543 = vunpack.c.h.b16 %v175
    %v544 = vunpack.c.l.b16 %v176
    %v545 = vunpack.c.h.b16 %v176
    %v546 = vunpack.c.l.b16 %v177
    %v547 = vunpack.c.h.b16 %v177
    %v548 = vunpack.c.l.b16 %v178
    %v549 = vunpack.c.h.b16 %v178
    %v550 = vunpack.c.l.b16 %v179
    %v551 = vunpack.c.h.b16 %v179
    %v552 = vunpack.c.l.b16 %v180
    %v553 = vunpack.c.h.b16 %v180
    %v554 = vunpack.c.l.b16 %v181
    %v555 = vunpack.c.h.b16 %v181
    %v556 = vunpack.c.l.b16 %v182
    %v557 = vunpack.c.h.b16 %v182
    %v558 = vunpack.c.l.b16 %v183
    %v559 = vunpack.c.h.b16 %v183
    %v560 = vunpack.c.l.b16 %v184
    %v561 = vunpack.c.h.b16 %v184
    %v562 = vunpack.c.l.b16 %v185
    %v563 = vunpack.c.h.b16 %v185
    %v564 = vunpack.c.l.b16 %v186
    %v565 = vunpack.c.h.b16 %v186
    %v566 = vunpack.c.l.b16 %v187
    %v567 = vunpack.c.h.b16 %v187
    %v568 = vunpack.c.l.b16 %v188
    %v569 = vunpack.c.h.b16 %v188
    %v570 = vunpack.c.l.b16 %v189
    %v571 = vunpack.c.h.b16 %v189
    %v572 = vunpack.c.l.b16 %v190
    %v573 = vunpack.c.h.b16 %v190
    %v574 = vunpack.c.l.b16 %v191
    %v575 = vunpack.c.h.b16 %v191
    %v576 = vunpack.c.l.b16 %v192
    %v577 = vunpack.c.h.b16 %v192
    %v578 = vunpack.c.l.b16 %v193
    %v579 = vunpack.c.h.b16 %v193
    %v580 = vunpack.c.l.b16 %v194
    %v581 = vunpack.c.h.b16 %v194
    %v582 = vunpack.c.l.b16 %v195
    %v583 = vunpack.c.h.b16 %v195
    %v584 = vunpack.c.l.b16 %v196
    %v585 = vunpack.c.h.b16 %v196
    %v586 = vunpack.c.l.b16 %v197
    %v587 = vunpack.c.h.b16 %v197
    %v588 = vunpack.c.l.b16 %v198
    %v589 = vunpack.c.h.b16 %v198
    %v590 = vunpack.c.l.b16 %v199
    %v591 = vunpack.c.h.b16 %v199
    %v592 = vunpack.c.l.b16 %v200
    %v593 = vunpack.c.h.b16 %v200
    %v594 = vunpack.c.l.b16 %v201
    %v595 = vunpack.c.h.b16 %v201
    %v596 = vunpack.c.l.b16 %v202
    %v597 = vunpack.c.h.b16 %v202
    %v598 = vunpack.c.l.b16 %v203
    %v599 = vunpack.c.h.b16 %v203
    %v600 = vunpack.c.l.b16 %v204
    %v601 = vunpack.c.h.b16 %v204
    %v602 = vunpack.c.l.b16 %v205
    %v603 = vunpack.c.h.b16 %v205
    %v604 = vunpack.c.l.b16 %v206
    %v605 = vunpack.c.h.b16 %v206
    %v606 = vunpack.c.l.b16 %v207
    %v607 = vunpack.c.h.b16 %v207
    %v608 = vunpack.c.l.b16 %v208
    %v609 = vunpack.c.h.b16 %v208
    %v610 = vunpack.c.l.b16 %v209
    %v611 = vunpack.c.h.b16 %v209
    %v612 = vunpack.c.l.b16 %v210
    %v613 = vunpack.c.h.b16 %v210
    %v614 = vunpack.c.l.b16 %v211
    %v615 = vunpack.c.h.b16 %v211
    %v616 = vunpack.c.l.b16 %v212
    %v617 = vunpack.c.h.b16 %v212
    %v618 = vunpack.c.l.b16 %v213
    %v619 = vunpack.c.h.b16 %v213
    %v620 = vunpack.c.l.b16 %v214
    %v621 = vunpack.c.h.b16 %v214
    %v622 = vunpack.c.l.b16 %v215
    %v623 = vunpack.c.h.b16 %v215
    %v624 = vunpack.c.l.b16 %v216
    %v625 = vunpack.c.h.b16 %v216
    %v626 = vunpack.c.l.b16 %v217
    %v627 = vunpack.c.h.b16 %v217
    %v628 = vunpack.c.l.b16 %v218
    %v629 = vunpack.c.h.b16 %v218
    %v630 = vunpack.c.l.b16 %v219
    %v631 = vunpack.c.h.b16 %v219
    %v632 = vunpack.c.l.b16 %v220
    %v633 = vunpack.c.h.b16 %v220
    %v634 = vunpack.c.l.b16 %v221
    %v635 = vunpack.c.h.b16 %v221
    %v636 = vunpack.c.l.b16 %v222
    %v637 = vunpack.c.h.b16 %v222
    %v638 = vunpack.c.l.b16 %v223
    %v639 = vunpack.c.h.b16 %v223
    %v640 = vunpack.c.l.b16 %v224
    %v641 = vunpack.c.h.b16 %v224
    %v642 = vunpack.c.l.b16 %v225
    %v643 = vunpack.c.h.b16 %v225
    %v644 = vunpack.c.l.b16 %v226
    %v645 = vunpack.c.h.b16 %v226
    %v646 = vunpack.c.l.b16 %v227
    %v647 = vunpack.c.h.b16 %v227
    %v648 = vunpack.c.l.b16 %v228
    %v649 = vunpack.c.h.b16 %v228
    %v650 = vunpack.c.l.b16 %v229
    %v651 = vunpack.c.h.b16 %v229
    %v652 = vunpack.c.l.b16 %v230
    %v653 = vunpack.c.h.b16 %v230
    %v654 = vunpack.c.l.b16 %v231
    %v655 = vunpack.c.h.b16 %v231
    %v656 = vpack.c.b16 %v402, %v400
    %v657 = vpack.c.b16 %v403, %v401
    %v658 = vpack.c.b16 %v406, %v404
    %v659 = vpack.c.b16 %v407, %v405
    %v660 = vpack.c.b16 %v410, %v408
    %v661 = vpack.c.b16 %v411, %v409
    %v662 = vpack.c.b16 %v414, %v412
    %v663 = vpack.c.b16 %v415, %v413
    %v664 = vpack.c.b16 %v418, %v416
    %v665 = vpack.c.b16 %v419, %v417
    %v666 = vpack.c.b16 %v422, %v420
    %v667 = vpack.c.b16 %v423, %v421
    %v668 = vpack.c.b16 %v426, %v424
    %v669 = vpack.c.b16 %v427, %v425
    %v670 = vpack.c.b16 %v430, %v428
    %v671 = vpack.c.b16 %v431, %v429
    %v672 = vpack.c.b16 %v434, %v432
    %v673 = vpack.c.b16 %v435, %v433
    %v674 = vpack.c.b16 %v438, %v436
    %v675 = vpack.c.b16 %v439, %v437
    %v676 = vpack.c.b16 %v442, %v440
    %v677 = vpack.c.b16 %v443, %v441
    %v678 = vpack.c.b16 %v446, %v444
    %v679 = vpack.c.b16 %v447, %v445
    %v680 = vpack.c.b16 %v450, %v448
    %v681 = vpack.c.b16 %v451, %v449
    %v682 = vpack.c.b16 %v454, %v452
    %v683 = vpack.c.b16 %v455, %v453
    %v684 = vpack.c.b16 %v458, %v456
    %v685 = vpack.c.b16 %v459, %v457
    %v686 = vpack.c.b16 %v462, %v460
    %v687 = vpack.c.b16 %v463, %v461
    %v688 = vpack.c.b16 %v466, %v464
    %v689 = vpack.c.b16 %v467, %v465
    %v690 = vpack.c.b16 %v470, %v468
    %v691 = vpack.c.b16 %v471, %v469
    %v692 = vpack.c.b16 %v474, %v472
    %v693 = vpack.c.b16 %v475, %v473
    %v694 = vpack.c.b16 %v478, %v476
    %v695 = vpack.c.b16 %v479, %v477
    %v696 = vpack.c.b16 %v482, %v480
    %v697 = vpack.c.b16 %v483, %v481
    %v698 = vpack.c.b16 %v486, %v484
    %v699 = vpack.c.b16 %v487, %v485
    %v700 = vpack.c.b16 %v490, %v488
    %v701 = vpack.c.b16 %v491, %v489
    %v702 = vpack.c.b16 %v494, %v492
    %v703 = vpack.c.b16 %v495, %v493
    %v704 = vpack.c.b16 %v498, %v496
    %v705 = vpack.c.b16 %v499, %v497
    %v706 = vpack.c.b16 %v502, %v500
    %v707 = vpack.c.b16 %v503, %v501
    %v708 = vpack.c.b16 %v506, %v504
    %v709 = vpack.c.b16 %v507, %v505
    %v710 = vpack.c.b16 %v510, %v508
    %v711 = vpack.c.b16 %v511, %v509
    %v712 = vpack.c.b16 %v514, %v512
    %v713 = vpack.c.b16 %v515, %v513
    %v714 = vpack.c.b16 %v518, %v516
    %v715 = vpack.c.b16 %v519, %v517
    %v716 = vpack.c.b16 %v522, %v520
    %v717 = vpack.c.b16 %v523, %v521
    %v718 = vpack.c.b16 %v526, %v524
    %v719 = vpack.c.b16 %v527, %v525
    %v720 = vpack.c.b16 %v530, %v528
    %v721 = vpack.c.b16 %v531, %v529
    %v722 = vpack.c.b16 %v534, %v532
    %v723 = vpack.c.b16 %v535, %v533
    %v724 = vpack.c.b16 %v538, %v536
    %v725 = vpack.c.b16 %v539, %v537
    %v726 = vpack.c.b16 %v542, %v540
    %v727 = vpack.c.b16 %v543, %v541
    %v728 = vpack.c.b16 %v546, %v544
    %v729 = vpack.c.b16 %v547, %v545
    %v730 = vpack.c.b16 %v550, %v548
    %v731 = vpack.c.b16 %v551, %v549
    %v732 = vpack.c.b16 %v554, %v552
    %v733 = vpack.c.b16 %v555, %v553
    %v734 = vpack.c.b16 %v558, %v556
    %v735 = vpack.c.b16 %v559, %v557
    %v736 = vpack.c.b16 %v562, %v560
    %v737 = vpack.c.b16 %v563, %v561
    %v738 = vpack.c.b16 %v566, %v564
    %v739 = vpack.c.b16 %v567, %v565
    %v740 = vpack.c.b16 %v570, %v568
    %v741 = vpack.c.b16 %v571, %v569
    %v742 = vpack.c.b16 %v574, %v572
    %v743 = vpack.c.b16 %v575, %v573
    %v744 = vpack.c.b16 %v578, %v576
    %v745 = vpack.c.b16 %v579, %v577
    %v746 = vpack.c.b16 %v582, %v580
    %v747 = vpack.c.b16 %v583, %v581
    %v748 = vpack.c.b16 %v586, %v584
    %v749 = vpack.c.b16 %v587, %v585
    %v750 = vpack.c.b16 %v590, %v588
    %v751 = vpack.c.b16 %v591, %v589
    %v752 = vpack.c.b16 %v594, %v592
    %v753 = vpack.c.b16 %v595, %v593
    %v754 = vpack.c.b16 %v598, %v596
    %v755 = vpack.c.b16 %v599, %v597
    %v756 = vpack.c.b16 %v602, %v600
    %v757 = vpack.c.b16 %v603, %v601
    %v758 = vpack.c.b16 %v606, %v604
    %v759 = vpack.c.b16 %v607, %v605
    %v760 = vpack.c.b16 %v610, %v608
    %v761 = vpack.c.b16 %v611, %v609
    %v762 = vpack.c.b16 %v614, %v612
    %v763 = vpack.c.b16 %v615, %v613
    %v764 = vpack.c.b16 %v618, %v616
    %v765 = vpack.c.b16 %v619, %v617
    %v766 = vpack.c.b16 %v622, %v620
    %v767 = vpack.c.b16 %v623, %v621
    %v768 = vpack.c.b16 %v626, %v624
    %v769 = vpack.c.b16 %v627, %v625
    %v770 = vpack.c.b16 %v630, %v628
    %v771 = vpack.c.b16 %v631, %v629
    %v772 = vpack.c.b16 %v634, %v632
    %v773 = vpack.c.b16 %v635, %v633
    %v774 = vpack.c.b16 %v638, %v636
    %v775 = vpack.c.b16 %v639, %v637
    %v776 = vpack.c.b16 %v642, %v640
    %v777 = vpack.c.b16 %v643, %v641
    %v778 = vpack.c.b16 %v646, %v644
    %v779 = vpack.c.b16 %v647, %v645
    %v780 = vpack.c.b16 %v650, %v648
    %v781 = vpack.c.b16 %v651, %v649
    %v782 = vpack.c.b16 %v654, %v652
    %v783 = vpack.c.b16 %v655, %v653
    %912 = vmatprep.subr.bf16.mxu0 %v657
    %913 = vmatpush1.bf16.msra.mxu0 %v656
    %914 = vmatprep.subr.bf16.mxu0 %v659
    %915 = vmatpush1.bf16.msra.mxu0 %v658
    %916 = vmatprep.subr.bf16.mxu0 %v661
    %917 = vmatpush1.bf16.msra.mxu0 %v660
    %918 = vmatprep.subr.bf16.mxu0 %v663
    %919 = vmatpush1.bf16.msra.mxu0 %v662
    %920 = vmatprep.subr.bf16.mxu0 %v665
    %921 = vmatpush1.bf16.msra.mxu0 %v664
    %922 = vmatprep.subr.bf16.mxu0 %v667
    %923 = vmatpush1.bf16.msra.mxu0 %v666
    %924 = vmatprep.subr.bf16.mxu0 %v669
    %925 = vmatpush1.bf16.msra.mxu0 %v668
    %926 = vmatprep.subr.bf16.mxu0 %v671
    %927 = vmatpush1.bf16.msra.mxu0 %v670
    %928 = vmatprep.subr.bf16.mxu0 %v673
    %929 = vmatpush1.bf16.msra.mxu0 %v672
    %930 = vmatprep.subr.bf16.mxu0 %v675
    %931 = vmatpush1.bf16.msra.mxu0 %v674
    %932 = vmatprep.subr.bf16.mxu0 %v677
    %933 = vmatpush1.bf16.msra.mxu0 %v676
    %934 = vmatprep.subr.bf16.mxu0 %v679
    %935 = vmatpush1.bf16.msra.mxu0 %v678
    %936 = vmatprep.subr.bf16.mxu0 %v681
    %937 = vmatpush1.bf16.msra.mxu0 %v680
    %938 = vmatprep.subr.bf16.mxu0 %v683
    %939 = vmatpush1.bf16.msra.mxu0 %v682
    %940 = vmatprep.subr.bf16.mxu0 %v685
    %941 = vmatpush1.bf16.msra.mxu0 %v684
    %942 = vmatprep.subr.bf16.mxu0 %v687
    %943 = vmatpush1.bf16.msra.mxu0 %v686
    %944 = vmatprep.mubr.bf16.mxu0 %v257
    %945 = vmatmul.mubr.bf16.gmra.mrb[0].mxu0 %v256
    %v946 = vpop.f32.mrb[0].mxu0
    %v947 = vadd.f32 %v237, %v946
    %v948 = vpop.f32.mrb[0].mxu0
    %v949 = vadd.f32 %v241, %v948
    %v950 = vpop.f32.mrb[0].mxu0
    %v951 = vpop.f32.mrb[0].mxu0
    %952 = vdwg.mxu0
    %953 = vmatprep.subr.bf16.mxu0 %v689
    %954 = vmatpush1.bf16.msra.mxu0 %v688
    %955 = vmatprep.subr.bf16.mxu0 %v691
    %956 = vmatpush1.bf16.msra.mxu0 %v690
    %957 = vmatprep.subr.bf16.mxu0 %v693
    %958 = vmatpush1.bf16.msra.mxu0 %v692
    %959 = vmatprep.subr.bf16.mxu0 %v695
    %960 = vmatpush1.bf16.msra.mxu0 %v694
    %961 = vmatprep.subr.bf16.mxu0 %v697
    %962 = vmatpush1.bf16.msra.mxu0 %v696
    %963 = vmatprep.subr.bf16.mxu0 %v699
    %964 = vmatpush1.bf16.msra.mxu0 %v698
    %965 = vmatprep.subr.bf16.mxu0 %v701
    %966 = vmatpush1.bf16.msra.mxu0 %v700
    %967 = vmatprep.subr.bf16.mxu0 %v703
    %968 = vmatpush1.bf16.msra.mxu0 %v702
    %969 = vmatprep.subr.bf16.mxu0 %v705
    %970 = vmatpush1.bf16.msra.mxu0 %v704
    %971 = vmatprep.subr.bf16.mxu0 %v707
    %972 = vmatpush1.bf16.msra.mxu0 %v706
    %973 = vmatprep.subr.bf16.mxu0 %v709
    %974 = vmatpush1.bf16.msra.mxu0 %v708
    %975 = vmatprep.subr.bf16.mxu0 %v711
    %976 = vmatpush1.bf16.msra.mxu0 %v710
    %977 = vmatprep.subr.bf16.mxu0 %v713
    %978 = vmatpush1.bf16.msra.mxu0 %v712
    %979 = vmatprep.subr.bf16.mxu0 %v715
    %980 = vmatpush1.bf16.msra.mxu0 %v714
    %981 = vmatprep.subr.bf16.mxu0 %v717
    %982 = vmatpush1.bf16.msra.mxu0 %v716
    %983 = vmatprep.subr.bf16.mxu0 %v719
    %984 = vmatpush1.bf16.msra.mxu0 %v718
    %985 = vmatprep.mubr.bf16.mxu0 %v259
    %986 = vmatmul.mubr.bf16.gmra.mrb[0].mxu0 %v258
    %v987 = vpop.f32.mrb[0].mxu0
    %v988 = vadd.f32 %v947, %v987
    %v989 = vpop.f32.mrb[0].mxu0
    %v990 = vadd.f32 %v949, %v989
    %v991 = vpop.f32.mrb[0].mxu0
    %v992 = vpop.f32.mrb[0].mxu0
    %993 = vdwg.mxu0
    %994 = vmatprep.subr.bf16.mxu0 %v721
    %995 = vmatpush1.bf16.msra.mxu0 %v720
    %996 = vmatprep.subr.bf16.mxu0 %v723
    %997 = vmatpush1.bf16.msra.mxu0 %v722
    %998 = vmatprep.subr.bf16.mxu0 %v725
    %999 = vmatpush1.bf16.msra.mxu0 %v724
    %1000 = vmatprep.subr.bf16.mxu0 %v727
    %1001 = vmatpush1.bf16.msra.mxu0 %v726
    %1002 = vmatprep.subr.bf16.mxu0 %v729
    %1003 = vmatpush1.bf16.msra.mxu0 %v728
    %1004 = vmatprep.subr.bf16.mxu0 %v731
    %1005 = vmatpush1.bf16.msra.mxu0 %v730
    %1006 = vmatprep.subr.bf16.mxu0 %v733
    %1007 = vmatpush1.bf16.msra.mxu0 %v732
    %1008 = vmatprep.subr.bf16.mxu0 %v735
    %1009 = vmatpush1.bf16.msra.mxu0 %v734
    %1010 = vmatprep.subr.bf16.mxu0 %v737
    %1011 = vmatpush1.bf16.msra.mxu0 %v736
    %1012 = vmatprep.subr.bf16.mxu0 %v739
    %1013 = vmatpush1.bf16.msra.mxu0 %v738
    %1014 = vmatprep.subr.bf16.mxu0 %v741
    %1015 = vmatpush1.bf16.msra.mxu0 %v740
    %1016 = vmatprep.subr.bf16.mxu0 %v743
    %1017 = vmatpush1.bf16.msra.mxu0 %v742
    %1018 = vmatprep.subr.bf16.mxu0 %v745
    %1019 = vmatpush1.bf16.msra.mxu0 %v744
    %1020 = vmatprep.subr.bf16.mxu0 %v747
    %1021 = vmatpush1.bf16.msra.mxu0 %v746
    %1022 = vmatprep.subr.bf16.mxu0 %v749
    %1023 = vmatpush1.bf16.msra.mxu0 %v748
    %1024 = vmatprep.subr.bf16.mxu0 %v751
    %1025 = vmatpush1.bf16.msra.mxu0 %v750
    %1026 = vmatprep.mubr.bf16.mxu0 %v261
    %1027 = vmatmul.mubr.bf16.gmra.mrb[0].mxu0 %v260
    %v1028 = vpop.f32.mrb[0].mxu0
    %v1029 = vadd.f32 %v988, %v1028
    %v1030 = vpop.f32.mrb[0].mxu0
    %v1031 = vadd.f32 %v990, %v1030
    %v1032 = vpop.f32.mrb[0].mxu0
    %v1033 = vpop.f32.mrb[0].mxu0
    %1034 = vdwg.mxu0
    %1035 = vmatprep.subr.bf16.mxu0 %v753
    %1036 = vmatpush1.bf16.msra.mxu0 %v752
    %1037 = vmatprep.subr.bf16.mxu0 %v755
    %1038 = vmatpush1.bf16.msra.mxu0 %v754
    %1039 = vmatprep.subr.bf16.mxu0 %v757
    %1040 = vmatpush1.bf16.msra.mxu0 %v756
    %1041 = vmatprep.subr.bf16.mxu0 %v759
    %1042 = vmatpush1.bf16.msra.mxu0 %v758
    %1043 = vmatprep.subr.bf16.mxu0 %v761
    %1044 = vmatpush1.bf16.msra.mxu0 %v760
    %1045 = vmatprep.subr.bf16.mxu0 %v763
    %1046 = vmatpush1.bf16.msra.mxu0 %v762
    %1047 = vmatprep.subr.bf16.mxu0 %v765
    %1048 = vmatpush1.bf16.msra.mxu0 %v764
    %1049 = vmatprep.subr.bf16.mxu0 %v767
    %1050 = vmatpush1.bf16.msra.mxu0 %v766
    %1051 = vmatprep.subr.bf16.mxu0 %v769
    %1052 = vmatpush1.bf16.msra.mxu0 %v768
    %1053 = vmatprep.subr.bf16.mxu0 %v771
    %1054 = vmatpush1.bf16.msra.mxu0 %v770
    %1055 = vmatprep.subr.bf16.mxu0 %v773
    %1056 = vmatpush1.bf16.msra.mxu0 %v772
    %1057 = vmatprep.subr.bf16.mxu0 %v775
    %1058 = vmatpush1.bf16.msra.mxu0 %v774
    %1059 = vmatprep.subr.bf16.mxu0 %v777
    %1060 = vmatpush1.bf16.msra.mxu0 %v776
    %1061 = vmatprep.subr.bf16.mxu0 %v779
    %1062 = vmatpush1.bf16.msra.mxu0 %v778
    %1063 = vmatprep.subr.bf16.mxu0 %v781
    %1064 = vmatpush1.bf16.msra.mxu0 %v780
    %1065 = vmatprep.subr.bf16.mxu0 %v783
    %1066 = vmatpush1.bf16.msra.mxu0 %v782
    %1067 = vmatprep.mubr.bf16.mxu0 %v263
    %1068 = vmatmul.mubr.bf16.gmra.mrb[0].mxu0 %v262
    %v1069 = vpop.f32.mrb[0].mxu0
    %v1070 = vadd.f32 %v1029, %v1069
    %v1071 = vpop.f32.mrb[0].mxu0
    %v1072 = vadd.f32 %v1031, %v1071
    %v1073 = vpop.f32.mrb[0].mxu0
    %v1074 = vpop.f32.mrb[0].mxu0
    %1075 = vdwg.mxu0
    %v1076 = vtanh.pop %v1070
    %v1077 = vtanh.pop %v1072
    %v1078 = vpack.c.bf16 %v1076, %v1076
    %v1079 = vpack.c.bf16 %v1077, %v1077
    %v1080 = vld [vmem:[#allocation7] sm:$0xf]
    %v1081 = vld [vmem:[#allocation7 + $0x4] sm:$0xf]
    %v1082 = vld [vmem:[#allocation7 + $0x8] sm:$0xf]
    %v1083 = vld [vmem:[#allocation7 + $0xc] sm:$0xf]
    %v1084 = vld [vmem:[#allocation7 + $0x10] sm:$0xf]
    %v1085 = vld [vmem:[#allocation7 + $0x14] sm:$0xf]
    %v1086 = vld [vmem:[#allocation7 + $0x18] sm:$0xf]
    %v1087 = vld [vmem:[#allocation7 + $0x1c] sm:$0xf]
    %v1088 = vld [vmem:[#allocation7 + $0x20] sm:$0xf]
    %v1089 = vld [vmem:[#allocation7 + $0x24] sm:$0xf]
    %v1090 = vld [vmem:[#allocation7 + $0x28] sm:$0xf]
    %v1091 = vld [vmem:[#allocation7 + $0x2c] sm:$0xf]
    %v1092 = vld [vmem:[#allocation7 + $0x30] sm:$0xf]
    %v1093 = vld [vmem:[#allocation7 + $0x34] sm:$0xf]
    %v1094 = vld [vmem:[#allocation7 + $0x38] sm:$0xf]
    %v1095 = vld [vmem:[#allocation7 + $0x3c] sm:$0xf]
    %v1096 = vld [vmem:[#allocation7 + $0x40] sm:$0xf]
    %v1097 = vld [vmem:[#allocation7 + $0x44] sm:$0xf]
    %v1098 = vld [vmem:[#allocation7 + $0x48] sm:$0xf]
    %v1099 = vld [vmem:[#allocation7 + $0x4c] sm:$0xf]
    %v1100 = vld [vmem:[#allocation7 + $0x50] sm:$0xf]
    %v1101 = vld [vmem:[#allocation7 + $0x54] sm:$0xf]
    %v1102 = vld [vmem:[#allocation7 + $0x58] sm:$0xf]
    %v1103 = vld [vmem:[#allocation7 + $0x5c] sm:$0xf]
    %v1104 = vld [vmem:[#allocation7 + $0x60] sm:$0xf]
    %v1105 = vld [vmem:[#allocation7 + $0x64] sm:$0xf]
    %v1106 = vld [vmem:[#allocation7 + $0x68] sm:$0xf]
    %v1107 = vld [vmem:[#allocation7 + $0x6c] sm:$0xf]
    %v1108 = vld [vmem:[#allocation7 + $0x70] sm:$0xf]
    %v1109 = vld [vmem:[#allocation7 + $0x74] sm:$0xf]
    %v1110 = vld [vmem:[#allocation7 + $0x78] sm:$0xf]
    %v1111 = vld [vmem:[#allocation7 + $0x7c] sm:$0xf]
    %v1112 = vld [vmem:[%s4] sm:$0x1]
    %v1114 = vlaneseq
    %v1115 = vshrl.u32 %v1114, 7
    %v1116 = vsub.s32 0, %v1115
    %v1117 = vrot.slane %v1112, %v1116
    %v1151 = vunpack.c.l.b16 %v1080
    %v1152 = vunpack.c.l.b16 %v1081
    %v1153 = vunpack.c.l.b16 %v1082
    %v1154 = vunpack.c.l.b16 %v1083
    %v1155 = vunpack.c.l.b16 %v1084
    %v1156 = vunpack.c.l.b16 %v1085
    %v1157 = vunpack.c.l.b16 %v1086
    %v1158 = vunpack.c.l.b16 %v1087
    %v1159 = vunpack.c.l.b16 %v1088
    %v1160 = vunpack.c.l.b16 %v1089
    %v1161 = vunpack.c.l.b16 %v1090
    %v1162 = vunpack.c.l.b16 %v1091
    %v1163 = vunpack.c.l.b16 %v1092
    %v1164 = vunpack.c.l.b16 %v1093
    %v1165 = vunpack.c.l.b16 %v1094
    %v1166 = vunpack.c.l.b16 %v1095
    %v1167 = vunpack.c.l.b16 %v1096
    %v1168 = vunpack.c.l.b16 %v1097
    %v1169 = vunpack.c.l.b16 %v1098
    %v1170 = vunpack.c.l.b16 %v1099
    %v1171 = vunpack.c.l.b16 %v1100
    %v1172 = vunpack.c.l.b16 %v1101
    %v1173 = vunpack.c.l.b16 %v1102
    %v1174 = vunpack.c.l.b16 %v1103
    %v1175 = vunpack.c.l.b16 %v1104
    %v1176 = vunpack.c.l.b16 %v1105
    %v1177 = vunpack.c.l.b16 %v1106
    %v1178 = vunpack.c.l.b16 %v1107
    %v1179 = vunpack.c.l.b16 %v1108
    %v1180 = vunpack.c.l.b16 %v1109
    %v1181 = vunpack.c.l.b16 %v1110
    %v1182 = vunpack.c.l.b16 %v1111
    %v1183 = vpack.c.b16 %v1152, %v1151
    %v1184 = vpack.c.b16 %v1154, %v1153
    %v1185 = vpack.c.b16 %v1156, %v1155
    %v1186 = vpack.c.b16 %v1158, %v1157
    %v1187 = vpack.c.b16 %v1160, %v1159
    %v1188 = vpack.c.b16 %v1162, %v1161
    %v1189 = vpack.c.b16 %v1164, %v1163
    %v1190 = vpack.c.b16 %v1166, %v1165
    %v1191 = vpack.c.b16 %v1168, %v1167
    %v1192 = vpack.c.b16 %v1170, %v1169
    %v1193 = vpack.c.b16 %v1172, %v1171
    %v1194 = vpack.c.b16 %v1174, %v1173
    %v1195 = vpack.c.b16 %v1176, %v1175
    %v1196 = vpack.c.b16 %v1178, %v1177
    %v1197 = vpack.c.b16 %v1180, %v1179
    %v1198 = vpack.c.b16 %v1182, %v1181
    %1215 = vmatprep.subr.bf16.mxu0 0
    %1216 = vmatpush1.bf16.msra.mxu0 %v1183
    %1217 = vmatprep.subr.bf16.mxu0 0
    %1218 = vmatpush1.bf16.msra.mxu0 %v1184
    %1219 = vmatprep.subr.bf16.mxu0 0
    %1220 = vmatpush1.bf16.msra.mxu0 %v1185
    %1221 = vmatprep.subr.bf16.mxu0 0
    %1222 = vmatpush1.bf16.msra.mxu0 %v1186
    %1223 = vmatprep.subr.bf16.mxu0 0
    %1224 = vmatpush1.bf16.msra.mxu0 %v1187
    %1225 = vmatprep.subr.bf16.mxu0 0
    %1226 = vmatpush1.bf16.msra.mxu0 %v1188
    %1227 = vmatprep.subr.bf16.mxu0 0
    %1228 = vmatpush1.bf16.msra.mxu0 %v1189
    %1229 = vmatprep.subr.bf16.mxu0 0
    %1230 = vmatpush1.bf16.msra.mxu0 %v1190
    %1231 = vmatprep.subr.bf16.mxu0 0
    %1232 = vmatpush1.bf16.msra.mxu0 %v1191
    %1233 = vmatprep.subr.bf16.mxu0 0
    %1234 = vmatpush1.bf16.msra.mxu0 %v1192
    %1235 = vmatprep.subr.bf16.mxu0 0
    %1236 = vmatpush1.bf16.msra.mxu0 %v1193
    %1237 = vmatprep.subr.bf16.mxu0 0
    %1238 = vmatpush1.bf16.msra.mxu0 %v1194
    %1239 = vmatprep.subr.bf16.mxu0 0
    %1240 = vmatpush1.bf16.msra.mxu0 %v1195
    %1241 = vmatprep.subr.bf16.mxu0 0
    %1242 = vmatpush1.bf16.msra.mxu0 %v1196
    %1243 = vmatprep.subr.bf16.mxu0 0
    %1244 = vmatpush1.bf16.msra.mxu0 %v1197
    %1245 = vmatprep.subr.bf16.mxu0 0
    %1246 = vmatpush1.bf16.msra.mxu0 %v1198
    %1247 = vmatprep.mubr.bf16.mxu0 %v1079
    %1248 = vmatmul.mubr.bf16.gmra.mrb[0].mxu0 %v1078
    %v1249 = vpop.f32.mrb[0].mxu0
    %v1250 = vadd.f32 %v1117, %v1249
    %v1251 = vpop.f32.mrb[0].mxu0
    %v1252 = vpop.f32.mrb[0].mxu0
    %v1253 = vpop.f32.mrb[0].mxu0
    %1254 = vdwg.mxu0
    %v1255 = vpack.c.bf16 %v1250, %v1250
    %v1256 = vld [vmem:[#allocation8] sm:$0xff]
    %v1257 = vld [vmem:[#allocation8 + $0x8] sm:$0xff]
    %v1258 = vld [vmem:[#allocation8 + $0x10] sm:$0xff]
    %v1259 = vld [vmem:[#allocation8 + $0x18] sm:$0xff]
    %v1260 = vld [vmem:[#allocation8 + $0x20] sm:$0xff]
    %v1261 = vld [vmem:[#allocation8 + $0x28] sm:$0xff]
    %v1262 = vld [vmem:[#allocation8 + $0x30] sm:$0xff]
    %v1263 = vld [vmem:[#allocation8 + $0x38] sm:$0xff]
    %v1264 = vld [vmem:[#allocation8 + $0x40] sm:$0xff]
    %v1265 = vld [vmem:[#allocation8 + $0x48] sm:$0xff]
    %v1266 = vld [vmem:[#allocation8 + $0x50] sm:$0xff]
    %v1267 = vld [vmem:[#allocation8 + $0x58] sm:$0xff]
    %v1268 = vld [vmem:[#allocation8 + $0x60] sm:$0xff]
    %v1269 = vld [vmem:[#allocation8 + $0x68] sm:$0xff]
    %v1270 = vld [vmem:[#allocation8 + $0x70] sm:$0xff]
    %v1271 = vld [vmem:[#allocation8 + $0x78] sm:$0xff]
    %v1272 = vld [vmem:[%s6] sm:$0x3]
    %v1274 = vlaneseq
    %v1275 = vshrl.u32 %v1274, 7
    %v1276 = vsub.s32 0, %v1275
    %v1277 = vrot.slane %v1272, %v1276
    %v1278 = vlaneseq
    %v1279 = vshrl.u32 %v1278, 7
    %v1280 = vsub.s32 1, %v1279
    %v1281 = vrot.slane %v1272, %v1280
    %v1300 = vunpack.c.l.b16 %v1256
    %v1301 = vunpack.c.h.b16 %v1256
    %v1302 = vunpack.c.l.b16 %v1257
    %v1303 = vunpack.c.h.b16 %v1257
    %v1304 = vunpack.c.l.b16 %v1258
    %v1305 = vunpack.c.h.b16 %v1258
    %v1306 = vunpack.c.l.b16 %v1259
    %v1307 = vunpack.c.h.b16 %v1259
    %v1308 = vunpack.c.l.b16 %v1260
    %v1309 = vunpack.c.h.b16 %v1260
    %v1310 = vunpack.c.l.b16 %v1261
    %v1311 = vunpack.c.h.b16 %v1261
    %v1312 = vunpack.c.l.b16 %v1262
    %v1313 = vunpack.c.h.b16 %v1262
    %v1314 = vunpack.c.l.b16 %v1263
    %v1315 = vunpack.c.h.b16 %v1263
    %v1316 = vunpack.c.l.b16 %v1264
    %v1317 = vunpack.c.h.b16 %v1264
    %v1318 = vunpack.c.l.b16 %v1265
    %v1319 = vunpack.c.h.b16 %v1265
    %v1320 = vunpack.c.l.b16 %v1266
    %v1321 = vunpack.c.h.b16 %v1266
    %v1322 = vunpack.c.l.b16 %v1267
    %v1323 = vunpack.c.h.b16 %v1267
    %v1324 = vunpack.c.l.b16 %v1268
    %v1325 = vunpack.c.h.b16 %v1268
    %v1326 = vunpack.c.l.b16 %v1269
    %v1327 = vunpack.c.h.b16 %v1269
    %v1328 = vunpack.c.l.b16 %v1270
    %v1329 = vunpack.c.h.b16 %v1270
    %v1330 = vunpack.c.l.b16 %v1271
    %v1331 = vunpack.c.h.b16 %v1271
    %v1332 = vpack.c.b16 %v1302, %v1300
    %v1333 = vpack.c.b16 %v1303, %v1301
    %v1334 = vpack.c.b16 %v1306, %v1304
    %v1335 = vpack.c.b16 %v1307, %v1305
    %v1336 = vpack.c.b16 %v1310, %v1308
    %v1337 = vpack.c.b16 %v1311, %v1309
    %v1338 = vpack.c.b16 %v1314, %v1312
    %v1339 = vpack.c.b16 %v1315, %v1313
    %v1340 = vpack.c.b16 %v1318, %v1316
    %v1341 = vpack.c.b16 %v1319, %v1317
    %v1342 = vpack.c.b16 %v1322, %v1320
    %v1343 = vpack.c.b16 %v1323, %v1321
    %v1344 = vpack.c.b16 %v1326, %v1324
    %v1345 = vpack.c.b16 %v1327, %v1325
    %v1346 = vpack.c.b16 %v1330, %v1328
    %v1347 = vpack.c.b16 %v1331, %v1329
    %1364 = vmatprep.subr.bf16.mxu0 %v1333
    %1365 = vmatpush1.bf16.msra.mxu0 %v1332
    %1366 = vmatprep.subr.bf16.mxu0 %v1335
    %1367 = vmatpush1.bf16.msra.mxu0 %v1334
    %1368 = vmatprep.subr.bf16.mxu0 %v1337
    %1369 = vmatpush1.bf16.msra.mxu0 %v1336
    %1370 = vmatprep.subr.bf16.mxu0 %v1339
    %1371 = vmatpush1.bf16.msra.mxu0 %v1338
    %1372 = vmatprep.subr.bf16.mxu0 %v1341
    %1373 = vmatpush1.bf16.msra.mxu0 %v1340
    %1374 = vmatprep.subr.bf16.mxu0 %v1343
    %1375 = vmatpush1.bf16.msra.mxu0 %v1342
    %1376 = vmatprep.subr.bf16.mxu0 %v1345
    %1377 = vmatpush1.bf16.msra.mxu0 %v1344
    %1378 = vmatprep.subr.bf16.mxu0 %v1347
    %1379 = vmatpush1.bf16.msra.mxu0 %v1346
    %1380 = vmatprep.subr.bf16.mxu0 0
    %1381 = vmatpush1.bf16.msra.mxu0 0
    %1382 = vmatprep.subr.bf16.mxu0 0
    %1383 = vmatpush1.bf16.msra.mxu0 0
    %1384 = vmatprep.subr.bf16.mxu0 0
    %1385 = vmatpush1.bf16.msra.mxu0 0
    %1386 = vmatprep.subr.bf16.mxu0 0
    %1387 = vmatpush1.bf16.msra.mxu0 0
    %1388 = vmatprep.subr.bf16.mxu0 0
    %1389 = vmatpush1.bf16.msra.mxu0 0
    %1390 = vmatprep.subr.bf16.mxu0 0
    %1391 = vmatpush1.bf16.msra.mxu0 0
    %1392 = vmatprep.subr.bf16.mxu0 0
    %1393 = vmatpush1.bf16.msra.mxu0 0
    %1394 = vmatprep.subr.bf16.mxu0 0
    %1395 = vmatpush1.bf16.msra.mxu0 0
    %1396 = vmatprep.mubr.bf16.mxu0 0
    %1397 = vmatmul.mubr.bf16.gmra.mrb[0].mxu0 %v1255
    %v1398 = vpop.f32.mrb[0].mxu0
    %v1399 = vadd.f32 %v1277, %v1398
    %v1400 = vpop.f32.mrb[0].mxu0
    %v1401 = vadd.f32 %v1281, %v1400
    %v1402 = vpop.f32.mrb[0].mxu0
    %v1403 = vpop.f32.mrb[0].mxu0
    %1404 = vdwg.mxu0
    %v1405 = vtanh.pop %v1399
    %v1406 = vtanh.pop %v1401
    %v1407 = vpack.c.bf16 %v1405, %v1405
    %v1408 = vpack.c.bf16 %v1406, %v1406
    %v1409 = vld [vmem:[#allocation10] sm:$0xff]
    %v1410 = vld [vmem:[#allocation10 + $0x8] sm:$0xff]
    %v1411 = vld [vmem:[#allocation10 + $0x10] sm:$0xff]
    %v1412 = vld [vmem:[#allocation10 + $0x18] sm:$0xff]
    %v1413 = vld [vmem:[#allocation10 + $0x20] sm:$0xff]
    %v1414 = vld [vmem:[#allocation10 + $0x28] sm:$0xff]
    %v1415 = vld [vmem:[#allocation10 + $0x30] sm:$0xff]
    %v1416 = vld [vmem:[#allocation10 + $0x38] sm:$0xff]
    %v1417 = vld [vmem:[#allocation10 + $0x40] sm:$0xff]
    %v1418 = vld [vmem:[#allocation10 + $0x48] sm:$0xff]
    %v1419 = vld [vmem:[#allocation10 + $0x50] sm:$0xff]
    %v1420 = vld [vmem:[#allocation10 + $0x58] sm:$0xff]
    %v1421 = vld [vmem:[#allocation10 + $0x60] sm:$0xff]
    %v1422 = vld [vmem:[#allocation10 + $0x68] sm:$0xff]
    %v1423 = vld [vmem:[#allocation10 + $0x70] sm:$0xff]
    %v1424 = vld [vmem:[#allocation10 + $0x78] sm:$0xff]
    %v1425 = vld [vmem:[#allocation10 + $0x80] sm:$0xff]
    %v1426 = vld [vmem:[#allocation10 + $0x88] sm:$0xff]
    %v1427 = vld [vmem:[#allocation10 + $0x90] sm:$0xff]
    %v1428 = vld [vmem:[#allocation10 + $0x98] sm:$0xff]
    %v1429 = vld [vmem:[#allocation10 + $0xa0] sm:$0xff]
    %v1430 = vld [vmem:[#allocation10 + $0xa8] sm:$0xff]
    %v1431 = vld [vmem:[#allocation10 + $0xb0] sm:$0xff]
    %v1432 = vld [vmem:[#allocation10 + $0xb8] sm:$0xff]
    %v1433 = vld [vmem:[#allocation10 + $0xc0] sm:$0xff]
    %v1434 = vld [vmem:[#allocation10 + $0xc8] sm:$0xff]
    %v1435 = vld [vmem:[#allocation10 + $0xd0] sm:$0xff]
    %v1436 = vld [vmem:[#allocation10 + $0xd8] sm:$0xff]
    %v1437 = vld [vmem:[#allocation10 + $0xe0] sm:$0xff]
    %v1438 = vld [vmem:[#allocation10 + $0xe8] sm:$0xff]
    %v1439 = vld [vmem:[#allocation10 + $0xf0] sm:$0xff]
    %v1440 = vld [vmem:[#allocation10 + $0xf8] sm:$0xff]
    %v1441 = vld [vmem:[#allocation10 + $0x100] sm:$0xff]
    %v1442 = vld [vmem:[#allocation10 + $0x108] sm:$0xff]
    %v1443 = vld [vmem:[#allocation10 + $0x110] sm:$0xff]
    %v1444 = vld [vmem:[#allocation10 + $0x118] sm:$0xff]
    %v1445 = vld [vmem:[#allocation10 + $0x120] sm:$0xff]
    %v1446 = vld [vmem:[#allocation10 + $0x128] sm:$0xff]
    %v1447 = vld [vmem:[#allocation10 + $0x130] sm:$0xff]
    %v1448 = vld [vmem:[#allocation10 + $0x138] sm:$0xff]
    %v1449 = vld [vmem:[#allocation10 + $0x140] sm:$0xff]
    %v1450 = vld [vmem:[#allocation10 + $0x148] sm:$0xff]
    %v1451 = vld [vmem:[#allocation10 + $0x150] sm:$0xff]
    %v1452 = vld [vmem:[#allocation10 + $0x158] sm:$0xff]
    %v1453 = vld [vmem:[#allocation10 + $0x160] sm:$0xff]
    %v1454 = vld [vmem:[#allocation10 + $0x168] sm:$0xff]
    %v1455 = vld [vmem:[#allocation10 + $0x170] sm:$0xff]
    %v1456 = vld [vmem:[#allocation10 + $0x178] sm:$0xff]
    %v1457 = vld [vmem:[#allocation10 + $0x180] sm:$0xff]
    %v1458 = vld [vmem:[#allocation10 + $0x188] sm:$0xff]
    %v1459 = vld [vmem:[#allocation10 + $0x190] sm:$0xff]
    %v1460 = vld [vmem:[#allocation10 + $0x198] sm:$0xff]
    %v1461 = vld [vmem:[#allocation10 + $0x1a0] sm:$0xff]
    %v1462 = vld [vmem:[#allocation10 + $0x1a8] sm:$0xff]
    %v1463 = vld [vmem:[#allocation10 + $0x1b0] sm:$0xff]
    %v1464 = vld [vmem:[#allocation10 + $0x1b8] sm:$0xff]
    %v1465 = vld [vmem:[#allocation10 + $0x1c0] sm:$0xff]
    %v1466 = vld [vmem:[#allocation10 + $0x1c8] sm:$0xff]
    %v1467 = vld [vmem:[#allocation10 + $0x1d0] sm:$0xff]
    %v1468 = vld [vmem:[#allocation10 + $0x1d8] sm:$0xff]
    %v1469 = vld [vmem:[#allocation10 + $0x1e0] sm:$0xff]
    %v1470 = vld [vmem:[#allocation10 + $0x1e8] sm:$0xff]
    %v1471 = vld [vmem:[#allocation10 + $0x1f0] sm:$0xff]
    %v1472 = vld [vmem:[#allocation10 + $0x1f8] sm:$0xff]
    %v1473 = vld [vmem:[#allocation10 + $0x200] sm:$0xff]
    %v1474 = vld [vmem:[#allocation10 + $0x208] sm:$0xff]
    %v1475 = vld [vmem:[#allocation10 + $0x210] sm:$0xff]
    %v1476 = vld [vmem:[#allocation10 + $0x218] sm:$0xff]
    %v1477 = vld [vmem:[#allocation10 + $0x220] sm:$0xff]
    %v1478 = vld [vmem:[#allocation10 + $0x228] sm:$0xff]
    %v1479 = vld [vmem:[#allocation10 + $0x230] sm:$0xff]
    %v1480 = vld [vmem:[#allocation10 + $0x238] sm:$0xff]
    %v1481 = vld [vmem:[#allocation10 + $0x240] sm:$0xff]
    %v1482 = vld [vmem:[#allocation10 + $0x248] sm:$0xff]
    %v1483 = vld [vmem:[#allocation10 + $0x250] sm:$0xff]
    %v1484 = vld [vmem:[#allocation10 + $0x258] sm:$0xff]
    %v1485 = vld [vmem:[#allocation10 + $0x260] sm:$0xff]
    %v1486 = vld [vmem:[#allocation10 + $0x268] sm:$0xff]
    %v1487 = vld [vmem:[#allocation10 + $0x270] sm:$0xff]
    %v1488 = vld [vmem:[#allocation10 + $0x278] sm:$0xff]
    %v1489 = vld [vmem:[#allocation10 + $0x280] sm:$0xff]
    %v1490 = vld [vmem:[#allocation10 + $0x288] sm:$0xff]
    %v1491 = vld [vmem:[#allocation10 + $0x290] sm:$0xff]
    %v1492 = vld [vmem:[#allocation10 + $0x298] sm:$0xff]
    %v1493 = vld [vmem:[#allocation10 + $0x2a0] sm:$0xff]
    %v1494 = vld [vmem:[#allocation10 + $0x2a8] sm:$0xff]
    %v1495 = vld [vmem:[#allocation10 + $0x2b0] sm:$0xff]
    %v1496 = vld [vmem:[#allocation10 + $0x2b8] sm:$0xff]
    %v1497 = vld [vmem:[#allocation10 + $0x2c0] sm:$0xff]
    %v1498 = vld [vmem:[#allocation10 + $0x2c8] sm:$0xff]
    %v1499 = vld [vmem:[#allocation10 + $0x2d0] sm:$0xff]
    %v1500 = vld [vmem:[#allocation10 + $0x2d8] sm:$0xff]
    %v1501 = vld [vmem:[#allocation10 + $0x2e0] sm:$0xff]
    %v1502 = vld [vmem:[#allocation10 + $0x2e8] sm:$0xff]
    %v1503 = vld [vmem:[#allocation10 + $0x2f0] sm:$0xff]
    %v1504 = vld [vmem:[#allocation10 + $0x2f8] sm:$0xff]
    %v1505 = vld [vmem:[#allocation10 + $0x300] sm:$0xff]
    %v1506 = vld [vmem:[#allocation10 + $0x308] sm:$0xff]
    %v1507 = vld [vmem:[#allocation10 + $0x310] sm:$0xff]
    %v1508 = vld [vmem:[#allocation10 + $0x318] sm:$0xff]
    %v1509 = vld [vmem:[#allocation10 + $0x320] sm:$0xff]
    %v1510 = vld [vmem:[#allocation10 + $0x328] sm:$0xff]
    %v1511 = vld [vmem:[#allocation10 + $0x330] sm:$0xff]
    %v1512 = vld [vmem:[#allocation10 + $0x338] sm:$0xff]
    %v1513 = vld [vmem:[#allocation10 + $0x340] sm:$0xff]
    %v1514 = vld [vmem:[#allocation10 + $0x348] sm:$0xff]
    %v1515 = vld [vmem:[#allocation10 + $0x350] sm:$0xff]
    %v1516 = vld [vmem:[#allocation10 + $0x358] sm:$0xff]
    %v1517 = vld [vmem:[#allocation10 + $0x360] sm:$0xff]
    %v1518 = vld [vmem:[#allocation10 + $0x368] sm:$0xff]
    %v1519 = vld [vmem:[#allocation10 + $0x370] sm:$0xff]
    %v1520 = vld [vmem:[#allocation10 + $0x378] sm:$0xff]
    %v1521 = vld [vmem:[#allocation10 + $0x380] sm:$0xff]
    %v1522 = vld [vmem:[#allocation10 + $0x388] sm:$0xff]
    %v1523 = vld [vmem:[#allocation10 + $0x390] sm:$0xff]
    %v1524 = vld [vmem:[#allocation10 + $0x398] sm:$0xff]
    %v1525 = vld [vmem:[#allocation10 + $0x3a0] sm:$0xff]
    %v1526 = vld [vmem:[#allocation10 + $0x3a8] sm:$0xff]
    %v1527 = vld [vmem:[#allocation10 + $0x3b0] sm:$0xff]
    %v1528 = vld [vmem:[#allocation10 + $0x3b8] sm:$0xff]
    %v1529 = vld [vmem:[#allocation10 + $0x3c0] sm:$0xff]
    %v1530 = vld [vmem:[#allocation10 + $0x3c8] sm:$0xff]
    %v1531 = vld [vmem:[#allocation10 + $0x3d0] sm:$0xff]
    %v1532 = vld [vmem:[#allocation10 + $0x3d8] sm:$0xff]
    %v1533 = vld [vmem:[#allocation10 + $0x3e0] sm:$0xff]
    %v1534 = vld [vmem:[#allocation10 + $0x3e8] sm:$0xff]
    %v1535 = vld [vmem:[#allocation10 + $0x3f0] sm:$0xff]
    %v1536 = vld [vmem:[#allocation10 + $0x3f8] sm:$0xff]
    %v1537 = vld [vmem:[%s8] sm:$0xff]
    %v1539 = vlaneseq
    %v1540 = vshrl.u32 %v1539, 7
    %v1541 = vsub.s32 0, %v1540
    %v1542 = vrot.slane %v1537, %v1541
    %v1543 = vlaneseq
    %v1544 = vshrl.u32 %v1543, 7
    %v1545 = vsub.s32 1, %v1544
    %v1546 = vrot.slane %v1537, %v1545
    %v1547 = vlaneseq
    %v1548 = vshrl.u32 %v1547, 7
    %v1549 = vsub.s32 2, %v1548
    %v1550 = vrot.slane %v1537, %v1549
    %v1551 = vlaneseq
    %v1552 = vshrl.u32 %v1551, 7
    %v1553 = vsub.s32 3, %v1552
    %v1554 = vrot.slane %v1537, %v1553
    %v1555 = vlaneseq
    %v1556 = vshrl.u32 %v1555, 7
    %v1557 = vsub.s32 4, %v1556
    %v1558 = vrot.slane %v1537, %v1557
    %v1559 = vlaneseq
    %v1560 = vshrl.u32 %v1559, 7
    %v1561 = vsub.s32 5, %v1560
    %v1562 = vrot.slane %v1537, %v1561
    %v1563 = vlaneseq
    %v1564 = vshrl.u32 %v1563, 7
    %v1565 = vsub.s32 6, %v1564
    %v1566 = vrot.slane %v1537, %v1565
    %v1567 = vlaneseq
    %v1568 = vshrl.u32 %v1567, 7
    %v1569 = vsub.s32 7, %v1568
    %v1570 = vrot.slane %v1537, %v1569
    %v1707 = vunpack.c.l.b16 %v1409
    %v1708 = vunpack.c.h.b16 %v1409
    %v1709 = vunpack.c.l.b16 %v1410
    %v1710 = vunpack.c.h.b16 %v1410
    %v1711 = vunpack.c.l.b16 %v1411
    %v1712 = vunpack.c.h.b16 %v1411
    %v1713 = vunpack.c.l.b16 %v1412
    %v1714 = vunpack.c.h.b16 %v1412
    %v1715 = vunpack.c.l.b16 %v1413
    %v1716 = vunpack.c.h.b16 %v1413
    %v1717 = vunpack.c.l.b16 %v1414
    %v1718 = vunpack.c.h.b16 %v1414
    %v1719 = vunpack.c.l.b16 %v1415
    %v1720 = vunpack.c.h.b16 %v1415
    %v1721 = vunpack.c.l.b16 %v1416
    %v1722 = vunpack.c.h.b16 %v1416
    %v1723 = vunpack.c.l.b16 %v1417
    %v1724 = vunpack.c.h.b16 %v1417
    %v1725 = vunpack.c.l.b16 %v1418
    %v1726 = vunpack.c.h.b16 %v1418
    %v1727 = vunpack.c.l.b16 %v1419
    %v1728 = vunpack.c.h.b16 %v1419
    %v1729 = vunpack.c.l.b16 %v1420
    %v1730 = vunpack.c.h.b16 %v1420
    %v1731 = vunpack.c.l.b16 %v1421
    %v1732 = vunpack.c.h.b16 %v1421
    %v1733 = vunpack.c.l.b16 %v1422
    %v1734 = vunpack.c.h.b16 %v1422
    %v1735 = vunpack.c.l.b16 %v1423
    %v1736 = vunpack.c.h.b16 %v1423
    %v1737 = vunpack.c.l.b16 %v1424
    %v1738 = vunpack.c.h.b16 %v1424
    %v1739 = vunpack.c.l.b16 %v1425
    %v1740 = vunpack.c.h.b16 %v1425
    %v1741 = vunpack.c.l.b16 %v1426
    %v1742 = vunpack.c.h.b16 %v1426
    %v1743 = vunpack.c.l.b16 %v1427
    %v1744 = vunpack.c.h.b16 %v1427
    %v1745 = vunpack.c.l.b16 %v1428
    %v1746 = vunpack.c.h.b16 %v1428
    %v1747 = vunpack.c.l.b16 %v1429
    %v1748 = vunpack.c.h.b16 %v1429
    %v1749 = vunpack.c.l.b16 %v1430
    %v1750 = vunpack.c.h.b16 %v1430
    %v1751 = vunpack.c.l.b16 %v1431
    %v1752 = vunpack.c.h.b16 %v1431
    %v1753 = vunpack.c.l.b16 %v1432
    %v1754 = vunpack.c.h.b16 %v1432
    %v1755 = vunpack.c.l.b16 %v1433
    %v1756 = vunpack.c.h.b16 %v1433
    %v1757 = vunpack.c.l.b16 %v1434
    %v1758 = vunpack.c.h.b16 %v1434
    %v1759 = vunpack.c.l.b16 %v1435
    %v1760 = vunpack.c.h.b16 %v1435
    %v1761 = vunpack.c.l.b16 %v1436
    %v1762 = vunpack.c.h.b16 %v1436
    %v1763 = vunpack.c.l.b16 %v1437
    %v1764 = vunpack.c.h.b16 %v1437
    %v1765 = vunpack.c.l.b16 %v1438
    %v1766 = vunpack.c.h.b16 %v1438
    %v1767 = vunpack.c.l.b16 %v1439
    %v1768 = vunpack.c.h.b16 %v1439
    %v1769 = vunpack.c.l.b16 %v1440
    %v1770 = vunpack.c.h.b16 %v1440
    %v1771 = vunpack.c.l.b16 %v1441
    %v1772 = vunpack.c.h.b16 %v1441
    %v1773 = vunpack.c.l.b16 %v1442
    %v1774 = vunpack.c.h.b16 %v1442
    %v1775 = vunpack.c.l.b16 %v1443
    %v1776 = vunpack.c.h.b16 %v1443
    %v1777 = vunpack.c.l.b16 %v1444
    %v1778 = vunpack.c.h.b16 %v1444
    %v1779 = vunpack.c.l.b16 %v1445
    %v1780 = vunpack.c.h.b16 %v1445
    %v1781 = vunpack.c.l.b16 %v1446
    %v1782 = vunpack.c.h.b16 %v1446
    %v1783 = vunpack.c.l.b16 %v1447
    %v1784 = vunpack.c.h.b16 %v1447
    %v1785 = vunpack.c.l.b16 %v1448
    %v1786 = vunpack.c.h.b16 %v1448
    %v1787 = vunpack.c.l.b16 %v1449
    %v1788 = vunpack.c.h.b16 %v1449
    %v1789 = vunpack.c.l.b16 %v1450
    %v1790 = vunpack.c.h.b16 %v1450
    %v1791 = vunpack.c.l.b16 %v1451
    %v1792 = vunpack.c.h.b16 %v1451
    %v1793 = vunpack.c.l.b16 %v1452
    %v1794 = vunpack.c.h.b16 %v1452
    %v1795 = vunpack.c.l.b16 %v1453
    %v1796 = vunpack.c.h.b16 %v1453
    %v1797 = vunpack.c.l.b16 %v1454
    %v1798 = vunpack.c.h.b16 %v1454
    %v1799 = vunpack.c.l.b16 %v1455
    %v1800 = vunpack.c.h.b16 %v1455
    %v1801 = vunpack.c.l.b16 %v1456
    %v1802 = vunpack.c.h.b16 %v1456
    %v1803 = vunpack.c.l.b16 %v1457
    %v1804 = vunpack.c.h.b16 %v1457
    %v1805 = vunpack.c.l.b16 %v1458
    %v1806 = vunpack.c.h.b16 %v1458
    %v1807 = vunpack.c.l.b16 %v1459
    %v1808 = vunpack.c.h.b16 %v1459
    %v1809 = vunpack.c.l.b16 %v1460
    %v1810 = vunpack.c.h.b16 %v1460
    %v1811 = vunpack.c.l.b16 %v1461
    %v1812 = vunpack.c.h.b16 %v1461
    %v1813 = vunpack.c.l.b16 %v1462
    %v1814 = vunpack.c.h.b16 %v1462
    %v1815 = vunpack.c.l.b16 %v1463
    %v1816 = vunpack.c.h.b16 %v1463
    %v1817 = vunpack.c.l.b16 %v1464
    %v1818 = vunpack.c.h.b16 %v1464
    %v1819 = vunpack.c.l.b16 %v1465
    %v1820 = vunpack.c.h.b16 %v1465
    %v1821 = vunpack.c.l.b16 %v1466
    %v1822 = vunpack.c.h.b16 %v1466
    %v1823 = vunpack.c.l.b16 %v1467
    %v1824 = vunpack.c.h.b16 %v1467
    %v1825 = vunpack.c.l.b16 %v1468
    %v1826 = vunpack.c.h.b16 %v1468
    %v1827 = vunpack.c.l.b16 %v1469
    %v1828 = vunpack.c.h.b16 %v1469
    %v1829 = vunpack.c.l.b16 %v1470
    %v1830 = vunpack.c.h.b16 %v1470
    %v1831 = vunpack.c.l.b16 %v1471
    %v1832 = vunpack.c.h.b16 %v1471
    %v1833 = vunpack.c.l.b16 %v1472
    %v1834 = vunpack.c.h.b16 %v1472
    %v1835 = vunpack.c.l.b16 %v1473
    %v1836 = vunpack.c.h.b16 %v1473
    %v1837 = vunpack.c.l.b16 %v1474
    %v1838 = vunpack.c.h.b16 %v1474
    %v1839 = vunpack.c.l.b16 %v1475
    %v1840 = vunpack.c.h.b16 %v1475
    %v1841 = vunpack.c.l.b16 %v1476
    %v1842 = vunpack.c.h.b16 %v1476
    %v1843 = vunpack.c.l.b16 %v1477
    %v1844 = vunpack.c.h.b16 %v1477
    %v1845 = vunpack.c.l.b16 %v1478
    %v1846 = vunpack.c.h.b16 %v1478
    %v1847 = vunpack.c.l.b16 %v1479
    %v1848 = vunpack.c.h.b16 %v1479
    %v1849 = vunpack.c.l.b16 %v1480
    %v1850 = vunpack.c.h.b16 %v1480
    %v1851 = vunpack.c.l.b16 %v1481
    %v1852 = vunpack.c.h.b16 %v1481
    %v1853 = vunpack.c.l.b16 %v1482
    %v1854 = vunpack.c.h.b16 %v1482
    %v1855 = vunpack.c.l.b16 %v1483
    %v1856 = vunpack.c.h.b16 %v1483
    %v1857 = vunpack.c.l.b16 %v1484
    %v1858 = vunpack.c.h.b16 %v1484
    %v1859 = vunpack.c.l.b16 %v1485
    %v1860 = vunpack.c.h.b16 %v1485
    %v1861 = vunpack.c.l.b16 %v1486
    %v1862 = vunpack.c.h.b16 %v1486
    %v1863 = vunpack.c.l.b16 %v1487
    %v1864 = vunpack.c.h.b16 %v1487
    %v1865 = vunpack.c.l.b16 %v1488
    %v1866 = vunpack.c.h.b16 %v1488
    %v1867 = vunpack.c.l.b16 %v1489
    %v1868 = vunpack.c.h.b16 %v1489
    %v1869 = vunpack.c.l.b16 %v1490
    %v1870 = vunpack.c.h.b16 %v1490
    %v1871 = vunpack.c.l.b16 %v1491
    %v1872 = vunpack.c.h.b16 %v1491
    %v1873 = vunpack.c.l.b16 %v1492
    %v1874 = vunpack.c.h.b16 %v1492
    %v1875 = vunpack.c.l.b16 %v1493
    %v1876 = vunpack.c.h.b16 %v1493
    %v1877 = vunpack.c.l.b16 %v1494
    %v1878 = vunpack.c.h.b16 %v1494
    %v1879 = vunpack.c.l.b16 %v1495
    %v1880 = vunpack.c.h.b16 %v1495
    %v1881 = vunpack.c.l.b16 %v1496
    %v1882 = vunpack.c.h.b16 %v1496
    %v1883 = vunpack.c.l.b16 %v1497
    %v1884 = vunpack.c.h.b16 %v1497
    %v1885 = vunpack.c.l.b16 %v1498
    %v1886 = vunpack.c.h.b16 %v1498
    %v1887 = vunpack.c.l.b16 %v1499
    %v1888 = vunpack.c.h.b16 %v1499
    %v1889 = vunpack.c.l.b16 %v1500
    %v1890 = vunpack.c.h.b16 %v1500
    %v1891 = vunpack.c.l.b16 %v1501
    %v1892 = vunpack.c.h.b16 %v1501
    %v1893 = vunpack.c.l.b16 %v1502
    %v1894 = vunpack.c.h.b16 %v1502
    %v1895 = vunpack.c.l.b16 %v1503
    %v1896 = vunpack.c.h.b16 %v1503
    %v1897 = vunpack.c.l.b16 %v1504
    %v1898 = vunpack.c.h.b16 %v1504
    %v1899 = vunpack.c.l.b16 %v1505
    %v1900 = vunpack.c.h.b16 %v1505
    %v1901 = vunpack.c.l.b16 %v1506
    %v1902 = vunpack.c.h.b16 %v1506
    %v1903 = vunpack.c.l.b16 %v1507
    %v1904 = vunpack.c.h.b16 %v1507
    %v1905 = vunpack.c.l.b16 %v1508
    %v1906 = vunpack.c.h.b16 %v1508
    %v1907 = vunpack.c.l.b16 %v1509
    %v1908 = vunpack.c.h.b16 %v1509
    %v1909 = vunpack.c.l.b16 %v1510
    %v1910 = vunpack.c.h.b16 %v1510
    %v1911 = vunpack.c.l.b16 %v1511
    %v1912 = vunpack.c.h.b16 %v1511
    %v1913 = vunpack.c.l.b16 %v1512
    %v1914 = vunpack.c.h.b16 %v1512
    %v1915 = vunpack.c.l.b16 %v1513
    %v1916 = vunpack.c.h.b16 %v1513
    %v1917 = vunpack.c.l.b16 %v1514
    %v1918 = vunpack.c.h.b16 %v1514
    %v1919 = vunpack.c.l.b16 %v1515
    %v1920 = vunpack.c.h.b16 %v1515
    %v1921 = vunpack.c.l.b16 %v1516
    %v1922 = vunpack.c.h.b16 %v1516
    %v1923 = vunpack.c.l.b16 %v1517
    %v1924 = vunpack.c.h.b16 %v1517
    %v1925 = vunpack.c.l.b16 %v1518
    %v1926 = vunpack.c.h.b16 %v1518
    %v1927 = vunpack.c.l.b16 %v1519
    %v1928 = vunpack.c.h.b16 %v1519
    %v1929 = vunpack.c.l.b16 %v1520
    %v1930 = vunpack.c.h.b16 %v1520
    %v1931 = vunpack.c.l.b16 %v1521
    %v1932 = vunpack.c.h.b16 %v1521
    %v1933 = vunpack.c.l.b16 %v1522
    %v1934 = vunpack.c.h.b16 %v1522
    %v1935 = vunpack.c.l.b16 %v1523
    %v1936 = vunpack.c.h.b16 %v1523
    %v1937 = vunpack.c.l.b16 %v1524
    %v1938 = vunpack.c.h.b16 %v1524
    %v1939 = vunpack.c.l.b16 %v1525
    %v1940 = vunpack.c.h.b16 %v1525
    %v1941 = vunpack.c.l.b16 %v1526
    %v1942 = vunpack.c.h.b16 %v1526
    %v1943 = vunpack.c.l.b16 %v1527
    %v1944 = vunpack.c.h.b16 %v1527
    %v1945 = vunpack.c.l.b16 %v1528
    %v1946 = vunpack.c.h.b16 %v1528
    %v1947 = vunpack.c.l.b16 %v1529
    %v1948 = vunpack.c.h.b16 %v1529
    %v1949 = vunpack.c.l.b16 %v1530
    %v1950 = vunpack.c.h.b16 %v1530
    %v1951 = vunpack.c.l.b16 %v1531
    %v1952 = vunpack.c.h.b16 %v1531
    %v1953 = vunpack.c.l.b16 %v1532
    %v1954 = vunpack.c.h.b16 %v1532
    %v1955 = vunpack.c.l.b16 %v1533
    %v1956 = vunpack.c.h.b16 %v1533
    %v1957 = vunpack.c.l.b16 %v1534
    %v1958 = vunpack.c.h.b16 %v1534
    %v1959 = vunpack.c.l.b16 %v1535
    %v1960 = vunpack.c.h.b16 %v1535
    %v1961 = vunpack.c.l.b16 %v1536
    %v1962 = vunpack.c.h.b16 %v1536
    %v1963 = vpack.c.b16 %v1715, %v1707
    %v1964 = vpack.c.b16 %v1716, %v1708
    %v1965 = vpack.c.b16 %v1717, %v1709
    %v1966 = vpack.c.b16 %v1718, %v1710
    %v1967 = vpack.c.b16 %v1719, %v1711
    %v1968 = vpack.c.b16 %v1720, %v1712
    %v1969 = vpack.c.b16 %v1721, %v1713
    %v1970 = vpack.c.b16 %v1722, %v1714
    %v1971 = vpack.c.b16 %v1731, %v1723
    %v1972 = vpack.c.b16 %v1732, %v1724
    %v1973 = vpack.c.b16 %v1733, %v1725
    %v1974 = vpack.c.b16 %v1734, %v1726
    %v1975 = vpack.c.b16 %v1735, %v1727
    %v1976 = vpack.c.b16 %v1736, %v1728
    %v1977 = vpack.c.b16 %v1737, %v1729
    %v1978 = vpack.c.b16 %v1738, %v1730
    %v1979 = vpack.c.b16 %v1747, %v1739
    %v1980 = vpack.c.b16 %v1748, %v1740
    %v1981 = vpack.c.b16 %v1749, %v1741
    %v1982 = vpack.c.b16 %v1750, %v1742
    %v1983 = vpack.c.b16 %v1751, %v1743
    %v1984 = vpack.c.b16 %v1752, %v1744
    %v1985 = vpack.c.b16 %v1753, %v1745
    %v1986 = vpack.c.b16 %v1754, %v1746
    %v1987 = vpack.c.b16 %v1763, %v1755
    %v1988 = vpack.c.b16 %v1764, %v1756
    %v1989 = vpack.c.b16 %v1765, %v1757
    %v1990 = vpack.c.b16 %v1766, %v1758
    %v1991 = vpack.c.b16 %v1767, %v1759
    %v1992 = vpack.c.b16 %v1768, %v1760
    %v1993 = vpack.c.b16 %v1769, %v1761
    %v1994 = vpack.c.b16 %v1770, %v1762
    %v1995 = vpack.c.b16 %v1779, %v1771
    %v1996 = vpack.c.b16 %v1780, %v1772
    %v1997 = vpack.c.b16 %v1781, %v1773
    %v1998 = vpack.c.b16 %v1782, %v1774
    %v1999 = vpack.c.b16 %v1783, %v1775
    %v2000 = vpack.c.b16 %v1784, %v1776
    %v2001 = vpack.c.b16 %v1785, %v1777
    %v2002 = vpack.c.b16 %v1786, %v1778
    %v2003 = vpack.c.b16 %v1795, %v1787
    %v2004 = vpack.c.b16 %v1796, %v1788
    %v2005 = vpack.c.b16 %v1797, %v1789
    %v2006 = vpack.c.b16 %v1798, %v1790
    %v2007 = vpack.c.b16 %v1799, %v1791
    %v2008 = vpack.c.b16 %v1800, %v1792
    %v2009 = vpack.c.b16 %v1801, %v1793
    %v2010 = vpack.c.b16 %v1802, %v1794
    %v2011 = vpack.c.b16 %v1811, %v1803
    %v2012 = vpack.c.b16 %v1812, %v1804
    %v2013 = vpack.c.b16 %v1813, %v1805
    %v2014 = vpack.c.b16 %v1814, %v1806
    %v2015 = vpack.c.b16 %v1815, %v1807
    %v2016 = vpack.c.b16 %v1816, %v1808
    %v2017 = vpack.c.b16 %v1817, %v1809
    %v2018 = vpack.c.b16 %v1818, %v1810
    %v2019 = vpack.c.b16 %v1827, %v1819
    %v2020 = vpack.c.b16 %v1828, %v1820
    %v2021 = vpack.c.b16 %v1829, %v1821
    %v2022 = vpack.c.b16 %v1830, %v1822
    %v2023 = vpack.c.b16 %v1831, %v1823
    %v2024 = vpack.c.b16 %v1832, %v1824
    %v2025 = vpack.c.b16 %v1833, %v1825
    %v2026 = vpack.c.b16 %v1834, %v1826
    %v2027 = vpack.c.b16 %v1843, %v1835
    %v2028 = vpack.c.b16 %v1844, %v1836
    %v2029 = vpack.c.b16 %v1845, %v1837
    %v2030 = vpack.c.b16 %v1846, %v1838
    %v2031 = vpack.c.b16 %v1847, %v1839
    %v2032 = vpack.c.b16 %v1848, %v1840
    %v2033 = vpack.c.b16 %v1849, %v1841
    %v2034 = vpack.c.b16 %v1850, %v1842
    %v2035 = vpack.c.b16 %v1859, %v1851
    %v2036 = vpack.c.b16 %v1860, %v1852
    %v2037 = vpack.c.b16 %v1861, %v1853
    %v2038 = vpack.c.b16 %v1862, %v1854
    %v2039 = vpack.c.b16 %v1863, %v1855
    %v2040 = vpack.c.b16 %v1864, %v1856
    %v2041 = vpack.c.b16 %v1865, %v1857
    %v2042 = vpack.c.b16 %v1866, %v1858
    %v2043 = vpack.c.b16 %v1875, %v1867
    %v2044 = vpack.c.b16 %v1876, %v1868
    %v2045 = vpack.c.b16 %v1877, %v1869
    %v2046 = vpack.c.b16 %v1878, %v1870
    %v2047 = vpack.c.b16 %v1879, %v1871
    %v2048 = vpack.c.b16 %v1880, %v1872
    %v2049 = vpack.c.b16 %v1881, %v1873
    %v2050 = vpack.c.b16 %v1882, %v1874
    %v2051 = vpack.c.b16 %v1891, %v1883
    %v2052 = vpack.c.b16 %v1892, %v1884
    %v2053 = vpack.c.b16 %v1893, %v1885
    %v2054 = vpack.c.b16 %v1894, %v1886
    %v2055 = vpack.c.b16 %v1895, %v1887
    %v2056 = vpack.c.b16 %v1896, %v1888
    %v2057 = vpack.c.b16 %v1897, %v1889
    %v2058 = vpack.c.b16 %v1898, %v1890
    %v2059 = vpack.c.b16 %v1907, %v1899
    %v2060 = vpack.c.b16 %v1908, %v1900
    %v2061 = vpack.c.b16 %v1909, %v1901
    %v2062 = vpack.c.b16 %v1910, %v1902
    %v2063 = vpack.c.b16 %v1911, %v1903
    %v2064 = vpack.c.b16 %v1912, %v1904
    %v2065 = vpack.c.b16 %v1913, %v1905
    %v2066 = vpack.c.b16 %v1914, %v1906
    %v2067 = vpack.c.b16 %v1923, %v1915
    %v2068 = vpack.c.b16 %v1924, %v1916
    %v2069 = vpack.c.b16 %v1925, %v1917
    %v2070 = vpack.c.b16 %v1926, %v1918
    %v2071 = vpack.c.b16 %v1927, %v1919
    %v2072 = vpack.c.b16 %v1928, %v1920
    %v2073 = vpack.c.b16 %v1929, %v1921
    %v2074 = vpack.c.b16 %v1930, %v1922
    %v2075 = vpack.c.b16 %v1939, %v1931
    %v2076 = vpack.c.b16 %v1940, %v1932
    %v2077 = vpack.c.b16 %v1941, %v1933
    %v2078 = vpack.c.b16 %v1942, %v1934
    %v2079 = vpack.c.b16 %v1943, %v1935
    %v2080 = vpack.c.b16 %v1944, %v1936
    %v2081 = vpack.c.b16 %v1945, %v1937
    %v2082 = vpack.c.b16 %v1946, %v1938
    %v2083 = vpack.c.b16 %v1955, %v1947
    %v2084 = vpack.c.b16 %v1956, %v1948
    %v2085 = vpack.c.b16 %v1957, %v1949
    %v2086 = vpack.c.b16 %v1958, %v1950
    %v2087 = vpack.c.b16 %v1959, %v1951
    %v2088 = vpack.c.b16 %v1960, %v1952
    %v2089 = vpack.c.b16 %v1961, %v1953
    %v2090 = vpack.c.b16 %v1962, %v1954
    %2219 = vmatprep.subr.bf16.mxu0 %v1964
    %2220 = vmatpush1.bf16.msra.mxu0 %v1963
    %2221 = vmatprep.subr.bf16.mxu0 %v1972
    %2222 = vmatpush1.bf16.msra.mxu0 %v1971
    %2223 = vmatprep.subr.bf16.mxu0 %v1980
    %2224 = vmatpush1.bf16.msra.mxu0 %v1979
    %2225 = vmatprep.subr.bf16.mxu0 %v1988
    %2226 = vmatpush1.bf16.msra.mxu0 %v1987
    %2227 = vmatprep.subr.bf16.mxu0 %v1996
    %2228 = vmatpush1.bf16.msra.mxu0 %v1995
    %2229 = vmatprep.subr.bf16.mxu0 %v2004
    %2230 = vmatpush1.bf16.msra.mxu0 %v2003
    %2231 = vmatprep.subr.bf16.mxu0 %v2012
    %2232 = vmatpush1.bf16.msra.mxu0 %v2011
    %2233 = vmatprep.subr.bf16.mxu0 %v2020
    %2234 = vmatpush1.bf16.msra.mxu0 %v2019
    %2235 = vmatprep.subr.bf16.mxu0 %v2028
    %2236 = vmatpush1.bf16.msra.mxu0 %v2027
    %2237 = vmatprep.subr.bf16.mxu0 %v2036
    %2238 = vmatpush1.bf16.msra.mxu0 %v2035
    %2239 = vmatprep.subr.bf16.mxu0 %v2044
    %2240 = vmatpush1.bf16.msra.mxu0 %v2043
    %2241 = vmatprep.subr.bf16.mxu0 %v2052
    %2242 = vmatpush1.bf16.msra.mxu0 %v2051
    %2243 = vmatprep.subr.bf16.mxu0 %v2060
    %2244 = vmatpush1.bf16.msra.mxu0 %v2059
    %2245 = vmatprep.subr.bf16.mxu0 %v2068
    %2246 = vmatpush1.bf16.msra.mxu0 %v2067
    %2247 = vmatprep.subr.bf16.mxu0 %v2076
    %2248 = vmatpush1.bf16.msra.mxu0 %v2075
    %2249 = vmatprep.subr.bf16.mxu0 %v2084
    %2250 = vmatpush1.bf16.msra.mxu0 %v2083
    %2251 = vmatprep.mubr.bf16.mxu0 %v1408
    %2252 = vmatmul.mubr.bf16.gmra.mrb[0].mxu0 %v1407
    %v2253 = vpop.f32.mrb[0].mxu0
    %v2254 = vadd.f32 %v1542, %v2253
    %v2255 = vpop.f32.mrb[0].mxu0
    %v2256 = vadd.f32 %v1546, %v2255
    %v2257 = vpop.f32.mrb[0].mxu0
    %v2258 = vpop.f32.mrb[0].mxu0
    %2259 = vdwg.mxu0
    %2260 = vmatprep.subr.bf16.mxu0 %v1966
    %2261 = vmatpush1.bf16.msra.mxu0 %v1965
    %2262 = vmatprep.subr.bf16.mxu0 %v1974
    %2263 = vmatpush1.bf16.msra.mxu0 %v1973
    %2264 = vmatprep.subr.bf16.mxu0 %v1982
    %2265 = vmatpush1.bf16.msra.mxu0 %v1981
    %2266 = vmatprep.subr.bf16.mxu0 %v1990
    %2267 = vmatpush1.bf16.msra.mxu0 %v1989
    %2268 = vmatprep.subr.bf16.mxu0 %v1998
    %2269 = vmatpush1.bf16.msra.mxu0 %v1997
    %2270 = vmatprep.subr.bf16.mxu0 %v2006
    %2271 = vmatpush1.bf16.msra.mxu0 %v2005
    %2272 = vmatprep.subr.bf16.mxu0 %v2014
    %2273 = vmatpush1.bf16.msra.mxu0 %v2013
    %2274 = vmatprep.subr.bf16.mxu0 %v2022
    %2275 = vmatpush1.bf16.msra.mxu0 %v2021
    %2276 = vmatprep.subr.bf16.mxu0 %v2030
    %2277 = vmatpush1.bf16.msra.mxu0 %v2029
    %2278 = vmatprep.subr.bf16.mxu0 %v2038
    %2279 = vmatpush1.bf16.msra.mxu0 %v2037
    %2280 = vmatprep.subr.bf16.mxu0 %v2046
    %2281 = vmatpush1.bf16.msra.mxu0 %v2045
    %2282 = vmatprep.subr.bf16.mxu0 %v2054
    %2283 = vmatpush1.bf16.msra.mxu0 %v2053
    %2284 = vmatprep.subr.bf16.mxu0 %v2062
    %2285 = vmatpush1.bf16.msra.mxu0 %v2061
    %2286 = vmatprep.subr.bf16.mxu0 %v2070
    %2287 = vmatpush1.bf16.msra.mxu0 %v2069
    %2288 = vmatprep.subr.bf16.mxu0 %v2078
    %2289 = vmatpush1.bf16.msra.mxu0 %v2077
    %2290 = vmatprep.subr.bf16.mxu0 %v2086
    %2291 = vmatpush1.bf16.msra.mxu0 %v2085
    %2292 = vmatprep.mubr.bf16.mxu0 %v1408
    %2293 = vmatmul.mubr.bf16.gmra.mrb[0].mxu0 %v1407
    %v2294 = vpop.f32.mrb[0].mxu0
    %v2295 = vadd.f32 %v1550, %v2294
    %v2296 = vpop.f32.mrb[0].mxu0
    %v2297 = vadd.f32 %v1554, %v2296
    %v2298 = vpop.f32.mrb[0].mxu0
    %v2299 = vpop.f32.mrb[0].mxu0
    %2300 = vdwg.mxu0
    %2301 = vmatprep.subr.bf16.mxu0 %v1968
    %2302 = vmatpush1.bf16.msra.mxu0 %v1967
    %2303 = vmatprep.subr.bf16.mxu0 %v1976
    %2304 = vmatpush1.bf16.msra.mxu0 %v1975
    %2305 = vmatprep.subr.bf16.mxu0 %v1984
    %2306 = vmatpush1.bf16.msra.mxu0 %v1983
    %2307 = vmatprep.subr.bf16.mxu0 %v1992
    %2308 = vmatpush1.bf16.msra.mxu0 %v1991
    %2309 = vmatprep.subr.bf16.mxu0 %v2000
    %2310 = vmatpush1.bf16.msra.mxu0 %v1999
    %2311 = vmatprep.subr.bf16.mxu0 %v2008
    %2312 = vmatpush1.bf16.msra.mxu0 %v2007
    %2313 = vmatprep.subr.bf16.mxu0 %v2016
    %2314 = vmatpush1.bf16.msra.mxu0 %v2015
    %2315 = vmatprep.subr.bf16.mxu0 %v2024
    %2316 = vmatpush1.bf16.msra.mxu0 %v2023
    %2317 = vmatprep.subr.bf16.mxu0 %v2032
    %2318 = vmatpush1.bf16.msra.mxu0 %v2031
    %2319 = vmatprep.subr.bf16.mxu0 %v2040
    %2320 = vmatpush1.bf16.msra.mxu0 %v2039
    %2321 = vmatprep.subr.bf16.mxu0 %v2048
    %2322 = vmatpush1.bf16.msra.mxu0 %v2047
    %2323 = vmatprep.subr.bf16.mxu0 %v2056
    %2324 = vmatpush1.bf16.msra.mxu0 %v2055
    %2325 = vmatprep.subr.bf16.mxu0 %v2064
    %2326 = vmatpush1.bf16.msra.mxu0 %v2063
    %2327 = vmatprep.subr.bf16.mxu0 %v2072
    %2328 = vmatpush1.bf16.msra.mxu0 %v2071
    %2329 = vmatprep.subr.bf16.mxu0 %v2080
    %2330 = vmatpush1.bf16.msra.mxu0 %v2079
    %2331 = vmatprep.subr.bf16.mxu0 %v2088
    %2332 = vmatpush1.bf16.msra.mxu0 %v2087
    %2333 = vmatprep.mubr.bf16.mxu0 %v1408
    %2334 = vmatmul.mubr.bf16.gmra.mrb[0].mxu0 %v1407
    %v2335 = vpop.f32.mrb[0].mxu0
    %v2336 = vadd.f32 %v1558, %v2335
    %v2337 = vpop.f32.mrb[0].mxu0
    %v2338 = vadd.f32 %v1562, %v2337
    %v2339 = vpop.f32.mrb[0].mxu0
    %v2340 = vpop.f32.mrb[0].mxu0
    %2341 = vdwg.mxu0
    %2342 = vmatprep.subr.bf16.mxu0 %v1970
    %2343 = vmatpush1.bf16.msra.mxu0 %v1969
    %2344 = vmatprep.subr.bf16.mxu0 %v1978
    %2345 = vmatpush1.bf16.msra.mxu0 %v1977
    %2346 = vmatprep.subr.bf16.mxu0 %v1986
    %2347 = vmatpush1.bf16.msra.mxu0 %v1985
    %2348 = vmatprep.subr.bf16.mxu0 %v1994
    %2349 = vmatpush1.bf16.msra.mxu0 %v1993
    %2350 = vmatprep.subr.bf16.mxu0 %v2002
    %2351 = vmatpush1.bf16.msra.mxu0 %v2001
    %2352 = vmatprep.subr.bf16.mxu0 %v2010
    %2353 = vmatpush1.bf16.msra.mxu0 %v2009
    %2354 = vmatprep.subr.bf16.mxu0 %v2018
    %2355 = vmatpush1.bf16.msra.mxu0 %v2017
    %2356 = vmatprep.subr.bf16.mxu0 %v2026
    %2357 = vmatpush1.bf16.msra.mxu0 %v2025
    %2358 = vmatprep.subr.bf16.mxu0 %v2034
    %2359 = vmatpush1.bf16.msra.mxu0 %v2033
    %2360 = vmatprep.subr.bf16.mxu0 %v2042
    %2361 = vmatpush1.bf16.msra.mxu0 %v2041
    %2362 = vmatprep.subr.bf16.mxu0 %v2050
    %2363 = vmatpush1.bf16.msra.mxu0 %v2049
    %2364 = vmatprep.subr.bf16.mxu0 %v2058
    %2365 = vmatpush1.bf16.msra.mxu0 %v2057
    %2366 = vmatprep.subr.bf16.mxu0 %v2066
    %2367 = vmatpush1.bf16.msra.mxu0 %v2065
    %2368 = vmatprep.subr.bf16.mxu0 %v2074
    %2369 = vmatpush1.bf16.msra.mxu0 %v2073
    %2370 = vmatprep.subr.bf16.mxu0 %v2082
    %2371 = vmatpush1.bf16.msra.mxu0 %v2081
    %2372 = vmatprep.subr.bf16.mxu0 %v2090
    %2373 = vmatpush1.bf16.msra.mxu0 %v2089
    %2374 = vmatprep.mubr.bf16.mxu0 %v1408
    %2375 = vmatmul.mubr.bf16.gmra.mrb[0].mxu0 %v1407
    %v2376 = vpop.f32.mrb[0].mxu0
    %v2377 = vadd.f32 %v1566, %v2376
    %v2378 = vpop.f32.mrb[0].mxu0
    %v2379 = vadd.f32 %v1570, %v2378
    %v2380 = vpop.f32.mrb[0].mxu0
    %v2381 = vpop.f32.mrb[0].mxu0
    %2382 = vdwg.mxu0
    %v2383 = vmul.f32 %v2254, 0.5
    %v2384 = vmul.f32 %v2256, 0.5
    %v2385 = vmul.f32 %v2295, 0.5
    %v2386 = vmul.f32 %v2297, 0.5
    %v2387 = vmul.f32 %v2336, 0.5
    %v2388 = vmul.f32 %v2338, 0.5
    %v2389 = vmul.f32 %v2377, 0.5
    %v2390 = vmul.f32 %v2379, 0.5
    %v2391 = vtanh.pop %v2383
    %v2392 = vtanh.pop %v2384
    %v2393 = vtanh.pop %v2385
    %v2394 = vtanh.pop %v2386
    %v2395 = vtanh.pop %v2387
    %v2396 = vtanh.pop %v2388
    %v2397 = vtanh.pop %v2389
    %v2398 = vtanh.pop %v2390
    %v2399 = vadd.f32 %v2391, 1.0
    %v2400 = vadd.f32 %v2392, 1.0
    %v2401 = vadd.f32 %v2393, 1.0
    %v2402 = vadd.f32 %v2394, 1.0
    %v2403 = vadd.f32 %v2395, 1.0
    %v2404 = vadd.f32 %v2396, 1.0
    %v2405 = vadd.f32 %v2397, 1.0
    %v2406 = vadd.f32 %v2398, 1.0
    %v2407 = vmul.f32 %v2399, 0.5
    %v2408 = vmul.f32 %v2400, 0.5
    %v2409 = vmul.f32 %v2401, 0.5
    %v2410 = vmul.f32 %v2402, 0.5
    %v2411 = vmul.f32 %v2403, 0.5
    %v2412 = vmul.f32 %v2404, 0.5
    %v2413 = vmul.f32 %v2405, 0.5
    %v2414 = vmul.f32 %v2406, 0.5
    %2415 = vst [vmem:[#allocation11] sm:$0xff] %v2407
    %2416 = vst [vmem:[#allocation11 + $0x8] sm:$0xff] %v2408
    %2417 = vst [vmem:[#allocation11 + $0x10] sm:$0xff] %v2409
    %2418 = vst [vmem:[#allocation11 + $0x18] sm:$0xff] %v2410
    %2419 = vst [vmem:[#allocation11 + $0x20] sm:$0xff] %v2411
    %2420 = vst [vmem:[#allocation11 + $0x28] sm:$0xff] %v2412
    %2421 = vst [vmem:[#allocation11 + $0x30] sm:$0xff] %v2413
    %2422 = vst [vmem:[#allocation11 + $0x38] sm:$0xff] %v2414
    // Predicated region
    $region58: #{tpu_custom_call.1} parent=1 // pred_check
      _
    $region59: #{tpu_custom_call.1} parent=1 // pred_check_branch
      %2424 = sbr.rel (0) target = $region61
    $region60: #{tpu_custom_call.1} parent=1 // pred_region
      %s2426 = ssub.s32 1024, 1024
      %2427 = vsyncadd [#allocation4], %s2426
      %s2429 = sshll.u32 [#allocation11], 4
      %s2430 = int_to_ptr.vmem [resolvable:$true] %s2429
      %2432 = dma.vmem_to_hbm [thread:$0]  %s2430, 1024, %s9, [#allocation4]
    $region61: #{tpu_custom_call.1} parent=1 // pred_fallthru
      _
    // Predicated region
    $region62: #{tpu_custom_call.1} parent=1 // pred_check
      _
    $region63: #{tpu_custom_call.1} parent=1 // pred_check_branch
      %2434 = sbr.rel (0) target = $region65
    $region64: #{tpu_custom_call.1} parent=1 // pred_region
      %2435 = dma.done [#allocation4], 1024
    $region65: #{tpu_custom_call.1} parent=1 // pred_fallthru
      _
    %2436 = vsyncpa [#allocation3], 1
    %2437 = vsyncpa [#allocation6], 1
    %2438 = vsyncpa [#allocation9], 1
    %2439 = vsyncpa [#allocation4], 1

// kernel: tpu_custom_call.1
$region0: #{tpu_custom_call.1}
  #allocation0 [shape = 'u32[]', space=smem, size = 0x4, offset = 0x4, fixed_abs, tag = 'smem constant byte address 0x4 - core index']
  #allocation1 [shape = 'u32[144,128]{1,0:T(1,128)}', space=vmem, size = 0x12000, scoped, tag = 'internal scratch']
  %s0 = inlined_call_operand.hbm [shape: bf16[8,1024], index: 0, kind: input, shape index: {}]
  %s1 = inlined_call_operand.hbm [shape: bf16[1024,256], index: 1, kind: input, shape index: {}]
  %s2 = inlined_call_operand.vmem [shape: f32[1,256], index: 2, kind: input, shape index: {}]
  %s3 = inlined_call_operand.hbm [shape: bf16[256,128], index: 3, kind: input, shape index: {}]
  %s4 = inlined_call_operand.vmem [shape: f32[1,128], index: 4, kind: input, shape index: {}]
  %s5 = inlined_call_operand.hbm [shape: bf16[128,256], index: 5, kind: input, shape index: {}]
  %s6 = inlined_call_operand.vmem [shape: f32[1,256], index: 6, kind: input, shape index: {}]
  %s7 = inlined_call_operand.hbm [shape: bf16[256,1024], index: 7, kind: input, shape index: {}]
  %s8 = inlined_call_operand.vmem [shape: f32[1,1024], index: 8, kind: input, shape index: {}]
  %s9 = inlined_call_operand.hbm [shape: f32[8,1024], index: 9, kind: output, shape index: {}]
  %s10 = sld [smem:[#allocation0]]
  $region66: #{tpu_custom_call.1} parent=0
    _
  %s12 = ssub.s32 1, %s10
  %s13 = scalar_select 0, %s12, %s10
  $region1: #{tpu_custom_call.1} parent=0
    #allocation2 [shape = 'u8[16384]{0}', space=vmem, size = 0x4000, scoped, tag = 'input window, operand 0, single buffered']
    #allocation3 [shape = 's32[1]{0}', space=sflag, size = 0x4, scoped, tag = 'scoped memory for tpu_custom_call.1']
    #allocation4 [shape = 's32[1]{0}', space=sflag, size = 0x4, scoped, tag = 'scoped memory for tpu_custom_call.1']
    #allocation5 [shape = 'u8[524288]{0}', space=vmem, size = 0x80000, scoped, tag = 'input window, operand 1, single buffered']
    #allocation6 [shape = 's32[1]{0}', space=sflag, size = 0x4, scoped, tag = 'scoped memory for tpu_custom_call.1']
    #allocation7 [shape = 'u8[65536]{0}', space=vmem, size = 0x10000, scoped, tag = 'input window, operand 3, single buffered']
    #allocation8 [shape = 'u8[65536]{0}', space=vmem, size = 0x10000, scoped, tag = 'input window, operand 5, single buffered']
    #allocation9 [shape = 's32[1]{0}', space=sflag, size = 0x4, scoped, tag = 'scoped memory for tpu_custom_call.1']
    #allocation10 [shape = 'u8[524288]{0}', space=vmem, size = 0x80000, scoped, tag = 'input window, operand 7, single buffered']
    #allocation11 [shape = 'u8[32768]{0}', space=vmem, size = 0x8000, scoped, tag = 'output window, operand 0, single buffered']
    %14 = vsyncpa [#allocation3], 0
    %15 = vsyncpa [#allocation6], 0
    %16 = vsyncpa [#allocation9], 0
    %17 = vsyncpa [#allocation4], 0
    // Predicated region
    $region2: #{tpu_custom_call.1} parent=1 // pred_check
      _
    $region3: #{tpu_custom_call.1} parent=1 // pred_check_branch
      %19 = sbr.rel (0) target = $region5
    $region4: #{tpu_custom_call.1} parent=1 // pred_region
      %s21 = ssub.s32 512, 512
      %22 = vsyncadd [#allocation3], %s21
      %s24 = sshll.u32 [#allocation2], 4
      %s25 = int_to_ptr.vmem [resolvable:$true] %s24
      %27 = dma.hbm_to_vmem [thread:$0]  %s0, 512, %s25, [#allocation3]
    $region5: #{tpu_custom_call.1} parent=1 // pred_fallthru
      _
    // Predicated region
    $region6: #{tpu_custom_call.1} parent=1 // pred_check
      _
    $region7: #{tpu_custom_call.1} parent=1 // pred_check_branch
      %29 = sbr.rel (0) target = $region9
    $region8: #{tpu_custom_call.1} parent=1 // pred_region
      %s31 = ssub.s32 16384, 16384
      %32 = vsyncadd [#allocation6], %s31
      %s33 = sshll.u32 [#allocation5], 4
      %s34 = int_to_ptr.vmem [resolvable:$true] %s33
      %39 = dma.hbm_to_vmem [thread:$0]  %s1, 16384, %s34, [#allocation6], 128, 128, 8
    $region9: #{tpu_custom_call.1} parent=1 // pred_fallthru
      _
    // Predicated region
    $region10: #{tpu_custom_call.1} parent=1 // pred_check
      _
    $region11: #{tpu_custom_call.1} parent=1 // pred_check_branch
      %41 = sbr.rel (0) target = $region13
    $region12: #{tpu_custom_call.1} parent=1 // pred_region
      _
    $region13: #{tpu_custom_call.1} parent=1 // pred_fallthru
      _
    // Predicated region
    $region14: #{tpu_custom_call.1} parent=1 // pred_check
      _
    $region15: #{tpu_custom_call.1} parent=1 // pred_check_branch
      %43 = sbr.rel (0) target = $region17
    $region16: #{tpu_custom_call.1} parent=1 // pred_region
      %s45 = ssub.s32 2048, 2048
      %46 = vsyncadd [#allocation6], %s45
      %s47 = sshll.u32 [#allocation7], 4
      %s48 = int_to_ptr.vmem [resolvable:$true] %s47
      %53 = dma.hbm_to_vmem [thread:$0]  %s3, 2048, %s48, [#allocation6], 64, 64, 4
    $region17: #{tpu_custom_call.1} parent=1 // pred_fallthru
      _
    // Predicated region
    $region18: #{tpu_custom_call.1} parent=1 // pred_check
      _
    $region19: #{tpu_custom_call.1} parent=1 // pred_check_branch
      %55 = sbr.rel (0) target = $region21
    $region20: #{tpu_custom_call.1} parent=1 // pred_region
      _
    $region21: #{tpu_custom_call.1} parent=1 // pred_fallthru
      _
    // Predicated region
    $region22: #{tpu_custom_call.1} parent=1 // pred_check
      _
    $region23: #{tpu_custom_call.1} parent=1 // pred_check_branch
      %57 = sbr.rel (0) target = $region25
    $region24: #{tpu_custom_call.1} parent=1 // pred_region
      %s59 = ssub.s32 2048, 2048
      %60 = vsyncadd [#allocation9], %s59
      %s61 = sshll.u32 [#allocation8], 4
      %s62 = int_to_ptr.vmem [resolvable:$true] %s61
      %67 = dma.hbm_to_vmem [thread:$0]  %s5, 2048, %s62, [#allocation9], 128, 128, 8
    $region25: #{tpu_custom_call.1} parent=1 // pred_fallthru
      _
    // Predicated region
    $region26: #{tpu_custom_call.1} parent=1 // pred_check
      _
    $region27: #{tpu_custom_call.1} parent=1 // pred_check_branch
      %69 = sbr.rel (0) target = $region29
    $region28: #{tpu_custom_call.1} parent=1 // pred_region
      _
    $region29: #{tpu_custom_call.1} parent=1 // pred_fallthru
      _
    // Predicated region
    $region30: #{tpu_custom_call.1} parent=1 // pred_check
      _
    $region31: #{tpu_custom_call.1} parent=1 // pred_check_branch
      %71 = sbr.rel (0) target = $region33
    $region32: #{tpu_custom_call.1} parent=1 // pred_region
      %s73 = ssub.s32 16384, 16384
      %74 = vsyncadd [#allocation9], %s73
      %s75 = sshll.u32 [#allocation10], 4
      %s76 = int_to_ptr.vmem [resolvable:$true] %s75
      %81 = dma.hbm_to_vmem [thread:$0]  %s7, 16384, %s76, [#allocation9], 512, 512, 32
    $region33: #{tpu_custom_call.1} parent=1 // pred_fallthru
      _
    // Predicated region
    $region34: #{tpu_custom_call.1} parent=1 // pred_check
      _
    $region35: #{tpu_custom_call.1} parent=1 // pred_check_branch
      %83 = sbr.rel (0) target = $region37
    $region36: #{tpu_custom_call.1} parent=1 // pred_region
      _
    $region37: #{tpu_custom_call.1} parent=1 // pred_fallthru
      _
    // Predicated region
    $region38: #{tpu_custom_call.1} parent=1 // pred_check
      _
    $region39: #{tpu_custom_call.1} parent=1 // pred_check_branch
      %85 = sbr.rel (0) target = $region41
    $region40: #{tpu_custom_call.1} parent=1 // pred_region
      %86 = dma.done [#allocation3], 512
    $region41: #{tpu_custom_call.1} parent=1 // pred_fallthru
      _
    // Predicated region
    $region42: #{tpu_custom_call.1} parent=1 // pred_check
      _
    $region43: #{tpu_custom_call.1} parent=1 // pred_check_branch
      %88 = sbr.rel (0) target = $region45
    $region44: #{tpu_custom_call.1} parent=1 // pred_region
      %89 = dma.done [#allocation6], 16384
    $region45: #{tpu_custom_call.1} parent=1 // pred_fallthru
      _
    // Predicated region
    $region46: #{tpu_custom_call.1} parent=1 // pred_check
      _
    $region47: #{tpu_custom_call.1} parent=1 // pred_check_branch
      %91 = sbr.rel (0) target = $region49
    $region48: #{tpu_custom_call.1} parent=1 // pred_region
      %92 = dma.done [#allocation6], 2048
    $region49: #{tpu_custom_call.1} parent=1 // pred_fallthru
      _
    // Predicated region
    $region50: #{tpu_custom_call.1} parent=1 // pred_check
      _
    $region51: #{tpu_custom_call.1} parent=1 // pred_check_branch
      %94 = sbr.rel (0) target = $region53
    $region52: #{tpu_custom_call.1} parent=1 // pred_region
      %95 = dma.done [#allocation9], 2048
    $region53: #{tpu_custom_call.1} parent=1 // pred_fallthru
      _
    // Predicated region
    $region54: #{tpu_custom_call.1} parent=1 // pred_check
      _
    $region55: #{tpu_custom_call.1} parent=1 // pred_check_branch
      %97 = sbr.rel (0) target = $region57
    $region56: #{tpu_custom_call.1} parent=1 // pred_region
      %98 = dma.done [#allocation9], 16384
    $region57: #{tpu_custom_call.1} parent=1 // pred_fallthru
      _
    %v100 = vld [vmem:[#allocation2] sm:$0xff]
    %v101 = vld [vmem:[#allocation2 + $0x8] sm:$0xff]
    %v102 = vld [vmem:[#allocation2 + $0x10] sm:$0xff]
    %v103 = vld [vmem:[#allocation2 + $0x18] sm:$0xff]
    %v104 = vld [vmem:[#allocation5] sm:$0xff]
    %v105 = vld [vmem:[#allocation5 + $0x8] sm:$0xff]
    %v106 = vld [vmem:[#allocation5 + $0x10] sm:$0xff]
    %v107 = vld [vmem:[#allocation5 + $0x18] sm:$0xff]
    %v108 = vld [vmem:[#allocation5 + $0x20] sm:$0xff]
    %v109 = vld [vmem:[#allocation5 + $0x28] sm:$0xff]
    %v110 = vld [vmem:[#allocation5 + $0x30] sm:$0xff]
    %v111 = vld [vmem:[#allocation5 + $0x38] sm:$0xff]
    %v112 = vld [vmem:[#allocation5 + $0x40] sm:$0xff]
    %v113 = vld [vmem:[#allocation5 + $0x48] sm:$0xff]
    %v114 = vld [vmem:[#allocation5 + $0x50] sm:$0xff]
    %v115 = vld [vmem:[#allocation5 + $0x58] sm:$0xff]
    %v116 = vld [vmem:[#allocation5 + $0x60] sm:$0xff]
    %v117 = vld [vmem:[#allocation5 + $0x68] sm:$0xff]
    %v118 = vld [vmem:[#allocation5 + $0x70] sm:$0xff]
    %v119 = vld [vmem:[#allocation5 + $0x78] sm:$0xff]
    %v120 = vld [vmem:[#allocation5 + $0x80] sm:$0xff]
    %v121 = vld [vmem:[#allocation5 + $0x88] sm:$0xff]
    %v122 = vld [vmem:[#allocation5 + $0x90] sm:$0xff]
    %v123 = vld [vmem:[#allocation5 + $0x98] sm:$0xff]
    %v124 = vld [vmem:[#allocation5 + $0xa0] sm:$0xff]
    %v125 = vld [vmem:[#allocation5 + $0xa8] sm:$0xff]
    %v126 = vld [vmem:[#allocation5 + $0xb0] sm:$0xff]
    %v127 = vld [vmem:[#allocation5 + $0xb8] sm:$0xff]
    %v128 = vld [vmem:[#allocation5 + $0xc0] sm:$0xff]
    %v129 = vld [vmem:[#allocation5 + $0xc8] sm:$0xff]
    %v130 = vld [vmem:[#allocation5 + $0xd0] sm:$0xff]
    %v131 = vld [vmem:[#allocation5 + $0xd8] sm:$0xff]
    %v132 = vld [vmem:[#allocation5 + $0xe0] sm:$0xff]
    %v133 = vld [vmem:[#allocation5 + $0xe8] sm:$0xff]
    %v134 = vld [vmem:[#allocation5 + $0xf0] sm:$0xff]
    %v135 = vld [vmem:[#allocation5 + $0xf8] sm:$0xff]
    %v136 = vld [vmem:[#allocation5 + $0x100] sm:$0xff]
    %v137 = vld [vmem:[#allocation5 + $0x108] sm:$0xff]
    %v138 = vld [vmem:[#allocation5 + $0x110] sm:$0xff]
    %v139 = vld [vmem:[#allocation5 + $0x118] sm:$0xff]
    %v140 = vld [vmem:[#allocation5 + $0x120] sm:$0xff]
    %v141 = vld [vmem:[#allocation5 + $0x128] sm:$0xff]
    %v142 = vld [vmem:[#allocation5 + $0x130] sm:$0xff]
    %v143 = vld [vmem:[#allocation5 + $0x138] sm:$0xff]
    %v144 = vld [vmem:[#allocation5 + $0x140] sm:$0xff]
    %v145 = vld [vmem:[#allocation5 + $0x148] sm:$0xff]
    %v146 = vld [vmem:[#allocation5 + $0x150] sm:$0xff]
    %v147 = vld [vmem:[#allocation5 + $0x158] sm:$0xff]
    %v148 = vld [vmem:[#allocation5 + $0x160] sm:$0xff]
    %v149 = vld [vmem:[#allocation5 + $0x168] sm:$0xff]
    %v150 = vld [vmem:[#allocation5 + $0x170] sm:$0xff]
    %v151 = vld [vmem:[#allocation5 + $0x178] sm:$0xff]
    %v152 = vld [vmem:[#allocation5 + $0x180] sm:$0xff]
    %v153 = vld [vmem:[#allocation5 + $0x188] sm:$0xff]
    %v154 = vld [vmem:[#allocation5 + $0x190] sm:$0xff]
    %v155 = vld [vmem:[#allocation5 + $0x198] sm:$0xff]
    %v156 = vld [vmem:[#allocation5 + $0x1a0] sm:$0xff]
    %v157 = vld [vmem:[#allocation5 + $0x1a8] sm:$0xff]
    %v158 = vld [vmem:[#allocation5 + $0x1b0] sm:$0xff]
    %v159 = vld [vmem:[#allocation5 + $0x1b8] sm:$0xff]
    %v160 = vld [vmem:[#allocation5 + $0x1c0] sm:$0xff]
    %v161 = vld [vmem:[#allocation5 + $0x1c8] sm:$0xff]
    %v162 = vld [vmem:[#allocation5 + $0x1d0] sm:$0xff]
    %v163 = vld [vmem:[#allocation5 + $0x1d8] sm:$0xff]
    %v164 = vld [vmem:[#allocation5 + $0x1e0] sm:$0xff]
    %v165 = vld [vmem:[#allocation5 + $0x1e8] sm:$0xff]
    %v166 = vld [vmem:[#allocation5 + $0x1f0] sm:$0xff]
    %v167 = vld [vmem:[#allocation5 + $0x1f8] sm:$0xff]
    %v168 = vld [vmem:[#allocation5 + $0x200] sm:$0xff]
    %v169 = vld [vmem:[#allocation5 + $0x208] sm:$0xff]
    %v170 = vld [vmem:[#allocation5 + $0x210] sm:$0xff]
    %v171 = vld [vmem:[#allocation5 + $0x218] sm:$0xff]
    %v172 = vld [vmem:[#allocation5 + $0x220] sm:$0xff]
    %v173 = vld [vmem:[#allocation5 + $0x228] sm:$0xff]
    %v174 = vld [vmem:[#allocation5 + $0x230] sm:$0xff]
    %v175 = vld [vmem:[#allocation5 + $0x238] sm:$0xff]
    %v176 = vld [vmem:[#allocation5 + $0x240] sm:$0xff]
    %v177 = vld [vmem:[#allocation5 + $0x248] sm:$0xff]
    %v178 = vld [vmem:[#allocation5 + $0x250] sm:$0xff]
    %v179 = vld [vmem:[#allocation5 + $0x258] sm:$0xff]
    %v180 = vld [vmem:[#allocation5 + $0x260] sm:$0xff]
    %v181 = vld [vmem:[#allocation5 + $0x268] sm:$0xff]
    %v182 = vld [vmem:[#allocation5 + $0x270] sm:$0xff]
    %v183 = vld [vmem:[#allocation5 + $0x278] sm:$0xff]
    %v184 = vld [vmem:[#allocation5 + $0x280] sm:$0xff]
    %v185 = vld [vmem:[#allocation5 + $0x288] sm:$0xff]
    %v186 = vld [vmem:[#allocation5 + $0x290] sm:$0xff]
    %v187 = vld [vmem:[#allocation5 + $0x298] sm:$0xff]
    %v188 = vld [vmem:[#allocation5 + $0x2a0] sm:$0xff]
    %v189 = vld [vmem:[#allocation5 + $0x2a8] sm:$0xff]
    %v190 = vld [vmem:[#allocation5 + $0x2b0] sm:$0xff]
    %v191 = vld [vmem:[#allocation5 + $0x2b8] sm:$0xff]
    %v192 = vld [vmem:[#allocation5 + $0x2c0] sm:$0xff]
    %v193 = vld [vmem:[#allocation5 + $0x2c8] sm:$0xff]
    %v194 = vld [vmem:[#allocation5 + $0x2d0] sm:$0xff]
    %v195 = vld [vmem:[#allocation5 + $0x2d8] sm:$0xff]
    %v196 = vld [vmem:[#allocation5 + $0x2e0] sm:$0xff]
    %v197 = vld [vmem:[#allocation5 + $0x2e8] sm:$0xff]
    %v198 = vld [vmem:[#allocation5 + $0x2f0] sm:$0xff]
    %v199 = vld [vmem:[#allocation5 + $0x2f8] sm:$0xff]
    %v200 = vld [vmem:[#allocation5 + $0x300] sm:$0xff]
    %v201 = vld [vmem:[#allocation5 + $0x308] sm:$0xff]
    %v202 = vld [vmem:[#allocation5 + $0x310] sm:$0xff]
    %v203 = vld [vmem:[#allocation5 + $0x318] sm:$0xff]
    %v204 = vld [vmem:[#allocation5 + $0x320] sm:$0xff]
    %v205 = vld [vmem:[#allocation5 + $0x328] sm:$0xff]
    %v206 = vld [vmem:[#allocation5 + $0x330] sm:$0xff]
    %v207 = vld [vmem:[#allocation5 + $0x338] sm:$0xff]
    %v208 = vld [vmem:[#allocation5 + $0x340] sm:$0xff]
    %v209 = vld [vmem:[#allocation5 + $0x348] sm:$0xff]
    %v210 = vld [vmem:[#allocation5 + $0x350] sm:$0xff]
    %v211 = vld [vmem:[#allocation5 + $0x358] sm:$0xff]
    %v212 = vld [vmem:[#allocation5 + $0x360] sm:$0xff]
    %v213 = vld [vmem:[#allocation5 + $0x368] sm:$0xff]
    %v214 = vld [vmem:[#allocation5 + $0x370] sm:$0xff]
    %v215 = vld [vmem:[#allocation5 + $0x378] sm:$0xff]
    %v216 = vld [vmem:[#allocation5 + $0x380] sm:$0xff]
    %v217 = vld [vmem:[#allocation5 + $0x388] sm:$0xff]
    %v218 = vld [vmem:[#allocation5 + $0x390] sm:$0xff]
    %v219 = vld [vmem:[#allocation5 + $0x398] sm:$0xff]
    %v220 = vld [vmem:[#allocation5 + $0x3a0] sm:$0xff]
    %v221 = vld [vmem:[#allocation5 + $0x3a8] sm:$0xff]
    %v222 = vld [vmem:[#allocation5 + $0x3b0] sm:$0xff]
    %v223 = vld [vmem:[#allocation5 + $0x3b8] sm:$0xff]
    %v224 = vld [vmem:[#allocation5 + $0x3c0] sm:$0xff]
    %v225 = vld [vmem:[#allocation5 + $0x3c8] sm:$0xff]
    %v226 = vld [vmem:[#allocation5 + $0x3d0] sm:$0xff]
    %v227 = vld [vmem:[#allocation5 + $0x3d8] sm:$0xff]
    %v228 = vld [vmem:[#allocation5 + $0x3e0] sm:$0xff]
    %v229 = vld [vmem:[#allocation5 + $0x3e8] sm:$0xff]
    %v230 = vld [vmem:[#allocation5 + $0x3f0] sm:$0xff]
    %v231 = vld [vmem:[#allocation5 + $0x3f8] sm:$0xff]
    %v232 = vld [vmem:[%s2] sm:$0x3]
    %v234 = vlaneseq
    %v235 = vshrl.u32 %v234, 7
    %v236 = vsub.s32 0, %v235
    %v237 = vrot.slane %v232, %v236
    %v238 = vlaneseq
    %v239 = vshrl.u32 %v238, 7
    %v240 = vsub.s32 1, %v239
    %v241 = vrot.slane %v232, %v240
    %v248 = vunpack.c.l.b16 %v100
    %v249 = vunpack.c.h.b16 %v100
    %v250 = vunpack.c.l.b16 %v101
    %v251 = vunpack.c.h.b16 %v101
    %v252 = vunpack.c.l.b16 %v102
    %v253 = vunpack.c.h.b16 %v102
    %v254 = vunpack.c.l.b16 %v103
    %v255 = vunpack.c.h.b16 %v103
    %v256 = vpack.c.b16 %v248, %v248
    %v257 = vpack.c.b16 %v249, %v249
    %v258 = vpack.c.b16 %v250, %v250
    %v259 = vpack.c.b16 %v251, %v251
    %v260 = vpack.c.b16 %v252, %v252
    %v261 = vpack.c.b16 %v253, %v253
    %v262 = vpack.c.b16 %v254, %v254
    %v263 = vpack.c.b16 %v255, %v255
    %v400 = vunpack.c.l.b16 %v104
    %v401 = vunpack.c.h.b16 %v104
    %v402 = vunpack.c.l.b16 %v105
    %v403 = vunpack.c.h.b16 %v105
    %v404 = vunpack.c.l.b16 %v106
    %v405 = vunpack.c.h.b16 %v106
    %v406 = vunpack.c.l.b16 %v107
    %v407 = vunpack.c.h.b16 %v107
    %v408 = vunpack.c.l.b16 %v108
    %v409 = vunpack.c.h.b16 %v108
    %v410 = vunpack.c.l.b16 %v109
    %v411 = vunpack.c.h.b16 %v109
    %v412 = vunpack.c.l.b16 %v110
    %v413 = vunpack.c.h.b16 %v110
    %v414 = vunpack.c.l.b16 %v111
    %v415 = vunpack.c.h.b16 %v111
    %v416 = vunpack.c.l.b16 %v112
    %v417 = vunpack.c.h.b16 %v112
    %v418 = vunpack.c.l.b16 %v113
    %v419 = vunpack.c.h.b16 %v113
    %v420 = vunpack.c.l.b16 %v114
    %v421 = vunpack.c.h.b16 %v114
    %v422 = vunpack.c.l.b16 %v115
    %v423 = vunpack.c.h.b16 %v115
    %v424 = vunpack.c.l.b16 %v116
    %v425 = vunpack.c.h.b16 %v116
    %v426 = vunpack.c.l.b16 %v117
    %v427 = vunpack.c.h.b16 %v117
    %v428 = vunpack.c.l.b16 %v118
    %v429 = vunpack.c.h.b16 %v118
    %v430 = vunpack.c.l.b16 %v119
    %v431 = vunpack.c.h.b16 %v119
    %v432 = vunpack.c.l.b16 %v120
    %v433 = vunpack.c.h.b16 %v120
    %v434 = vunpack.c.l.b16 %v121
    %v435 = vunpack.c.h.b16 %v121
    %v436 = vunpack.c.l.b16 %v122
    %v437 = vunpack.c.h.b16 %v122
    %v438 = vunpack.c.l.b16 %v123
    %v439 = vunpack.c.h.b16 %v123
    %v440 = vunpack.c.l.b16 %v124
    %v441 = vunpack.c.h.b16 %v124
    %v442 = vunpack.c.l.b16 %v125
    %v443 = vunpack.c.h.b16 %v125
    %v444 = vunpack.c.l.b16 %v126
    %v445 = vunpack.c.h.b16 %v126
    %v446 = vunpack.c.l.b16 %v127
    %v447 = vunpack.c.h.b16 %v127
    %v448 = vunpack.c.l.b16 %v128
    %v449 = vunpack.c.h.b16 %v128
    %v450 = vunpack.c.l.b16 %v129
    %v451 = vunpack.c.h.b16 %v129
    %v452 = vunpack.c.l.b16 %v130
    %v453 = vunpack.c.h.b16 %v130
    %v454 = vunpack.c.l.b16 %v131
    %v455 = vunpack.c.h.b16 %v131
    %v456 = vunpack.c.l.b16 %v132
    %v457 = vunpack.c.h.b16 %v132
    %v458 = vunpack.c.l.b16 %v133
    %v459 = vunpack.c.h.b16 %v133
    %v460 = vunpack.c.l.b16 %v134
    %v461 = vunpack.c.h.b16 %v134
    %v462 = vunpack.c.l.b16 %v135
    %v463 = vunpack.c.h.b16 %v135
    %v464 = vunpack.c.l.b16 %v136
    %v465 = vunpack.c.h.b16 %v136
    %v466 = vunpack.c.l.b16 %v137
    %v467 = vunpack.c.h.b16 %v137
    %v468 = vunpack.c.l.b16 %v138
    %v469 = vunpack.c.h.b16 %v138
    %v470 = vunpack.c.l.b16 %v139
    %v471 = vunpack.c.h.b16 %v139
    %v472 = vunpack.c.l.b16 %v140
    %v473 = vunpack.c.h.b16 %v140
    %v474 = vunpack.c.l.b16 %v141
    %v475 = vunpack.c.h.b16 %v141
    %v476 = vunpack.c.l.b16 %v142
    %v477 = vunpack.c.h.b16 %v142
    %v478 = vunpack.c.l.b16 %v143
    %v479 = vunpack.c.h.b16 %v143
    %v480 = vunpack.c.l.b16 %v144
    %v481 = vunpack.c.h.b16 %v144
    %v482 = vunpack.c.l.b16 %v145
    %v483 = vunpack.c.h.b16 %v145
    %v484 = vunpack.c.l.b16 %v146
    %v485 = vunpack.c.h.b16 %v146
    %v486 = vunpack.c.l.b16 %v147
    %v487 = vunpack.c.h.b16 %v147
    %v488 = vunpack.c.l.b16 %v148
    %v489 = vunpack.c.h.b16 %v148
    %v490 = vunpack.c.l.b16 %v149
    %v491 = vunpack.c.h.b16 %v149
    %v492 = vunpack.c.l.b16 %v150
    %v493 = vunpack.c.h.b16 %v150
    %v494 = vunpack.c.l.b16 %v151
    %v495 = vunpack.c.h.b16 %v151
    %v496 = vunpack.c.l.b16 %v152
    %v497 = vunpack.c.h.b16 %v152
    %v498 = vunpack.c.l.b16 %v153
    %v499 = vunpack.c.h.b16 %v153
    %v500 = vunpack.c.l.b16 %v154
    %v501 = vunpack.c.h.b16 %v154
    %v502 = vunpack.c.l.b16 %v155
    %v503 = vunpack.c.h.b16 %v155
    %v504 = vunpack.c.l.b16 %v156
    %v505 = vunpack.c.h.b16 %v156
    %v506 = vunpack.c.l.b16 %v157
    %v507 = vunpack.c.h.b16 %v157
    %v508 = vunpack.c.l.b16 %v158
    %v509 = vunpack.c.h.b16 %v158
    %v510 = vunpack.c.l.b16 %v159
    %v511 = vunpack.c.h.b16 %v159
    %v512 = vunpack.c.l.b16 %v160
    %v513 = vunpack.c.h.b16 %v160
    %v514 = vunpack.c.l.b16 %v161
    %v515 = vunpack.c.h.b16 %v161
    %v516 = vunpack.c.l.b16 %v162
    %v517 = vunpack.c.h.b16 %v162
    %v518 = vunpack.c.l.b16 %v163
    %v519 = vunpack.c.h.b16 %v163
    %v520 = vunpack.c.l.b16 %v164
    %v521 = vunpack.c.h.b16 %v164
    %v522 = vunpack.c.l.b16 %v165
    %v523 = vunpack.c.h.b16 %v165
    %v524 = vunpack.c.l.b16 %v166
    %v525 = vunpack.c.h.b16 %v166
    %v526 = vunpack.c.l.b16 %v167
    %v527 = vunpack.c.h.b16 %v167
    %v528 = vunpack.c.l.b16 %v168
    %v529 = vunpack.c.h.b16 %v168
    %v530 = vunpack.c.l.b16 %v169
    %v531 = vunpack.c.h.b16 %v169
    %v532 = vunpack.c.l.b16 %v170
    %v533 = vunpack.c.h.b16 %v170
    %v534 = vunpack.c.l.b16 %v171
    %v535 = vunpack.c.h.b16 %v171
    %v536 = vunpack.c.l.b16 %v172
    %v537 = vunpack.c.h.b16 %v172
    %v538 = vunpack.c.l.b16 %v173
    %v539 = vunpack.c.h.b16 %v173
    %v540 = vunpack.c.l.b16 %v174
    %v541 = vunpack.c.h.b16 %v174
    %v542 = vunpack.c.l.b16 %v175
    %v543 = vunpack.c.h.b16 %v175
    %v544 = vunpack.c.l.b16 %v176
    %v545 = vunpack.c.h.b16 %v176
    %v546 = vunpack.c.l.b16 %v177
    %v547 = vunpack.c.h.b16 %v177
    %v548 = vunpack.c.l.b16 %v178
    %v549 = vunpack.c.h.b16 %v178
    %v550 = vunpack.c.l.b16 %v179
    %v551 = vunpack.c.h.b16 %v179
    %v552 = vunpack.c.l.b16 %v180
    %v553 = vunpack.c.h.b16 %v180
    %v554 = vunpack.c.l.b16 %v181
    %v555 = vunpack.c.h.b16 %v181
    %v556 = vunpack.c.l.b16 %v182
    %v557 = vunpack.c.h.b16 %v182
    %v558 = vunpack.c.l.b16 %v183
    %v559 = vunpack.c.h.b16 %v183
    %v560 = vunpack.c.l.b16 %v184
    %v561 = vunpack.c.h.b16 %v184
    %v562 = vunpack.c.l.b16 %v185
    %v563 = vunpack.c.h.b16 %v185
    %v564 = vunpack.c.l.b16 %v186
    %v565 = vunpack.c.h.b16 %v186
    %v566 = vunpack.c.l.b16 %v187
    %v567 = vunpack.c.h.b16 %v187
    %v568 = vunpack.c.l.b16 %v188
    %v569 = vunpack.c.h.b16 %v188
    %v570 = vunpack.c.l.b16 %v189
    %v571 = vunpack.c.h.b16 %v189
    %v572 = vunpack.c.l.b16 %v190
    %v573 = vunpack.c.h.b16 %v190
    %v574 = vunpack.c.l.b16 %v191
    %v575 = vunpack.c.h.b16 %v191
    %v576 = vunpack.c.l.b16 %v192
    %v577 = vunpack.c.h.b16 %v192
    %v578 = vunpack.c.l.b16 %v193
    %v579 = vunpack.c.h.b16 %v193
    %v580 = vunpack.c.l.b16 %v194
    %v581 = vunpack.c.h.b16 %v194
    %v582 = vunpack.c.l.b16 %v195
    %v583 = vunpack.c.h.b16 %v195
    %v584 = vunpack.c.l.b16 %v196
    %v585 = vunpack.c.h.b16 %v196
    %v586 = vunpack.c.l.b16 %v197
    %v587 = vunpack.c.h.b16 %v197
    %v588 = vunpack.c.l.b16 %v198
    %v589 = vunpack.c.h.b16 %v198
    %v590 = vunpack.c.l.b16 %v199
    %v591 = vunpack.c.h.b16 %v199
    %v592 = vunpack.c.l.b16 %v200
    %v593 = vunpack.c.h.b16 %v200
    %v594 = vunpack.c.l.b16 %v201
    %v595 = vunpack.c.h.b16 %v201
    %v596 = vunpack.c.l.b16 %v202
    %v597 = vunpack.c.h.b16 %v202
    %v598 = vunpack.c.l.b16 %v203
    %v599 = vunpack.c.h.b16 %v203
    %v600 = vunpack.c.l.b16 %v204
    %v601 = vunpack.c.h.b16 %v204
    %v602 = vunpack.c.l.b16 %v205
    %v603 = vunpack.c.h.b16 %v205
    %v604 = vunpack.c.l.b16 %v206
    %v605 = vunpack.c.h.b16 %v206
    %v606 = vunpack.c.l.b16 %v207
    %v607 = vunpack.c.h.b16 %v207
    %v608 = vunpack.c.l.b16 %v208
    %v609 = vunpack.c.h.b16 %v208
    %v610 = vunpack.c.l.b16 %v209
    %v611 = vunpack.c.h.b16 %v209
    %v612 = vunpack.c.l.b16 %v210
    %v613 = vunpack.c.h.b16 %v210
    %v614 = vunpack.c.l.b16 %v211
    %v615 = vunpack.c.h.b16 %v211
    %v616 = vunpack.c.l.b16 %v212
    %v617 = vunpack.c.h.b16 %v212
    %v618 = vunpack.c.l.b16 %v213
    %v619 = vunpack.c.h.b16 %v213
    %v620 = vunpack.c.l.b16 %v214
    %v621 = vunpack.c.h.b16 %v214
    %v622 = vunpack.c.l.b16 %v215
    %v623 = vunpack.c.h.b16 %v215
    %v624 = vunpack.c.l.b16 %v216
    %v625 = vunpack.c.h.b16 %v216
    %v626 = vunpack.c.l.b16 %v217
    %v627 = vunpack.c.h.b16 %v217
    %v628 = vunpack.c.l.b16 %v218
    %v629 = vunpack.c.h.b16 %v218
    %v630 = vunpack.c.l.b16 %v219
    %v631 = vunpack.c.h.b16 %v219
    %v632 = vunpack.c.l.b16 %v220
    %v633 = vunpack.c.h.b16 %v220
    %v634 = vunpack.c.l.b16 %v221
    %v635 = vunpack.c.h.b16 %v221
    %v636 = vunpack.c.l.b16 %v222
    %v637 = vunpack.c.h.b16 %v222
    %v638 = vunpack.c.l.b16 %v223
    %v639 = vunpack.c.h.b16 %v223
    %v640 = vunpack.c.l.b16 %v224
    %v641 = vunpack.c.h.b16 %v224
    %v642 = vunpack.c.l.b16 %v225
    %v643 = vunpack.c.h.b16 %v225
    %v644 = vunpack.c.l.b16 %v226
    %v645 = vunpack.c.h.b16 %v226
    %v646 = vunpack.c.l.b16 %v227
    %v647 = vunpack.c.h.b16 %v227
    %v648 = vunpack.c.l.b16 %v228
    %v649 = vunpack.c.h.b16 %v228
    %v650 = vunpack.c.l.b16 %v229
    %v651 = vunpack.c.h.b16 %v229
    %v652 = vunpack.c.l.b16 %v230
    %v653 = vunpack.c.h.b16 %v230
    %v654 = vunpack.c.l.b16 %v231
    %v655 = vunpack.c.h.b16 %v231
    %v656 = vpack.c.b16 %v402, %v400
    %v657 = vpack.c.b16 %v403, %v401
    %v658 = vpack.c.b16 %v406, %v404
    %v659 = vpack.c.b16 %v407, %v405
    %v660 = vpack.c.b16 %v410, %v408
    %v661 = vpack.c.b16 %v411, %v409
    %v662 = vpack.c.b16 %v414, %v412
    %v663 = vpack.c.b16 %v415, %v413
    %v664 = vpack.c.b16 %v418, %v416
    %v665 = vpack.c.b16 %v419, %v417
    %v666 = vpack.c.b16 %v422, %v420
    %v667 = vpack.c.b16 %v423, %v421
    %v668 = vpack.c.b16 %v426, %v424
    %v669 = vpack.c.b16 %v427, %v425
    %v670 = vpack.c.b16 %v430, %v428
    %v671 = vpack.c.b16 %v431, %v429
    %v672 = vpack.c.b16 %v434, %v432
    %v673 = vpack.c.b16 %v435, %v433
    %v674 = vpack.c.b16 %v438, %v436
    %v675 = vpack.c.b16 %v439, %v437
    %v676 = vpack.c.b16 %v442, %v440
    %v677 = vpack.c.b16 %v443, %v441
    %v678 = vpack.c.b16 %v446, %v444
    %v679 = vpack.c.b16 %v447, %v445
    %v680 = vpack.c.b16 %v450, %v448
    %v681 = vpack.c.b16 %v451, %v449
    %v682 = vpack.c.b16 %v454, %v452
    %v683 = vpack.c.b16 %v455, %v453
    %v684 = vpack.c.b16 %v458, %v456
    %v685 = vpack.c.b16 %v459, %v457
    %v686 = vpack.c.b16 %v462, %v460
    %v687 = vpack.c.b16 %v463, %v461
    %v688 = vpack.c.b16 %v466, %v464
    %v689 = vpack.c.b16 %v467, %v465
    %v690 = vpack.c.b16 %v470, %v468
    %v691 = vpack.c.b16 %v471, %v469
    %v692 = vpack.c.b16 %v474, %v472
    %v693 = vpack.c.b16 %v475, %v473
    %v694 = vpack.c.b16 %v478, %v476
    %v695 = vpack.c.b16 %v479, %v477
    %v696 = vpack.c.b16 %v482, %v480
    %v697 = vpack.c.b16 %v483, %v481
    %v698 = vpack.c.b16 %v486, %v484
    %v699 = vpack.c.b16 %v487, %v485
    %v700 = vpack.c.b16 %v490, %v488
    %v701 = vpack.c.b16 %v491, %v489
    %v702 = vpack.c.b16 %v494, %v492
    %v703 = vpack.c.b16 %v495, %v493
    %v704 = vpack.c.b16 %v498, %v496
    %v705 = vpack.c.b16 %v499, %v497
    %v706 = vpack.c.b16 %v502, %v500
    %v707 = vpack.c.b16 %v503, %v501
    %v708 = vpack.c.b16 %v506, %v504
    %v709 = vpack.c.b16 %v507, %v505
    %v710 = vpack.c.b16 %v510, %v508
    %v711 = vpack.c.b16 %v511, %v509
    %v712 = vpack.c.b16 %v514, %v512
    %v713 = vpack.c.b16 %v515, %v513
    %v714 = vpack.c.b16 %v518, %v516
    %v715 = vpack.c.b16 %v519, %v517
    %v716 = vpack.c.b16 %v522, %v520
    %v717 = vpack.c.b16 %v523, %v521
    %v718 = vpack.c.b16 %v526, %v524
    %v719 = vpack.c.b16 %v527, %v525
    %v720 = vpack.c.b16 %v530, %v528
    %v721 = vpack.c.b16 %v531, %v529
    %v722 = vpack.c.b16 %v534, %v532
    %v723 = vpack.c.b16 %v535, %v533
    %v724 = vpack.c.b16 %v538, %v536
    %v725 = vpack.c.b16 %v539, %v537
    %v726 = vpack.c.b16 %v542, %v540
    %v727 = vpack.c.b16 %v543, %v541
    %v728 = vpack.c.b16 %v546, %v544
    %v729 = vpack.c.b16 %v547, %v545
    %v730 = vpack.c.b16 %v550, %v548
    %v731 = vpack.c.b16 %v551, %v549
    %v732 = vpack.c.b16 %v554, %v552
    %v733 = vpack.c.b16 %v555, %v553
    %v734 = vpack.c.b16 %v558, %v556
    %v735 = vpack.c.b16 %v559, %v557
    %v736 = vpack.c.b16 %v562, %v560
    %v737 = vpack.c.b16 %v563, %v561
    %v738 = vpack.c.b16 %v566, %v564
    %v739 = vpack.c.b16 %v567, %v565
    %v740 = vpack.c.b16 %v570, %v568
    %v741 = vpack.c.b16 %v571, %v569
    %v742 = vpack.c.b16 %v574, %v572
    %v743 = vpack.c.b16 %v575, %v573
    %v744 = vpack.c.b16 %v578, %v576
    %v745 = vpack.c.b16 %v579, %v577
    %v746 = vpack.c.b16 %v582, %v580
    %v747 = vpack.c.b16 %v583, %v581
    %v748 = vpack.c.b16 %v586, %v584
    %v749 = vpack.c.b16 %v587, %v585
    %v750 = vpack.c.b16 %v590, %v588
    %v751 = vpack.c.b16 %v591, %v589
    %v752 = vpack.c.b16 %v594, %v592
    %v753 = vpack.c.b16 %v595, %v593
    %v754 = vpack.c.b16 %v598, %v596
    %v755 = vpack.c.b16 %v599, %v597
    %v756 = vpack.c.b16 %v602, %v600
    %v757 = vpack.c.b16 %v603, %v601
    %v758 = vpack.c.b16 %v606, %v604
    %v759 = vpack.c.b16 %v607, %v605
    %v760 = vpack.c.b16 %v610, %v608
    %v761 = vpack.c.b16 %v611, %v609
    %v762 = vpack.c.b16 %v614, %v612
    %v763 = vpack.c.b16 %v615, %v613
    %v764 = vpack.c.b16 %v618, %v616
    %v765 = vpack.c.b16 %v619, %v617
    %v766 = vpack.c.b16 %v622, %v620
    %v767 = vpack.c.b16 %v623, %v621
    %v768 = vpack.c.b16 %v626, %v624
    %v769 = vpack.c.b16 %v627, %v625
    %v770 = vpack.c.b16 %v630, %v628
    %v771 = vpack.c.b16 %v631, %v629
    %v772 = vpack.c.b16 %v634, %v632
    %v773 = vpack.c.b16 %v635, %v633
    %v774 = vpack.c.b16 %v638, %v636
    %v775 = vpack.c.b16 %v639, %v637
    %v776 = vpack.c.b16 %v642, %v640
    %v777 = vpack.c.b16 %v643, %v641
    %v778 = vpack.c.b16 %v646, %v644
    %v779 = vpack.c.b16 %v647, %v645
    %v780 = vpack.c.b16 %v650, %v648
    %v781 = vpack.c.b16 %v651, %v649
    %v782 = vpack.c.b16 %v654, %v652
    %v783 = vpack.c.b16 %v655, %v653
    %912 = vmatprep.subr.bf16.mxu0 %v657
    %913 = vmatpush1.bf16.msra.mxu0 %v656
    %914 = vmatprep.subr.bf16.mxu0 %v659
    %915 = vmatpush1.bf16.msra.mxu0 %v658
    %916 = vmatprep.subr.bf16.mxu0 %v661
    %917 = vmatpush1.bf16.msra.mxu0 %v660
    %918 = vmatprep.subr.bf16.mxu0 %v663
    %919 = vmatpush1.bf16.msra.mxu0 %v662
    %920 = vmatprep.subr.bf16.mxu0 %v665
    %921 = vmatpush1.bf16.msra.mxu0 %v664
    %922 = vmatprep.subr.bf16.mxu0 %v667
    %923 = vmatpush1.bf16.msra.mxu0 %v666
    %924 = vmatprep.subr.bf16.mxu0 %v669
    %925 = vmatpush1.bf16.msra.mxu0 %v668
    %926 = vmatprep.subr.bf16.mxu0 %v671
    %927 = vmatpush1.bf16.msra.mxu0 %v670
    %928 = vmatprep.subr.bf16.mxu0 %v673
    %929 = vmatpush1.bf16.msra.mxu0 %v672
    %930 = vmatprep.subr.bf16.mxu0 %v675
    %931 = vmatpush1.bf16.msra.mxu0 %v674
    %932 = vmatprep.subr.bf16.mxu0 %v677
    %933 = vmatpush1.bf16.msra.mxu0 %v676
    %934 = vmatprep.subr.bf16.mxu0 %v679
    %935 = vmatpush1.bf16.msra.mxu0 %v678
    %936 = vmatprep.subr.bf16.mxu0 %v681
    %937 = vmatpush1.bf16.msra.mxu0 %v680
    %938 = vmatprep.subr.bf16.mxu0 %v683
    %939 = vmatpush1.bf16.msra.mxu0 %v682
    %940 = vmatprep.subr.bf16.mxu0 %v685
    %941 = vmatpush1.bf16.msra.mxu0 %v684
    %942 = vmatprep.subr.bf16.mxu0 %v687
    %943 = vmatpush1.bf16.msra.mxu0 %v686
    %944 = vmatprep.mubr.bf16.mxu0 %v257
    %945 = vmatmul.mubr.bf16.gmra.mrb[0].mxu0 %v256
    %v946 = vpop.f32.mrb[0].mxu0
    %v947 = vadd.f32 %v237, %v946
    %v948 = vpop.f32.mrb[0].mxu0
    %v949 = vadd.f32 %v241, %v948
    %v950 = vpop.f32.mrb[0].mxu0
    %v951 = vpop.f32.mrb[0].mxu0
    %952 = vdwg.mxu0
    %953 = vmatprep.subr.bf16.mxu0 %v689
    %954 = vmatpush1.bf16.msra.mxu0 %v688
    %955 = vmatprep.subr.bf16.mxu0 %v691
    %956 = vmatpush1.bf16.msra.mxu0 %v690
    %957 = vmatprep.subr.bf16.mxu0 %v693
    %958 = vmatpush1.bf16.msra.mxu0 %v692
    %959 = vmatprep.subr.bf16.mxu0 %v695
    %960 = vmatpush1.bf16.msra.mxu0 %v694
    %961 = vmatprep.subr.bf16.mxu0 %v697
    %962 = vmatpush1.bf16.msra.mxu0 %v696
    %963 = vmatprep.subr.bf16.mxu0 %v699
    %964 = vmatpush1.bf16.msra.mxu0 %v698
    %965 = vmatprep.subr.bf16.mxu0 %v701
    %966 = vmatpush1.bf16.msra.mxu0 %v700
    %967 = vmatprep.subr.bf16.mxu0 %v703
    %968 = vmatpush1.bf16.msra.mxu0 %v702
    %969 = vmatprep.subr.bf16.mxu0 %v705
    %970 = vmatpush1.bf16.msra.mxu0 %v704
    %971 = vmatprep.subr.bf16.mxu0 %v707
    %972 = vmatpush1.bf16.msra.mxu0 %v706
    %973 = vmatprep.subr.bf16.mxu0 %v709
    %974 = vmatpush1.bf16.msra.mxu0 %v708
    %975 = vmatprep.subr.bf16.mxu0 %v711
    %976 = vmatpush1.bf16.msra.mxu0 %v710
    %977 = vmatprep.subr.bf16.mxu0 %v713
    %978 = vmatpush1.bf16.msra.mxu0 %v712
    %979 = vmatprep.subr.bf16.mxu0 %v715
    %980 = vmatpush1.bf16.msra.mxu0 %v714
    %981 = vmatprep.subr.bf16.mxu0 %v717
    %982 = vmatpush1.bf16.msra.mxu0 %v716
    %983 = vmatprep.subr.bf16.mxu0 %v719
    %984 = vmatpush1.bf16.msra.mxu0 %v718
    %985 = vmatprep.mubr.bf16.mxu0 %v259
    %986 = vmatmul.mubr.bf16.gmra.mrb[0].mxu0 %v258
    %v987 = vpop.f32.mrb[0].mxu0
    %v988 = vadd.f32 %v947, %v987
    %v989 = vpop.f32.mrb[0].mxu0
    %v990 = vadd.f32 %v949, %v989
    %v991 = vpop.f32.mrb[0].mxu0
    %v992 = vpop.f32.mrb[0].mxu0
    %993 = vdwg.mxu0
    %994 = vmatprep.subr.bf16.mxu0 %v721
    %995 = vmatpush1.bf16.msra.mxu0 %v720
    %996 = vmatprep.subr.bf16.mxu0 %v723
    %997 = vmatpush1.bf16.msra.mxu0 %v722
    %998 = vmatprep.subr.bf16.mxu0 %v725
    %999 = vmatpush1.bf16.msra.mxu0 %v724
    %1000 = vmatprep.subr.bf16.mxu0 %v727
    %1001 = vmatpush1.bf16.msra.mxu0 %v726
    %1002 = vmatprep.subr.bf16.mxu0 %v729
    %1003 = vmatpush1.bf16.msra.mxu0 %v728
    %1004 = vmatprep.subr.bf16.mxu0 %v731
    %1005 = vmatpush1.bf16.msra.mxu0 %v730
    %1006 = vmatprep.subr.bf16.mxu0 %v733
    %1007 = vmatpush1.bf16.msra.mxu0 %v732
    %1008 = vmatprep.subr.bf16.mxu0 %v735
    %1009 = vmatpush1.bf16.msra.mxu0 %v734
    %1010 = vmatprep.subr.bf16.mxu0 %v737
    %1011 = vmatpush1.bf16.msra.mxu0 %v736
    %1012 = vmatprep.subr.bf16.mxu0 %v739
    %1013 = vmatpush1.bf16.msra.mxu0 %v738
    %1014 = vmatprep.subr.bf16.mxu0 %v741
    %1015 = vmatpush1.bf16.msra.mxu0 %v740
    %1016 = vmatprep.subr.bf16.mxu0 %v743
    %1017 = vmatpush1.bf16.msra.mxu0 %v742
    %1018 = vmatprep.subr.bf16.mxu0 %v745
    %1019 = vmatpush1.bf16.msra.mxu0 %v744
    %1020 = vmatprep.subr.bf16.mxu0 %v747
    %1021 = vmatpush1.bf16.msra.mxu0 %v746
    %1022 = vmatprep.subr.bf16.mxu0 %v749
    %1023 = vmatpush1.bf16.msra.mxu0 %v748
    %1024 = vmatprep.subr.bf16.mxu0 %v751
    %1025 = vmatpush1.bf16.msra.mxu0 %v750
    %1026 = vmatprep.mubr.bf16.mxu0 %v261
    %1027 = vmatmul.mubr.bf16.gmra.mrb[0].mxu0 %v260
    %v1028 = vpop.f32.mrb[0].mxu0
    %v1029 = vadd.f32 %v988, %v1028
    %v1030 = vpop.f32.mrb[0].mxu0
    %v1031 = vadd.f32 %v990, %v1030
    %v1032 = vpop.f32.mrb[0].mxu0
    %v1033 = vpop.f32.mrb[0].mxu0
    %1034 = vdwg.mxu0
    %1035 = vmatprep.subr.bf16.mxu0 %v753
    %1036 = vmatpush1.bf16.msra.mxu0 %v752
    %1037 = vmatprep.subr.bf16.mxu0 %v755
    %1038 = vmatpush1.bf16.msra.mxu0 %v754
    %1039 = vmatprep.subr.bf16.mxu0 %v757
    %1040 = vmatpush1.bf16.msra.mxu0 %v756
    %1041 = vmatprep.subr.bf16.mxu0 %v759
    %1042 = vmatpush1.bf16.msra.mxu0 %v758
    %1043 = vmatprep.subr.bf16.mxu0 %v761
    %1044 = vmatpush1.bf16.msra.mxu0 %v760
    %1045 = vmatprep.subr.bf16.mxu0 %v763
    %1046 = vmatpush1.bf16.msra.mxu0 %v762
    %1047 = vmatprep.subr.bf16.mxu0 %v765
    %1048 = vmatpush1.bf16.msra.mxu0 %v764
    %1049 = vmatprep.subr.bf16.mxu0 %v767
    %1050 = vmatpush1.bf16.msra.mxu0 %v766
    %1051 = vmatprep.subr.bf16.mxu0 %v769
    %1052 = vmatpush1.bf16.msra.mxu0 %v768
    %1053 = vmatprep.subr.bf16.mxu0 %v771
    %1054 = vmatpush1.bf16.msra.mxu0 %v770
    %1055 = vmatprep.subr.bf16.mxu0 %v773
    %1056 = vmatpush1.bf16.msra.mxu0 %v772
    %1057 = vmatprep.subr.bf16.mxu0 %v775
    %1058 = vmatpush1.bf16.msra.mxu0 %v774
    %1059 = vmatprep.subr.bf16.mxu0 %v777
    %1060 = vmatpush1.bf16.msra.mxu0 %v776
    %1061 = vmatprep.subr.bf16.mxu0 %v779
    %1062 = vmatpush1.bf16.msra.mxu0 %v778
    %1063 = vmatprep.subr.bf16.mxu0 %v781
    %1064 = vmatpush1.bf16.msra.mxu0 %v780
    %1065 = vmatprep.subr.bf16.mxu0 %v783
    %1066 = vmatpush1.bf16.msra.mxu0 %v782
    %1067 = vmatprep.mubr.bf16.mxu0 %v263
    %1068 = vmatmul.mubr.bf16.gmra.mrb[0].mxu0 %v262
    %v1069 = vpop.f32.mrb[0].mxu0
    %v1070 = vadd.f32 %v1029, %v1069
    %v1071 = vpop.f32.mrb[0].mxu0
    %v1072 = vadd.f32 %v1031, %v1071
    %v1073 = vpop.f32.mrb[0].mxu0
    %v1074 = vpop.f32.mrb[0].mxu0
    %1075 = vdwg.mxu0
    %v1076 = vtanh.pop %v1070
    %v1077 = vtanh.pop %v1072
    %v1078 = vpack.c.bf16 %v1076, %v1076
    %v1079 = vpack.c.bf16 %v1077, %v1077
    %v1080 = vld [vmem:[#allocation7] sm:$0xf]
    %v1081 = vld [vmem:[#allocation7 + $0x4] sm:$0xf]
    %v1082 = vld [vmem:[#allocation7 + $0x8] sm:$0xf]
    %v1083 = vld [vmem:[#allocation7 + $0xc] sm:$0xf]
    %v1084 = vld [vmem:[#allocation7 + $0x10] sm:$0xf]
    %v1085 = vld [vmem:[#allocation7 + $0x14] sm:$0xf]
    %v1086 = vld [vmem:[#allocation7 + $0x18] sm:$0xf]
    %v1087 = vld [vmem:[#allocation7 + $0x1c] sm:$0xf]
    %v1088 = vld [vmem:[#allocation7 + $0x20] sm:$0xf]
    %v1089 = vld [vmem:[#allocation7 + $0x24] sm:$0xf]
    %v1090 = vld [vmem:[#allocation7 + $0x28] sm:$0xf]
    %v1091 = vld [vmem:[#allocation7 + $0x2c] sm:$0xf]
    %v1092 = vld [vmem:[#allocation7 + $0x30] sm:$0xf]
    %v1093 = vld [vmem:[#allocation7 + $0x34] sm:$0xf]
    %v1094 = vld [vmem:[#allocation7 + $0x38] sm:$0xf]
    %v1095 = vld [vmem:[#allocation7 + $0x3c] sm:$0xf]
    %v1096 = vld [vmem:[#allocation7 + $0x40] sm:$0xf]
    %v1097 = vld [vmem:[#allocation7 + $0x44] sm:$0xf]
    %v1098 = vld [vmem:[#allocation7 + $0x48] sm:$0xf]
    %v1099 = vld [vmem:[#allocation7 + $0x4c] sm:$0xf]
    %v1100 = vld [vmem:[#allocation7 + $0x50] sm:$0xf]
    %v1101 = vld [vmem:[#allocation7 + $0x54] sm:$0xf]
    %v1102 = vld [vmem:[#allocation7 + $0x58] sm:$0xf]
    %v1103 = vld [vmem:[#allocation7 + $0x5c] sm:$0xf]
    %v1104 = vld [vmem:[#allocation7 + $0x60] sm:$0xf]
    %v1105 = vld [vmem:[#allocation7 + $0x64] sm:$0xf]
    %v1106 = vld [vmem:[#allocation7 + $0x68] sm:$0xf]
    %v1107 = vld [vmem:[#allocation7 + $0x6c] sm:$0xf]
    %v1108 = vld [vmem:[#allocation7 + $0x70] sm:$0xf]
    %v1109 = vld [vmem:[#allocation7 + $0x74] sm:$0xf]
    %v1110 = vld [vmem:[#allocation7 + $0x78] sm:$0xf]
    %v1111 = vld [vmem:[#allocation7 + $0x7c] sm:$0xf]
    %v1112 = vld [vmem:[%s4] sm:$0x1]
    %v1114 = vlaneseq
    %v1115 = vshrl.u32 %v1114, 7
    %v1116 = vsub.s32 0, %v1115
    %v1117 = vrot.slane %v1112, %v1116
    %v1151 = vunpack.c.l.b16 %v1080
    %v1152 = vunpack.c.l.b16 %v1081
    %v1153 = vunpack.c.l.b16 %v1082
    %v1154 = vunpack.c.l.b16 %v1083
    %v1155 = vunpack.c.l.b16 %v1084
    %v1156 = vunpack.c.l.b16 %v1085
    %v1157 = vunpack.c.l.b16 %v1086
    %v1158 = vunpack.c.l.b16 %v1087
    %v1159 = vunpack.c.l.b16 %v1088
    %v1160 = vunpack.c.l.b16 %v1089
    %v1161 = vunpack.c.l.b16 %v1090
    %v1162 = vunpack.c.l.b16 %v1091
    %v1163 = vunpack.c.l.b16 %v1092
    %v1164 = vunpack.c.l.b16 %v1093
    %v1165 = vunpack.c.l.b16 %v1094
    %v1166 = vunpack.c.l.b16 %v1095
    %v1167 = vunpack.c.l.b16 %v1096
    %v1168 = vunpack.c.l.b16 %v1097
    %v1169 = vunpack.c.l.b16 %v1098
    %v1170 = vunpack.c.l.b16 %v1099
    %v1171 = vunpack.c.l.b16 %v1100
    %v1172 = vunpack.c.l.b16 %v1101
    %v1173 = vunpack.c.l.b16 %v1102
    %v1174 = vunpack.c.l.b16 %v1103
    %v1175 = vunpack.c.l.b16 %v1104
    %v1176 = vunpack.c.l.b16 %v1105
    %v1177 = vunpack.c.l.b16 %v1106
    %v1178 = vunpack.c.l.b16 %v1107
    %v1179 = vunpack.c.l.b16 %v1108
    %v1180 = vunpack.c.l.b16 %v1109
    %v1181 = vunpack.c.l.b16 %v1110
    %v1182 = vunpack.c.l.b16 %v1111
    %v1183 = vpack.c.b16 %v1152, %v1151
    %v1184 = vpack.c.b16 %v1154, %v1153
    %v1185 = vpack.c.b16 %v1156, %v1155
    %v1186 = vpack.c.b16 %v1158, %v1157
    %v1187 = vpack.c.b16 %v1160, %v1159
    %v1188 = vpack.c.b16 %v1162, %v1161
    %v1189 = vpack.c.b16 %v1164, %v1163
    %v1190 = vpack.c.b16 %v1166, %v1165
    %v1191 = vpack.c.b16 %v1168, %v1167
    %v1192 = vpack.c.b16 %v1170, %v1169
    %v1193 = vpack.c.b16 %v1172, %v1171
    %v1194 = vpack.c.b16 %v1174, %v1173
    %v1195 = vpack.c.b16 %v1176, %v1175
    %v1196 = vpack.c.b16 %v1178, %v1177
    %v1197 = vpack.c.b16 %v1180, %v1179
    %v1198 = vpack.c.b16 %v1182, %v1181
    %1215 = vmatprep.subr.bf16.mxu0 0
    %1216 = vmatpush1.bf16.msra.mxu0 %v1183
    %1217 = vmatprep.subr.bf16.mxu0 0
    %1218 = vmatpush1.bf16.msra.mxu0 %v1184
    %1219 = vmatprep.subr.bf16.mxu0 0
    %1220 = vmatpush1.bf16.msra.mxu0 %v1185
    %1221 = vmatprep.subr.bf16.mxu0 0
    %1222 = vmatpush1.bf16.msra.mxu0 %v1186
    %1223 = vmatprep.subr.bf16.mxu0 0
    %1224 = vmatpush1.bf16.msra.mxu0 %v1187
    %1225 = vmatprep.subr.bf16.mxu0 0
    %1226 = vmatpush1.bf16.msra.mxu0 %v1188
    %1227 = vmatprep.subr.bf16.mxu0 0
    %1228 = vmatpush1.bf16.msra.mxu0 %v1189
    %1229 = vmatprep.subr.bf16.mxu0 0
    %1230 = vmatpush1.bf16.msra.mxu0 %v1190
    %1231 = vmatprep.subr.bf16.mxu0 0
    %1232 = vmatpush1.bf16.msra.mxu0 %v1191
    %1233 = vmatprep.subr.bf16.mxu0 0
    %1234 = vmatpush1.bf16.msra.mxu0 %v1192
    %1235 = vmatprep.subr.bf16.mxu0 0
    %1236 = vmatpush1.bf16.msra.mxu0 %v1193
    %1237 = vmatprep.subr.bf16.mxu0 0
    %1238 = vmatpush1.bf16.msra.mxu0 %v1194
    %1239 = vmatprep.subr.bf16.mxu0 0
    %1240 = vmatpush1.bf16.msra.mxu0 %v1195
    %1241 = vmatprep.subr.bf16.mxu0 0
    %1242 = vmatpush1.bf16.msra.mxu0 %v1196
    %1243 = vmatprep.subr.bf16.mxu0 0
    %1244 = vmatpush1.bf16.msra.mxu0 %v1197
    %1245 = vmatprep.subr.bf16.mxu0 0
    %1246 = vmatpush1.bf16.msra.mxu0 %v1198
    %1247 = vmatprep.mubr.bf16.mxu0 %v1079
    %1248 = vmatmul.mubr.bf16.gmra.mrb[0].mxu0 %v1078
    %v1249 = vpop.f32.mrb[0].mxu0
    %v1250 = vadd.f32 %v1117, %v1249
    %v1251 = vpop.f32.mrb[0].mxu0
    %v1252 = vpop.f32.mrb[0].mxu0
    %v1253 = vpop.f32.mrb[0].mxu0
    %1254 = vdwg.mxu0
    %v1255 = vpack.c.bf16 %v1250, %v1250
    %v1256 = vld [vmem:[#allocation8] sm:$0xff]
    %v1257 = vld [vmem:[#allocation8 + $0x8] sm:$0xff]
    %v1258 = vld [vmem:[#allocation8 + $0x10] sm:$0xff]
    %v1259 = vld [vmem:[#allocation8 + $0x18] sm:$0xff]
    %v1260 = vld [vmem:[#allocation8 + $0x20] sm:$0xff]
    %v1261 = vld [vmem:[#allocation8 + $0x28] sm:$0xff]
    %v1262 = vld [vmem:[#allocation8 + $0x30] sm:$0xff]
    %v1263 = vld [vmem:[#allocation8 + $0x38] sm:$0xff]
    %v1264 = vld [vmem:[#allocation8 + $0x40] sm:$0xff]
    %v1265 = vld [vmem:[#allocation8 + $0x48] sm:$0xff]
    %v1266 = vld [vmem:[#allocation8 + $0x50] sm:$0xff]
    %v1267 = vld [vmem:[#allocation8 + $0x58] sm:$0xff]
    %v1268 = vld [vmem:[#allocation8 + $0x60] sm:$0xff]
    %v1269 = vld [vmem:[#allocation8 + $0x68] sm:$0xff]
    %v1270 = vld [vmem:[#allocation8 + $0x70] sm:$0xff]
    %v1271 = vld [vmem:[#allocation8 + $0x78] sm:$0xff]
    %v1272 = vld [vmem:[%s6] sm:$0x3]
    %v1274 = vlaneseq
    %v1275 = vshrl.u32 %v1274, 7
    %v1276 = vsub.s32 0, %v1275
    %v1277 = vrot.slane %v1272, %v1276
    %v1278 = vlaneseq
    %v1279 = vshrl.u32 %v1278, 7
    %v1280 = vsub.s32 1, %v1279
    %v1281 = vrot.slane %v1272, %v1280
    %v1300 = vunpack.c.l.b16 %v1256
    %v1301 = vunpack.c.h.b16 %v1256
    %v1302 = vunpack.c.l.b16 %v1257
    %v1303 = vunpack.c.h.b16 %v1257
    %v1304 = vunpack.c.l.b16 %v1258
    %v1305 = vunpack.c.h.b16 %v1258
    %v1306 = vunpack.c.l.b16 %v1259
    %v1307 = vunpack.c.h.b16 %v1259
    %v1308 = vunpack.c.l.b16 %v1260
    %v1309 = vunpack.c.h.b16 %v1260
    %v1310 = vunpack.c.l.b16 %v1261
    %v1311 = vunpack.c.h.b16 %v1261
    %v1312 = vunpack.c.l.b16 %v1262
    %v1313 = vunpack.c.h.b16 %v1262
    %v1314 = vunpack.c.l.b16 %v1263
    %v1315 = vunpack.c.h.b16 %v1263
    %v1316 = vunpack.c.l.b16 %v1264
    %v1317 = vunpack.c.h.b16 %v1264
    %v1318 = vunpack.c.l.b16 %v1265
    %v1319 = vunpack.c.h.b16 %v1265
    %v1320 = vunpack.c.l.b16 %v1266
    %v1321 = vunpack.c.h.b16 %v1266
    %v1322 = vunpack.c.l.b16 %v1267
    %v1323 = vunpack.c.h.b16 %v1267
    %v1324 = vunpack.c.l.b16 %v1268
    %v1325 = vunpack.c.h.b16 %v1268
    %v1326 = vunpack.c.l.b16 %v1269
    %v1327 = vunpack.c.h.b16 %v1269
    %v1328 = vunpack.c.l.b16 %v1270
    %v1329 = vunpack.c.h.b16 %v1270
    %v1330 = vunpack.c.l.b16 %v1271
    %v1331 = vunpack.c.h.b16 %v1271
    %v1332 = vpack.c.b16 %v1302, %v1300
    %v1333 = vpack.c.b16 %v1303, %v1301
    %v1334 = vpack.c.b16 %v1306, %v1304
    %v1335 = vpack.c.b16 %v1307, %v1305
    %v1336 = vpack.c.b16 %v1310, %v1308
    %v1337 = vpack.c.b16 %v1311, %v1309
    %v1338 = vpack.c.b16 %v1314, %v1312
    %v1339 = vpack.c.b16 %v1315, %v1313
    %v1340 = vpack.c.b16 %v1318, %v1316
    %v1341 = vpack.c.b16 %v1319, %v1317
    %v1342 = vpack.c.b16 %v1322, %v1320
    %v1343 = vpack.c.b16 %v1323, %v1321
    %v1344 = vpack.c.b16 %v1326, %v1324
    %v1345 = vpack.c.b16 %v1327, %v1325
    %v1346 = vpack.c.b16 %v1330, %v1328
    %v1347 = vpack.c.b16 %v1331, %v1329
    %1364 = vmatprep.subr.bf16.mxu0 %v1333
    %1365 = vmatpush1.bf16.msra.mxu0 %v1332
    %1366 = vmatprep.subr.bf16.mxu0 %v1335
    %1367 = vmatpush1.bf16.msra.mxu0 %v1334
    %1368 = vmatprep.subr.bf16.mxu0 %v1337
    %1369 = vmatpush1.bf16.msra.mxu0 %v1336
    %1370 = vmatprep.subr.bf16.mxu0 %v1339
    %1371 = vmatpush1.bf16.msra.mxu0 %v1338
    %1372 = vmatprep.subr.bf16.mxu0 %v1341
    %1373 = vmatpush1.bf16.msra.mxu0 %v1340
    %1374 = vmatprep.subr.bf16.mxu0 %v1343
    %1375 = vmatpush1.bf16.msra.mxu0 %v1342
    %1376 = vmatprep.subr.bf16.mxu0 %v1345
    %1377 = vmatpush1.bf16.msra.mxu0 %v1344
    %1378 = vmatprep.subr.bf16.mxu0 %v1347
    %1379 = vmatpush1.bf16.msra.mxu0 %v1346
    %1380 = vmatprep.subr.bf16.mxu0 0
    %1381 = vmatpush1.bf16.msra.mxu0 0
    %1382 = vmatprep.subr.bf16.mxu0 0
    %1383 = vmatpush1.bf16.msra.mxu0 0
    %1384 = vmatprep.subr.bf16.mxu0 0
    %1385 = vmatpush1.bf16.msra.mxu0 0
    %1386 = vmatprep.subr.bf16.mxu0 0
    %1387 = vmatpush1.bf16.msra.mxu0 0
    %1388 = vmatprep.subr.bf16.mxu0 0
    %1389 = vmatpush1.bf16.msra.mxu0 0
    %1390 = vmatprep.subr.bf16.mxu0 0
    %1391 = vmatpush1.bf16.msra.mxu0 0
    %1392 = vmatprep.subr.bf16.mxu0 0
    %1393 = vmatpush1.bf16.msra.mxu0 0
    %1394 = vmatprep.subr.bf16.mxu0 0
    %1395 = vmatpush1.bf16.msra.mxu0 0
    %1396 = vmatprep.mubr.bf16.mxu0 0
    %1397 = vmatmul.mubr.bf16.gmra.mrb[0].mxu0 %v1255
    %v1398 = vpop.f32.mrb[0].mxu0
    %v1399 = vadd.f32 %v1277, %v1398
    %v1400 = vpop.f32.mrb[0].mxu0
    %v1401 = vadd.f32 %v1281, %v1400
    %v1402 = vpop.f32.mrb[0].mxu0
    %v1403 = vpop.f32.mrb[0].mxu0
    %1404 = vdwg.mxu0
    %v1405 = vtanh.pop %v1399
    %v1406 = vtanh.pop %v1401
    %v1407 = vpack.c.bf16 %v1405, %v1405
    %v1408 = vpack.c.bf16 %v1406, %v1406
    %v1409 = vld [vmem:[#allocation10] sm:$0xff]
    %v1410 = vld [vmem:[#allocation10 + $0x8] sm:$0xff]
    %v1411 = vld [vmem:[#allocation10 + $0x10] sm:$0xff]
    %v1412 = vld [vmem:[#allocation10 + $0x18] sm:$0xff]
    %v1413 = vld [vmem:[#allocation10 + $0x20] sm:$0xff]
    %v1414 = vld [vmem:[#allocation10 + $0x28] sm:$0xff]
    %v1415 = vld [vmem:[#allocation10 + $0x30] sm:$0xff]
    %v1416 = vld [vmem:[#allocation10 + $0x38] sm:$0xff]
    %v1417 = vld [vmem:[#allocation10 + $0x40] sm:$0xff]
    %v1418 = vld [vmem:[#allocation10 + $0x48] sm:$0xff]
    %v1419 = vld [vmem:[#allocation10 + $0x50] sm:$0xff]
    %v1420 = vld [vmem:[#allocation10 + $0x58] sm:$0xff]
    %v1421 = vld [vmem:[#allocation10 + $0x60] sm:$0xff]
    %v1422 = vld [vmem:[#allocation10 + $0x68] sm:$0xff]
    %v1423 = vld [vmem:[#allocation10 + $0x70] sm:$0xff]
    %v1424 = vld [vmem:[#allocation10 + $0x78] sm:$0xff]
    %v1425 = vld [vmem:[#allocation10 + $0x80] sm:$0xff]
    %v1426 = vld [vmem:[#allocation10 + $0x88] sm:$0xff]
    %v1427 = vld [vmem:[#allocation10 + $0x90] sm:$0xff]
    %v1428 = vld [vmem:[#allocation10 + $0x98] sm:$0xff]
    %v1429 = vld [vmem:[#allocation10 + $0xa0] sm:$0xff]
    %v1430 = vld [vmem:[#allocation10 + $0xa8] sm:$0xff]
    %v1431 = vld [vmem:[#allocation10 + $0xb0] sm:$0xff]
    %v1432 = vld [vmem:[#allocation10 + $0xb8] sm:$0xff]
    %v1433 = vld [vmem:[#allocation10 + $0xc0] sm:$0xff]
    %v1434 = vld [vmem:[#allocation10 + $0xc8] sm:$0xff]
    %v1435 = vld [vmem:[#allocation10 + $0xd0] sm:$0xff]
    %v1436 = vld [vmem:[#allocation10 + $0xd8] sm:$0xff]
    %v1437 = vld [vmem:[#allocation10 + $0xe0] sm:$0xff]
    %v1438 = vld [vmem:[#allocation10 + $0xe8] sm:$0xff]
    %v1439 = vld [vmem:[#allocation10 + $0xf0] sm:$0xff]
    %v1440 = vld [vmem:[#allocation10 + $0xf8] sm:$0xff]
    %v1441 = vld [vmem:[#allocation10 + $0x100] sm:$0xff]
    %v1442 = vld [vmem:[#allocation10 + $0x108] sm:$0xff]
    %v1443 = vld [vmem:[#allocation10 + $0x110] sm:$0xff]
    %v1444 = vld [vmem:[#allocation10 + $0x118] sm:$0xff]
    %v1445 = vld [vmem:[#allocation10 + $0x120] sm:$0xff]
    %v1446 = vld [vmem:[#allocation10 + $0x128] sm:$0xff]
    %v1447 = vld [vmem:[#allocation10 + $0x130] sm:$0xff]
    %v1448 = vld [vmem:[#allocation10 + $0x138] sm:$0xff]
    %v1449 = vld [vmem:[#allocation10 + $0x140] sm:$0xff]
    %v1450 = vld [vmem:[#allocation10 + $0x148] sm:$0xff]
    %v1451 = vld [vmem:[#allocation10 + $0x150] sm:$0xff]
    %v1452 = vld [vmem:[#allocation10 + $0x158] sm:$0xff]
    %v1453 = vld [vmem:[#allocation10 + $0x160] sm:$0xff]
    %v1454 = vld [vmem:[#allocation10 + $0x168] sm:$0xff]
    %v1455 = vld [vmem:[#allocation10 + $0x170] sm:$0xff]
    %v1456 = vld [vmem:[#allocation10 + $0x178] sm:$0xff]
    %v1457 = vld [vmem:[#allocation10 + $0x180] sm:$0xff]
    %v1458 = vld [vmem:[#allocation10 + $0x188] sm:$0xff]
    %v1459 = vld [vmem:[#allocation10 + $0x190] sm:$0xff]
    %v1460 = vld [vmem:[#allocation10 + $0x198] sm:$0xff]
    %v1461 = vld [vmem:[#allocation10 + $0x1a0] sm:$0xff]
    %v1462 = vld [vmem:[#allocation10 + $0x1a8] sm:$0xff]
    %v1463 = vld [vmem:[#allocation10 + $0x1b0] sm:$0xff]
    %v1464 = vld [vmem:[#allocation10 + $0x1b8] sm:$0xff]
    %v1465 = vld [vmem:[#allocation10 + $0x1c0] sm:$0xff]
    %v1466 = vld [vmem:[#allocation10 + $0x1c8] sm:$0xff]
    %v1467 = vld [vmem:[#allocation10 + $0x1d0] sm:$0xff]
    %v1468 = vld [vmem:[#allocation10 + $0x1d8] sm:$0xff]
    %v1469 = vld [vmem:[#allocation10 + $0x1e0] sm:$0xff]
    %v1470 = vld [vmem:[#allocation10 + $0x1e8] sm:$0xff]
    %v1471 = vld [vmem:[#allocation10 + $0x1f0] sm:$0xff]
    %v1472 = vld [vmem:[#allocation10 + $0x1f8] sm:$0xff]
    %v1473 = vld [vmem:[#allocation10 + $0x200] sm:$0xff]
    %v1474 = vld [vmem:[#allocation10 + $0x208] sm:$0xff]
    %v1475 = vld [vmem:[#allocation10 + $0x210] sm:$0xff]
    %v1476 = vld [vmem:[#allocation10 + $0x218] sm:$0xff]
    %v1477 = vld [vmem:[#allocation10 + $0x220] sm:$0xff]
    %v1478 = vld [vmem:[#allocation10 + $0x228] sm:$0xff]
    %v1479 = vld [vmem:[#allocation10 + $0x230] sm:$0xff]
    %v1480 = vld [vmem:[#allocation10 + $0x238] sm:$0xff]
    %v1481 = vld [vmem:[#allocation10 + $0x240] sm:$0xff]
    %v1482 = vld [vmem:[#allocation10 + $0x248] sm:$0xff]
    %v1483 = vld [vmem:[#allocation10 + $0x250] sm:$0xff]
    %v1484 = vld [vmem:[#allocation10 + $0x258] sm:$0xff]
    %v1485 = vld [vmem:[#allocation10 + $0x260] sm:$0xff]
    %v1486 = vld [vmem:[#allocation10 + $0x268] sm:$0xff]
    %v1487 = vld [vmem:[#allocation10 + $0x270] sm:$0xff]
    %v1488 = vld [vmem:[#allocation10 + $0x278] sm:$0xff]
    %v1489 = vld [vmem:[#allocation10 + $0x280] sm:$0xff]
    %v1490 = vld [vmem:[#allocation10 + $0x288] sm:$0xff]
    %v1491 = vld [vmem:[#allocation10 + $0x290] sm:$0xff]
    %v1492 = vld [vmem:[#allocation10 + $0x298] sm:$0xff]
    %v1493 = vld [vmem:[#allocation10 + $0x2a0] sm:$0xff]
    %v1494 = vld [vmem:[#allocation10 + $0x2a8] sm:$0xff]
    %v1495 = vld [vmem:[#allocation10 + $0x2b0] sm:$0xff]
    %v1496 = vld [vmem:[#allocation10 + $0x2b8] sm:$0xff]
    %v1497 = vld [vmem:[#allocation10 + $0x2c0] sm:$0xff]
    %v1498 = vld [vmem:[#allocation10 + $0x2c8] sm:$0xff]
    %v1499 = vld [vmem:[#allocation10 + $0x2d0] sm:$0xff]
    %v1500 = vld [vmem:[#allocation10 + $0x2d8] sm:$0xff]
    %v1501 = vld [vmem:[#allocation10 + $0x2e0] sm:$0xff]
    %v1502 = vld [vmem:[#allocation10 + $0x2e8] sm:$0xff]
    %v1503 = vld [vmem:[#allocation10 + $0x2f0] sm:$0xff]
    %v1504 = vld [vmem:[#allocation10 + $0x2f8] sm:$0xff]
    %v1505 = vld [vmem:[#allocation10 + $0x300] sm:$0xff]
    %v1506 = vld [vmem:[#allocation10 + $0x308] sm:$0xff]
    %v1507 = vld [vmem:[#allocation10 + $0x310] sm:$0xff]
    %v1508 = vld [vmem:[#allocation10 + $0x318] sm:$0xff]
    %v1509 = vld [vmem:[#allocation10 + $0x320] sm:$0xff]
    %v1510 = vld [vmem:[#allocation10 + $0x328] sm:$0xff]
    %v1511 = vld [vmem:[#allocation10 + $0x330] sm:$0xff]
    %v1512 = vld [vmem:[#allocation10 + $0x338] sm:$0xff]
    %v1513 = vld [vmem:[#allocation10 + $0x340] sm:$0xff]
    %v1514 = vld [vmem:[#allocation10 + $0x348] sm:$0xff]
    %v1515 = vld [vmem:[#allocation10 + $0x350] sm:$0xff]
    %v1516 = vld [vmem:[#allocation10 + $0x358] sm:$0xff]
    %v1517 = vld [vmem:[#allocation10 + $0x360] sm:$0xff]
    %v1518 = vld [vmem:[#allocation10 + $0x368] sm:$0xff]
    %v1519 = vld [vmem:[#allocation10 + $0x370] sm:$0xff]
    %v1520 = vld [vmem:[#allocation10 + $0x378] sm:$0xff]
    %v1521 = vld [vmem:[#allocation10 + $0x380] sm:$0xff]
    %v1522 = vld [vmem:[#allocation10 + $0x388] sm:$0xff]
    %v1523 = vld [vmem:[#allocation10 + $0x390] sm:$0xff]
    %v1524 = vld [vmem:[#allocation10 + $0x398] sm:$0xff]
    %v1525 = vld [vmem:[#allocation10 + $0x3a0] sm:$0xff]
    %v1526 = vld [vmem:[#allocation10 + $0x3a8] sm:$0xff]
    %v1527 = vld [vmem:[#allocation10 + $0x3b0] sm:$0xff]
    %v1528 = vld [vmem:[#allocation10 + $0x3b8] sm:$0xff]
    %v1529 = vld [vmem:[#allocation10 + $0x3c0] sm:$0xff]
    %v1530 = vld [vmem:[#allocation10 + $0x3c8] sm:$0xff]
    %v1531 = vld [vmem:[#allocation10 + $0x3d0] sm:$0xff]
    %v1532 = vld [vmem:[#allocation10 + $0x3d8] sm:$0xff]
    %v1533 = vld [vmem:[#allocation10 + $0x3e0] sm:$0xff]
    %v1534 = vld [vmem:[#allocation10 + $0x3e8] sm:$0xff]
    %v1535 = vld [vmem:[#allocation10 + $0x3f0] sm:$0xff]
    %v1536 = vld [vmem:[#allocation10 + $0x3f8] sm:$0xff]
    %v1537 = vld [vmem:[%s8] sm:$0xff]
    %v1539 = vlaneseq
    %v1540 = vshrl.u32 %v1539, 7
    %v1541 = vsub.s32 0, %v1540
    %v1542 = vrot.slane %v1537, %v1541
    %v1543 = vlaneseq
    %v1544 = vshrl.u32 %v1543, 7
    %v1545 = vsub.s32 1, %v1544
    %v1546 = vrot.slane %v1537, %v1545
    %v1547 = vlaneseq
    %v1548 = vshrl.u32 %v1547, 7
    %v1549 = vsub.s32 2, %v1548
    %v1550 = vrot.slane %v1537, %v1549
    %v1551 = vlaneseq
    %v1552 = vshrl.u32 %v1551, 7
    %v1553 = vsub.s32 3, %v1552
    %v1554 = vrot.slane %v1537, %v1553
    %v1555 = vlaneseq
    %v1556 = vshrl.u32 %v1555, 7
    %v1557 = vsub.s32 4, %v1556
    %v1558 = vrot.slane %v1537, %v1557
    %v1559 = vlaneseq
    %v1560 = vshrl.u32 %v1559, 7
    %v1561 = vsub.s32 5, %v1560
    %v1562 = vrot.slane %v1537, %v1561
    %v1563 = vlaneseq
    %v1564 = vshrl.u32 %v1563, 7
    %v1565 = vsub.s32 6, %v1564
    %v1566 = vrot.slane %v1537, %v1565
    %v1567 = vlaneseq
    %v1568 = vshrl.u32 %v1567, 7
    %v1569 = vsub.s32 7, %v1568
    %v1570 = vrot.slane %v1537, %v1569
    %v1707 = vunpack.c.l.b16 %v1409
    %v1708 = vunpack.c.h.b16 %v1409
    %v1709 = vunpack.c.l.b16 %v1410
    %v1710 = vunpack.c.h.b16 %v1410
    %v1711 = vunpack.c.l.b16 %v1411
    %v1712 = vunpack.c.h.b16 %v1411
    %v1713 = vunpack.c.l.b16 %v1412
    %v1714 = vunpack.c.h.b16 %v1412
    %v1715 = vunpack.c.l.b16 %v1413
    %v1716 = vunpack.c.h.b16 %v1413
    %v1717 = vunpack.c.l.b16 %v1414
    %v1718 = vunpack.c.h.b16 %v1414
    %v1719 = vunpack.c.l.b16 %v1415
    %v1720 = vunpack.c.h.b16 %v1415
    %v1721 = vunpack.c.l.b16 %v1416
    %v1722 = vunpack.c.h.b16 %v1416
    %v1723 = vunpack.c.l.b16 %v1417
    %v1724 = vunpack.c.h.b16 %v1417
    %v1725 = vunpack.c.l.b16 %v1418
    %v1726 = vunpack.c.h.b16 %v1418
    %v1727 = vunpack.c.l.b16 %v1419
    %v1728 = vunpack.c.h.b16 %v1419
    %v1729 = vunpack.c.l.b16 %v1420
    %v1730 = vunpack.c.h.b16 %v1420
    %v1731 = vunpack.c.l.b16 %v1421
    %v1732 = vunpack.c.h.b16 %v1421
    %v1733 = vunpack.c.l.b16 %v1422
    %v1734 = vunpack.c.h.b16 %v1422
    %v1735 = vunpack.c.l.b16 %v1423
    %v1736 = vunpack.c.h.b16 %v1423
    %v1737 = vunpack.c.l.b16 %v1424
    %v1738 = vunpack.c.h.b16 %v1424
    %v1739 = vunpack.c.l.b16 %v1425
    %v1740 = vunpack.c.h.b16 %v1425
    %v1741 = vunpack.c.l.b16 %v1426
    %v1742 = vunpack.c.h.b16 %v1426
    %v1743 = vunpack.c.l.b16 %v1427
    %v1744 = vunpack.c.h.b16 %v1427
    %v1745 = vunpack.c.l.b16 %v1428
    %v1746 = vunpack.c.h.b16 %v1428
    %v1747 = vunpack.c.l.b16 %v1429
    %v1748 = vunpack.c.h.b16 %v1429
    %v1749 = vunpack.c.l.b16 %v1430
    %v1750 = vunpack.c.h.b16 %v1430
    %v1751 = vunpack.c.l.b16 %v1431
    %v1752 = vunpack.c.h.b16 %v1431
    %v1753 = vunpack.c.l.b16 %v1432
    %v1754 = vunpack.c.h.b16 %v1432
    %v1755 = vunpack.c.l.b16 %v1433
    %v1756 = vunpack.c.h.b16 %v1433
    %v1757 = vunpack.c.l.b16 %v1434
    %v1758 = vunpack.c.h.b16 %v1434
    %v1759 = vunpack.c.l.b16 %v1435
    %v1760 = vunpack.c.h.b16 %v1435
    %v1761 = vunpack.c.l.b16 %v1436
    %v1762 = vunpack.c.h.b16 %v1436
    %v1763 = vunpack.c.l.b16 %v1437
    %v1764 = vunpack.c.h.b16 %v1437
    %v1765 = vunpack.c.l.b16 %v1438
    %v1766 = vunpack.c.h.b16 %v1438
    %v1767 = vunpack.c.l.b16 %v1439
    %v1768 = vunpack.c.h.b16 %v1439
    %v1769 = vunpack.c.l.b16 %v1440
    %v1770 = vunpack.c.h.b16 %v1440
    %v1771 = vunpack.c.l.b16 %v1441
    %v1772 = vunpack.c.h.b16 %v1441
    %v1773 = vunpack.c.l.b16 %v1442
    %v1774 = vunpack.c.h.b16 %v1442
    %v1775 = vunpack.c.l.b16 %v1443
    %v1776 = vunpack.c.h.b16 %v1443
    %v1777 = vunpack.c.l.b16 %v1444
    %v1778 = vunpack.c.h.b16 %v1444
    %v1779 = vunpack.c.l.b16 %v1445
    %v1780 = vunpack.c.h.b16 %v1445
    %v1781 = vunpack.c.l.b16 %v1446
    %v1782 = vunpack.c.h.b16 %v1446
    %v1783 = vunpack.c.l.b16 %v1447
    %v1784 = vunpack.c.h.b16 %v1447
    %v1785 = vunpack.c.l.b16 %v1448
    %v1786 = vunpack.c.h.b16 %v1448
    %v1787 = vunpack.c.l.b16 %v1449
    %v1788 = vunpack.c.h.b16 %v1449
    %v1789 = vunpack.c.l.b16 %v1450
    %v1790 = vunpack.c.h.b16 %v1450
    %v1791 = vunpack.c.l.b16 %v1451
    %v1792 = vunpack.c.h.b16 %v1451
    %v1793 = vunpack.c.l.b16 %v1452
    %v1794 = vunpack.c.h.b16 %v1452
    %v1795 = vunpack.c.l.b16 %v1453
    %v1796 = vunpack.c.h.b16 %v1453
    %v1797 = vunpack.c.l.b16 %v1454
    %v1798 = vunpack.c.h.b16 %v1454
    %v1799 = vunpack.c.l.b16 %v1455
    %v1800 = vunpack.c.h.b16 %v1455
    %v1801 = vunpack.c.l.b16 %v1456
    %v1802 = vunpack.c.h.b16 %v1456
    %v1803 = vunpack.c.l.b16 %v1457
    %v1804 = vunpack.c.h.b16 %v1457
    %v1805 = vunpack.c.l.b16 %v1458
    %v1806 = vunpack.c.h.b16 %v1458
    %v1807 = vunpack.c.l.b16 %v1459
    %v1808 = vunpack.c.h.b16 %v1459
    %v1809 = vunpack.c.l.b16 %v1460
    %v1810 = vunpack.c.h.b16 %v1460
    %v1811 = vunpack.c.l.b16 %v1461
    %v1812 = vunpack.c.h.b16 %v1461
    %v1813 = vunpack.c.l.b16 %v1462
    %v1814 = vunpack.c.h.b16 %v1462
    %v1815 = vunpack.c.l.b16 %v1463
    %v1816 = vunpack.c.h.b16 %v1463
    %v1817 = vunpack.c.l.b16 %v1464
    %v1818 = vunpack.c.h.b16 %v1464
    %v1819 = vunpack.c.l.b16 %v1465
    %v1820 = vunpack.c.h.b16 %v1465
    %v1821 = vunpack.c.l.b16 %v1466
    %v1822 = vunpack.c.h.b16 %v1466
    %v1823 = vunpack.c.l.b16 %v1467
    %v1824 = vunpack.c.h.b16 %v1467
    %v1825 = vunpack.c.l.b16 %v1468
    %v1826 = vunpack.c.h.b16 %v1468
    %v1827 = vunpack.c.l.b16 %v1469
    %v1828 = vunpack.c.h.b16 %v1469
    %v1829 = vunpack.c.l.b16 %v1470
    %v1830 = vunpack.c.h.b16 %v1470
    %v1831 = vunpack.c.l.b16 %v1471
    %v1832 = vunpack.c.h.b16 %v1471
    %v1833 = vunpack.c.l.b16 %v1472
    %v1834 = vunpack.c.h.b16 %v1472
    %v1835 = vunpack.c.l.b16 %v1473
    %v1836 = vunpack.c.h.b16 %v1473
    %v1837 = vunpack.c.l.b16 %v1474
    %v1838 = vunpack.c.h.b16 %v1474
    %v1839 = vunpack.c.l.b16 %v1475
    %v1840 = vunpack.c.h.b16 %v1475
    %v1841 = vunpack.c.l.b16 %v1476
    %v1842 = vunpack.c.h.b16 %v1476
    %v1843 = vunpack.c.l.b16 %v1477
    %v1844 = vunpack.c.h.b16 %v1477
    %v1845 = vunpack.c.l.b16 %v1478
    %v1846 = vunpack.c.h.b16 %v1478
    %v1847 = vunpack.c.l.b16 %v1479
    %v1848 = vunpack.c.h.b16 %v1479
    %v1849 = vunpack.c.l.b16 %v1480
    %v1850 = vunpack.c.h.b16 %v1480
    %v1851 = vunpack.c.l.b16 %v1481
    %v1852 = vunpack.c.h.b16 %v1481
    %v1853 = vunpack.c.l.b16 %v1482
    %v1854 = vunpack.c.h.b16 %v1482
    %v1855 = vunpack.c.l.b16 %v1483
    %v1856 = vunpack.c.h.b16 %v1483
    %v1857 = vunpack.c.l.b16 %v1484
    %v1858 = vunpack.c.h.b16 %v1484
    %v1859 = vunpack.c.l.b16 %v1485
    %v1860 = vunpack.c.h.b16 %v1485
    %v1861 = vunpack.c.l.b16 %v1486
    %v1862 = vunpack.c.h.b16 %v1486
    %v1863 = vunpack.c.l.b16 %v1487
    %v1864 = vunpack.c.h.b16 %v1487
    %v1865 = vunpack.c.l.b16 %v1488
    %v1866 = vunpack.c.h.b16 %v1488
    %v1867 = vunpack.c.l.b16 %v1489
    %v1868 = vunpack.c.h.b16 %v1489
    %v1869 = vunpack.c.l.b16 %v1490
    %v1870 = vunpack.c.h.b16 %v1490
    %v1871 = vunpack.c.l.b16 %v1491
    %v1872 = vunpack.c.h.b16 %v1491
    %v1873 = vunpack.c.l.b16 %v1492
    %v1874 = vunpack.c.h.b16 %v1492
    %v1875 = vunpack.c.l.b16 %v1493
    %v1876 = vunpack.c.h.b16 %v1493
    %v1877 = vunpack.c.l.b16 %v1494
    %v1878 = vunpack.c.h.b16 %v1494
    %v1879 = vunpack.c.l.b16 %v1495
    %v1880 = vunpack.c.h.b16 %v1495
    %v1881 = vunpack.c.l.b16 %v1496
    %v1882 = vunpack.c.h.b16 %v1496
    %v1883 = vunpack.c.l.b16 %v1497
    %v1884 = vunpack.c.h.b16 %v1497
    %v1885 = vunpack.c.l.b16 %v1498
    %v1886 = vunpack.c.h.b16 %v1498
    %v1887 = vunpack.c.l.b16 %v1499
    %v1888 = vunpack.c.h.b16 %v1499
    %v1889 = vunpack.c.l.b16 %v1500
    %v1890 = vunpack.c.h.b16 %v1500
    %v1891 = vunpack.c.l.b16 %v1501
    %v1892 = vunpack.c.h.b16 %v1501
    %v1893 = vunpack.c.l.b16 %v1502
    %v1894 = vunpack.c.h.b16 %v1502
    %v1895 = vunpack.c.l.b16 %v1503
    %v1896 = vunpack.c.h.b16 %v1503
    %v1897 = vunpack.c.l.b16 %v1504
    %v1898 = vunpack.c.h.b16 %v1504
    %v1899 = vunpack.c.l.b16 %v1505
    %v1900 = vunpack.c.h.b16 %v1505
    %v1901 = vunpack.c.l.b16 %v1506
    %v1902 = vunpack.c.h.b16 %v1506
    %v1903 = vunpack.c.l.b16 %v1507
    %v1904 = vunpack.c.h.b16 %v1507
    %v1905 = vunpack.c.l.b16 %v1508
    %v1906 = vunpack.c.h.b16 %v1508
    %v1907 = vunpack.c.l.b16 %v1509
    %v1908 = vunpack.c.h.b16 %v1509
    %v1909 = vunpack.c.l.b16 %v1510
    %v1910 = vunpack.c.h.b16 %v1510
    %v1911 = vunpack.c.l.b16 %v1511
    %v1912 = vunpack.c.h.b16 %v1511
    %v1913 = vunpack.c.l.b16 %v1512
    %v1914 = vunpack.c.h.b16 %v1512
    %v1915 = vunpack.c.l.b16 %v1513
    %v1916 = vunpack.c.h.b16 %v1513
    %v1917 = vunpack.c.l.b16 %v1514
    %v1918 = vunpack.c.h.b16 %v1514
    %v1919 = vunpack.c.l.b16 %v1515
    %v1920 = vunpack.c.h.b16 %v1515
    %v1921 = vunpack.c.l.b16 %v1516
    %v1922 = vunpack.c.h.b16 %v1516
    %v1923 = vunpack.c.l.b16 %v1517
    %v1924 = vunpack.c.h.b16 %v1517
    %v1925 = vunpack.c.l.b16 %v1518
    %v1926 = vunpack.c.h.b16 %v1518
    %v1927 = vunpack.c.l.b16 %v1519
    %v1928 = vunpack.c.h.b16 %v1519
    %v1929 = vunpack.c.l.b16 %v1520
    %v1930 = vunpack.c.h.b16 %v1520
    %v1931 = vunpack.c.l.b16 %v1521
    %v1932 = vunpack.c.h.b16 %v1521
    %v1933 = vunpack.c.l.b16 %v1522
    %v1934 = vunpack.c.h.b16 %v1522
    %v1935 = vunpack.c.l.b16 %v1523
    %v1936 = vunpack.c.h.b16 %v1523
    %v1937 = vunpack.c.l.b16 %v1524
    %v1938 = vunpack.c.h.b16 %v1524
    %v1939 = vunpack.c.l.b16 %v1525
    %v1940 = vunpack.c.h.b16 %v1525
    %v1941 = vunpack.c.l.b16 %v1526
    %v1942 = vunpack.c.h.b16 %v1526
    %v1943 = vunpack.c.l.b16 %v1527
    %v1944 = vunpack.c.h.b16 %v1527
    %v1945 = vunpack.c.l.b16 %v1528
    %v1946 = vunpack.c.h.b16 %v1528
    %v1947 = vunpack.c.l.b16 %v1529
    %v1948 = vunpack.c.h.b16 %v1529
    %v1949 = vunpack.c.l.b16 %v1530
    %v1950 = vunpack.c.h.b16 %v1530
    %v1951 = vunpack.c.l.b16 %v1531
    %v1952 = vunpack.c.h.b16 %v1531
    %v1953 = vunpack.c.l.b16 %v1532
    %v1954 = vunpack.c.h.b16 %v1532
    %v1955 = vunpack.c.l.b16 %v1533
    %v1956 = vunpack.c.h.b16 %v1533
    %v1957 = vunpack.c.l.b16 %v1534
    %v1958 = vunpack.c.h.b16 %v1534
    %v1959 = vunpack.c.l.b16 %v1535
    %v1960 = vunpack.c.h.b16 %v1535
    %v1961 = vunpack.c.l.b16 %v1536
    %v1962 = vunpack.c.h.b16 %v1536
    %v1963 = vpack.c.b16 %v1715, %v1707
    %v1964 = vpack.c.b16 %v1716, %v1708
    %v1965 = vpack.c.b16 %v1717, %v1709
    %v1966 = vpack.c.b16 %v1718, %v1710
    %v1967 = vpack.c.b16 %v1719, %v1711
    %v1968 = vpack.c.b16 %v1720, %v1712
    %v1969 = vpack.c.b16 %v1721, %v1713
    %v1970 = vpack.c.b16 %v1722, %v1714
    %v1971 = vpack.c.b16 %v1731, %v1723
    %v1972 = vpack.c.b16 %v1732, %v1724
    %v1973 = vpack.c.b16 %v1733, %v1725
    %v1974 = vpack.c.b16 %v1734, %v1726
    %v1975 = vpack.c.b16 %v1735, %v1727
    %v1976 = vpack.c.b16 %v1736, %v1728
    %v1977 = vpack.c.b16 %v1737, %v1729
    %v1978 = vpack.c.b16 %v1738, %v1730
    %v1979 = vpack.c.b16 %v1747, %v1739
    %v1980 = vpack.c.b16 %v1748, %v1740
    %v1981 = vpack.c.b16 %v1749, %v1741
    %v1982 = vpack.c.b16 %v1750, %v1742
    %v1983 = vpack.c.b16 %v1751, %v1743
    %v1984 = vpack.c.b16 %v1752, %v1744
    %v1985 = vpack.c.b16 %v1753, %v1745
    %v1986 = vpack.c.b16 %v1754, %v1746
    %v1987 = vpack.c.b16 %v1763, %v1755
    %v1988 = vpack.c.b16 %v1764, %v1756
    %v1989 = vpack.c.b16 %v1765, %v1757
    %v1990 = vpack.c.b16 %v1766, %v1758
    %v1991 = vpack.c.b16 %v1767, %v1759
    %v1992 = vpack.c.b16 %v1768, %v1760
    %v1993 = vpack.c.b16 %v1769, %v1761
    %v1994 = vpack.c.b16 %v1770, %v1762
    %v1995 = vpack.c.b16 %v1779, %v1771
    %v1996 = vpack.c.b16 %v1780, %v1772
    %v1997 = vpack.c.b16 %v1781, %v1773
    %v1998 = vpack.c.b16 %v1782, %v1774
    %v1999 = vpack.c.b16 %v1783, %v1775
    %v2000 = vpack.c.b16 %v1784, %v1776
    %v2001 = vpack.c.b16 %v1785, %v1777
    %v2002 = vpack.c.b16 %v1786, %v1778
    %v2003 = vpack.c.b16 %v1795, %v1787
    %v2004 = vpack.c.b16 %v1796, %v1788
    %v2005 = vpack.c.b16 %v1797, %v1789
    %v2006 = vpack.c.b16 %v1798, %v1790
    %v2007 = vpack.c.b16 %v1799, %v1791
    %v2008 = vpack.c.b16 %v1800, %v1792
    %v2009 = vpack.c.b16 %v1801, %v1793
    %v2010 = vpack.c.b16 %v1802, %v1794
    %v2011 = vpack.c.b16 %v1811, %v1803
    %v2012 = vpack.c.b16 %v1812, %v1804
    %v2013 = vpack.c.b16 %v1813, %v1805
    %v2014 = vpack.c.b16 %v1814, %v1806
    %v2015 = vpack.c.b16 %v1815, %v1807
    %v2016 = vpack.c.b16 %v1816, %v1808
    %v2017 = vpack.c.b16 %v1817, %v1809
    %v2018 = vpack.c.b16 %v1818, %v1810
    %v2019 = vpack.c.b16 %v1827, %v1819
    %v2020 = vpack.c.b16 %v1828, %v1820
    %v2021 = vpack.c.b16 %v1829, %v1821
    %v2022 = vpack.c.b16 %v1830, %v1822
    %v2023 = vpack.c.b16 %v1831, %v1823
    %v2024 = vpack.c.b16 %v1832, %v1824
    %v2025 = vpack.c.b16 %v1833, %v1825
    %v2026 = vpack.c.b16 %v1834, %v1826
    %v2027 = vpack.c.b16 %v1843, %v1835
    %v2028 = vpack.c.b16 %v1844, %v1836
    %v2029 = vpack.c.b16 %v1845, %v1837
    %v2030 = vpack.c.b16 %v1846, %v1838
    %v2031 = vpack.c.b16 %v1847, %v1839
    %v2032 = vpack.c.b16 %v1848, %v1840
    %v2033 = vpack.c.b16 %v1849, %v1841
    %v2034 = vpack.c.b16 %v1850, %v1842
    %v2035 = vpack.c.b16 %v1859, %v1851
    %v2036 = vpack.c.b16 %v1860, %v1852
    %v2037 = vpack.c.b16 %v1861, %v1853
    %v2038 = vpack.c.b16 %v1862, %v1854
    %v2039 = vpack.c.b16 %v1863, %v1855
    %v2040 = vpack.c.b16 %v1864, %v1856
    %v2041 = vpack.c.b16 %v1865, %v1857
    %v2042 = vpack.c.b16 %v1866, %v1858
    %v2043 = vpack.c.b16 %v1875, %v1867
    %v2044 = vpack.c.b16 %v1876, %v1868
    %v2045 = vpack.c.b16 %v1877, %v1869
    %v2046 = vpack.c.b16 %v1878, %v1870
    %v2047 = vpack.c.b16 %v1879, %v1871
    %v2048 = vpack.c.b16 %v1880, %v1872
    %v2049 = vpack.c.b16 %v1881, %v1873
    %v2050 = vpack.c.b16 %v1882, %v1874
    %v2051 = vpack.c.b16 %v1891, %v1883
    %v2052 = vpack.c.b16 %v1892, %v1884
    %v2053 = vpack.c.b16 %v1893, %v1885
    %v2054 = vpack.c.b16 %v1894, %v1886
    %v2055 = vpack.c.b16 %v1895, %v1887
    %v2056 = vpack.c.b16 %v1896, %v1888
    %v2057 = vpack.c.b16 %v1897, %v1889
    %v2058 = vpack.c.b16 %v1898, %v1890
    %v2059 = vpack.c.b16 %v1907, %v1899
    %v2060 = vpack.c.b16 %v1908, %v1900
    %v2061 = vpack.c.b16 %v1909, %v1901
    %v2062 = vpack.c.b16 %v1910, %v1902
    %v2063 = vpack.c.b16 %v1911, %v1903
    %v2064 = vpack.c.b16 %v1912, %v1904
    %v2065 = vpack.c.b16 %v1913, %v1905
    %v2066 = vpack.c.b16 %v1914, %v1906
    %v2067 = vpack.c.b16 %v1923, %v1915
    %v2068 = vpack.c.b16 %v1924, %v1916
    %v2069 = vpack.c.b16 %v1925, %v1917
    %v2070 = vpack.c.b16 %v1926, %v1918
    %v2071 = vpack.c.b16 %v1927, %v1919
    %v2072 = vpack.c.b16 %v1928, %v1920
    %v2073 = vpack.c.b16 %v1929, %v1921
    %v2074 = vpack.c.b16 %v1930, %v1922
    %v2075 = vpack.c.b16 %v1939, %v1931
    %v2076 = vpack.c.b16 %v1940, %v1932
    %v2077 = vpack.c.b16 %v1941, %v1933
    %v2078 = vpack.c.b16 %v1942, %v1934
    %v2079 = vpack.c.b16 %v1943, %v1935
    %v2080 = vpack.c.b16 %v1944, %v1936
    %v2081 = vpack.c.b16 %v1945, %v1937
    %v2082 = vpack.c.b16 %v1946, %v1938
    %v2083 = vpack.c.b16 %v1955, %v1947
    %v2084 = vpack.c.b16 %v1956, %v1948
    %v2085 = vpack.c.b16 %v1957, %v1949
    %v2086 = vpack.c.b16 %v1958, %v1950
    %v2087 = vpack.c.b16 %v1959, %v1951
    %v2088 = vpack.c.b16 %v1960, %v1952
    %v2089 = vpack.c.b16 %v1961, %v1953
    %v2090 = vpack.c.b16 %v1962, %v1954
    %2219 = vmatprep.subr.bf16.mxu0 %v1964
    %2220 = vmatpush1.bf16.msra.mxu0 %v1963
    %2221 = vmatprep.subr.bf16.mxu0 %v1972
    %2222 = vmatpush1.bf16.msra.mxu0 %v1971
    %2223 = vmatprep.subr.bf16.mxu0 %v1980
    %2224 = vmatpush1.bf16.msra.mxu0 %v1979
    %2225 = vmatprep.subr.bf16.mxu0 %v1988
    %2226 = vmatpush1.bf16.msra.mxu0 %v1987
    %2227 = vmatprep.subr.bf16.mxu0 %v1996
    %2228 = vmatpush1.bf16.msra.mxu0 %v1995
    %2229 = vmatprep.subr.bf16.mxu0 %v2004
    %2230 = vmatpush1.bf16.msra.mxu0 %v2003
    %2231 = vmatprep.subr.bf16.mxu0 %v2012
    %2232 = vmatpush1.bf16.msra.mxu0 %v2011
    %2233 = vmatprep.subr.bf16.mxu0 %v2020
    %2234 = vmatpush1.bf16.msra.mxu0 %v2019
    %2235 = vmatprep.subr.bf16.mxu0 %v2028
    %2236 = vmatpush1.bf16.msra.mxu0 %v2027
    %2237 = vmatprep.subr.bf16.mxu0 %v2036
    %2238 = vmatpush1.bf16.msra.mxu0 %v2035
    %2239 = vmatprep.subr.bf16.mxu0 %v2044
    %2240 = vmatpush1.bf16.msra.mxu0 %v2043
    %2241 = vmatprep.subr.bf16.mxu0 %v2052
    %2242 = vmatpush1.bf16.msra.mxu0 %v2051
    %2243 = vmatprep.subr.bf16.mxu0 %v2060
    %2244 = vmatpush1.bf16.msra.mxu0 %v2059
    %2245 = vmatprep.subr.bf16.mxu0 %v2068
    %2246 = vmatpush1.bf16.msra.mxu0 %v2067
    %2247 = vmatprep.subr.bf16.mxu0 %v2076
    %2248 = vmatpush1.bf16.msra.mxu0 %v2075
    %2249 = vmatprep.subr.bf16.mxu0 %v2084
    %2250 = vmatpush1.bf16.msra.mxu0 %v2083
    %2251 = vmatprep.mubr.bf16.mxu0 %v1408
    %2252 = vmatmul.mubr.bf16.gmra.mrb[0].mxu0 %v1407
    %v2253 = vpop.f32.mrb[0].mxu0
    %v2254 = vadd.f32 %v1542, %v2253
    %v2255 = vpop.f32.mrb[0].mxu0
    %v2256 = vadd.f32 %v1546, %v2255
    %v2257 = vpop.f32.mrb[0].mxu0
    %v2258 = vpop.f32.mrb[0].mxu0
    %2259 = vdwg.mxu0
    %2260 = vmatprep.subr.bf16.mxu0 %v1966
    %2261 = vmatpush1.bf16.msra.mxu0 %v1965
    %2262 = vmatprep.subr.bf16.mxu0 %v1974
    %2263 = vmatpush1.bf16.msra.mxu0 %v1973
    %2264 = vmatprep.subr.bf16.mxu0 %v1982
    %2265 = vmatpush1.bf16.msra.mxu0 %v1981
    %2266 = vmatprep.subr.bf16.mxu0 %v1990
    %2267 = vmatpush1.bf16.msra.mxu0 %v1989
    %2268 = vmatprep.subr.bf16.mxu0 %v1998
    %2269 = vmatpush1.bf16.msra.mxu0 %v1997
    %2270 = vmatprep.subr.bf16.mxu0 %v2006
    %2271 = vmatpush1.bf16.msra.mxu0 %v2005
    %2272 = vmatprep.subr.bf16.mxu0 %v2014
    %2273 = vmatpush1.bf16.msra.mxu0 %v2013
    %2274 = vmatprep.subr.bf16.mxu0 %v2022
    %2275 = vmatpush1.bf16.msra.mxu0 %v2021
    %2276 = vmatprep.subr.bf16.mxu0 %v2030
    %2277 = vmatpush1.bf16.msra.mxu0 %v2029
    %2278 = vmatprep.subr.bf16.mxu0 %v2038
    %2279 = vmatpush1.bf16.msra.mxu0 %v2037
    %2280 = vmatprep.subr.bf16.mxu0 %v2046
    %2281 = vmatpush1.bf16.msra.mxu0 %v2045
    %2282 = vmatprep.subr.bf16.mxu0 %v2054
    %2283 = vmatpush1.bf16.msra.mxu0 %v2053
    %2284 = vmatprep.subr.bf16.mxu0 %v2062
    %2285 = vmatpush1.bf16.msra.mxu0 %v2061
    %2286 = vmatprep.subr.bf16.mxu0 %v2070
    %2287 = vmatpush1.bf16.msra.mxu0 %v2069
    %2288 = vmatprep.subr.bf16.mxu0 %v2078
    %2289 = vmatpush1.bf16.msra.mxu0 %v2077
    %2290 = vmatprep.subr.bf16.mxu0 %v2086
    %2291 = vmatpush1.bf16.msra.mxu0 %v2085
    %2292 = vmatprep.mubr.bf16.mxu0 %v1408
    %2293 = vmatmul.mubr.bf16.gmra.mrb[0].mxu0 %v1407
    %v2294 = vpop.f32.mrb[0].mxu0
    %v2295 = vadd.f32 %v1550, %v2294
    %v2296 = vpop.f32.mrb[0].mxu0
    %v2297 = vadd.f32 %v1554, %v2296
    %v2298 = vpop.f32.mrb[0].mxu0
    %v2299 = vpop.f32.mrb[0].mxu0
    %2300 = vdwg.mxu0
    %2301 = vmatprep.subr.bf16.mxu0 %v1968
    %2302 = vmatpush1.bf16.msra.mxu0 %v1967
    %2303 = vmatprep.subr.bf16.mxu0 %v1976
    %2304 = vmatpush1.bf16.msra.mxu0 %v1975
    %2305 = vmatprep.subr.bf16.mxu0 %v1984
    %2306 = vmatpush1.bf16.msra.mxu0 %v1983
    %2307 = vmatprep.subr.bf16.mxu0 %v1992
    %2308 = vmatpush1.bf16.msra.mxu0 %v1991
    %2309 = vmatprep.subr.bf16.mxu0 %v2000
    %2310 = vmatpush1.bf16.msra.mxu0 %v1999
    %2311 = vmatprep.subr.bf16.mxu0 %v2008
    %2312 = vmatpush1.bf16.msra.mxu0 %v2007
    %2313 = vmatprep.subr.bf16.mxu0 %v2016
    %2314 = vmatpush1.bf16.msra.mxu0 %v2015
    %2315 = vmatprep.subr.bf16.mxu0 %v2024
    %2316 = vmatpush1.bf16.msra.mxu0 %v2023
    %2317 = vmatprep.subr.bf16.mxu0 %v2032
    %2318 = vmatpush1.bf16.msra.mxu0 %v2031
    %2319 = vmatprep.subr.bf16.mxu0 %v2040
    %2320 = vmatpush1.bf16.msra.mxu0 %v2039
    %2321 = vmatprep.subr.bf16.mxu0 %v2048
    %2322 = vmatpush1.bf16.msra.mxu0 %v2047
    %2323 = vmatprep.subr.bf16.mxu0 %v2056
    %2324 = vmatpush1.bf16.msra.mxu0 %v2055
    %2325 = vmatprep.subr.bf16.mxu0 %v2064
    %2326 = vmatpush1.bf16.msra.mxu0 %v2063
    %2327 = vmatprep.subr.bf16.mxu0 %v2072
    %2328 = vmatpush1.bf16.msra.mxu0 %v2071
    %2329 = vmatprep.subr.bf16.mxu0 %v2080
    %2330 = vmatpush1.bf16.msra.mxu0 %v2079
    %2331 = vmatprep.subr.bf16.mxu0 %v2088
    %2332 = vmatpush1.bf16.msra.mxu0 %v2087
    %2333 = vmatprep.mubr.bf16.mxu0 %v1408
    %2334 = vmatmul.mubr.bf16.gmra.mrb[0].mxu0 %v1407
    %v2335 = vpop.f32.mrb[0].mxu0
    %v2336 = vadd.f32 %v1558, %v2335
    %v2337 = vpop.f32.mrb[0].mxu0
    %v2338 = vadd.f32 %v1562, %v2337
    %v2339 = vpop.f32.mrb[0].mxu0
    %v2340 = vpop.f32.mrb[0].mxu0
    %2341 = vdwg.mxu0
    %2342 = vmatprep.subr.bf16.mxu0 %v1970
    %2343 = vmatpush1.bf16.msra.mxu0 %v1969
    %2344 = vmatprep.subr.bf16.mxu0 %v1978
    %2345 = vmatpush1.bf16.msra.mxu0 %v1977
    %2346 = vmatprep.subr.bf16.mxu0 %v1986
    %2347 = vmatpush1.bf16.msra.mxu0 %v1985
    %2348 = vmatprep.subr.bf16.mxu0 %v1994
    %2349 = vmatpush1.bf16.msra.mxu0 %v1993
    %2350 = vmatprep.subr.bf16.mxu0 %v2002
    %2351 = vmatpush1.bf16.msra.mxu0 %v2001
    %2352 = vmatprep.subr.bf16.mxu0 %v2010
    %2353 = vmatpush1.bf16.msra.mxu0 %v2009
    %2354 = vmatprep.subr.bf16.mxu0 %v2018
    %2355 = vmatpush1.bf16.msra.mxu0 %v2017
    %2356 = vmatprep.subr.bf16.mxu0 %v2026
    %2357 = vmatpush1.bf16.msra.mxu0 %v2025
    %2358 = vmatprep.subr.bf16.mxu0 %v2034
    %2359 = vmatpush1.bf16.msra.mxu0 %v2033
    %2360 = vmatprep.subr.bf16.mxu0 %v2042
    %2361 = vmatpush1.bf16.msra.mxu0 %v2041
    %2362 = vmatprep.subr.bf16.mxu0 %v2050
    %2363 = vmatpush1.bf16.msra.mxu0 %v2049
    %2364 = vmatprep.subr.bf16.mxu0 %v2058
    %2365 = vmatpush1.bf16.msra.mxu0 %v2057
    %2366 = vmatprep.subr.bf16.mxu0 %v2066
    %2367 = vmatpush1.bf16.msra.mxu0 %v2065
    %2368 = vmatprep.subr.bf16.mxu0 %v2074
    %2369 = vmatpush1.bf16.msra.mxu0 %v2073
    %2370 = vmatprep.subr.bf16.mxu0 %v2082
    %2371 = vmatpush1.bf16.msra.mxu0 %v2081
    %2372 = vmatprep.subr.bf16.mxu0 %v2090
    %2373 = vmatpush1.bf16.msra.mxu0 %v2089
    %2374 = vmatprep.mubr.bf16.mxu0 %v1408
    %2375 = vmatmul.mubr.bf16.gmra.mrb[0].mxu0 %v1407
    %v2376 = vpop.f32.mrb[0].mxu0
    %v2377 = vadd.f32 %v1566, %v2376
    %v2378 = vpop.f32.mrb[0].mxu0
    %v2379 = vadd.f32 %v1570, %v2378
    %v2380 = vpop.f32.mrb[0].mxu0
    %v2381 = vpop.f32.mrb[0].mxu0
    %2382 = vdwg.mxu0
    %v2383 = vmul.f32 %v2254, 0.5
    %v2384 = vmul.f32 %v2256, 0.5
    %v2385 = vmul.f32 %v2295, 0.5
    %v2386 = vmul.f32 %v2297, 0.5
    %v2387 = vmul.f32 %v2336, 0.5
    %v2388 = vmul.f32 %v2338, 0.5
    %v2389 = vmul.f32 %v2377, 0.5
    %v2390 = vmul.f32 %v2379, 0.5
    %v2391 = vtanh.pop %v2383
    %v2392 = vtanh.pop %v2384
    %v2393 = vtanh.pop %v2385
    %v2394 = vtanh.pop %v2386
    %v2395 = vtanh.pop %v2387
    %v2396 = vtanh.pop %v2388
    %v2397 = vtanh.pop %v2389
    %v2398 = vtanh.pop %v2390
    %v2399 = vadd.f32 %v2391, 1.0
    %v2400 = vadd.f32 %v2392, 1.0
    %v2401 = vadd.f32 %v2393, 1.0
    %v2402 = vadd.f32 %v2394, 1.0
    %v2403 = vadd.f32 %v2395, 1.0
    %v2404 = vadd.f32 %v2396, 1.0
    %v2405 = vadd.f32 %v2397, 1.0
    %v2406 = vadd.f32 %v2398, 1.0
    %v2407 = vmul.f32 %v2399, 0.5
    %v2408 = vmul.f32 %v2400, 0.5
    %v2409 = vmul.f32 %v2401, 0.5
    %v2410 = vmul.f32 %v2402, 0.5
    %v2411 = vmul.f32 %v2403, 0.5
    %v2412 = vmul.f32 %v2404, 0.5
    %v2413 = vmul.f32 %v2405, 0.5
    %v2414 = vmul.f32 %v2406, 0.5
    %2415 = vst [vmem:[#allocation11] sm:$0xff] %v2407
    %2416 = vst [vmem:[#allocation11 + $0x8] sm:$0xff] %v2408
    %2417 = vst [vmem:[#allocation11 + $0x10] sm:$0xff] %v2409
    %2418 = vst [vmem:[#allocation11 + $0x18] sm:$0xff] %v2410
    %2419 = vst [vmem:[#allocation11 + $0x20] sm:$0xff] %v2411
    %2420 = vst [vmem:[#allocation11 + $0x28] sm:$0xff] %v2412
    %2421 = vst [vmem:[#allocation11 + $0x30] sm:$0xff] %v2413
    %2422 = vst [vmem:[#allocation11 + $0x38] sm:$0xff] %v2414
    // Predicated region
    $region58: #{tpu_custom_call.1} parent=1 // pred_check
      _
    $region59: #{tpu_custom_call.1} parent=1 // pred_check_branch
      %2424 = sbr.rel (0) target = $region61
    $region60: #{tpu_custom_call.1} parent=1 // pred_region
      %s2426 = ssub.s32 1024, 1024
      %2427 = vsyncadd [#allocation4], %s2426
      %s2429 = sshll.u32 [#allocation11], 4
      %s2430 = int_to_ptr.vmem [resolvable:$true] %s2429
      %2432 = dma.vmem_to_hbm [thread:$0]  %s2430, 1024, %s9, [#allocation4]
    $region61: #{tpu_custom_call.1} parent=1 // pred_fallthru
      _
    // Predicated region
    $region62: #{tpu_custom_call.1} parent=1 // pred_check
      _
    $region63: #{tpu_custom_call.1} parent=1 // pred_check_branch
      %2434 = sbr.rel (0) target = $region65
    $region64: #{tpu_custom_call.1} parent=1 // pred_region
      %2435 = dma.done [#allocation4], 1024
    $region65: #{tpu_custom_call.1} parent=1 // pred_fallthru
      _
    %2436 = vsyncpa [#allocation3], 1
    %2437 = vsyncpa [#allocation6], 1
    %2438 = vsyncpa [#allocation9], 1
    %2439 = vsyncpa [#allocation4], 1

</llo_original>
